<compile_context>
chip_gen: v7x
topology: tpu7x:2x2x1
jax: 0.10.0
libtpu: 0.0.40
codegen_flags: <defaults>
</compile_context>

<pallas_src>
import math

import jax
import jax.numpy as jnp
from jax.experimental import pallas as pl
from jax.experimental.pallas import tpu as pltpu

# ---- small synthetic config (stands in for bert_config.json) ----
B, S = 2, 8            # batch, sequence length
H = 128                # hidden size (lane-dense stand-in for 768)
NH = 4                 # attention heads
DH = H // NH           # head dim
FF = 4 * H             # intermediate (FFN) size
NLAYERS = 2            # transformer layers
VOCAB = 64             # synthetic vocab
NTYPES = 2             # token type vocab
EPS = 1e-12            # BERT LayerNorm eps
M = B * S              # flattened token rows fed to every matmul


# ---------------------------------------------------------------------------
# Fused encoder kernel: one grid step = one transformer layer (batch folded in)
# ---------------------------------------------------------------------------
def _layernorm(x, g, b):
    mu = jnp.mean(x, axis=-1, keepdims=True)
    var = jnp.mean(jnp.square(x - mu), axis=-1, keepdims=True)
    return (x - mu) * jax.lax.rsqrt(var + EPS) * g + b


def _encoder_kernel(emb_ref, bias_ref, eg_ref, eb_ref,
                    wqkv_ref, bqkv_ref, wo_ref, bo_ref, ln1g_ref, ln1b_ref,
                    w1_ref, b1_ref, w2_ref, b2_ref, ln2g_ref, ln2b_ref,
                    hid_ref, attn_ref):
    l = pl.program_id(0)
    n_layers = pl.num_programs(0)

    # --- embedding LayerNorm initializes the resident residual stream (no zeros DMA) ---
    @pl.when(l == 0)
    def _():
        hid_ref[...] = _layernorm(emb_ref[...], eg_ref[...], eb_ref[...])

    x = hid_ref[...]                       # (M, H) f32, resident across layer steps
    xb = x.astype(jnp.bfloat16)

    # --- fused QKV projection: bf16 MXU operands, f32 accumulate.
    #     1/sqrt(DH) is pre-folded into the Q columns of wqkv/bqkv (param prep). ---
    qkv = (jnp.dot(xb, wqkv_ref[...], preferred_element_type=jnp.float32)
           + bqkv_ref[...])                                              # (M, 3H) f32
    qkv_bf = qkv.astype(jnp.bfloat16)      # single cast, hoisted out of the head loop

    ctx_rows = []
    p_all = []                             # per-batch list of per-head probs (S, S)
    for b in range(B):                     # B=2, python-unrolled; row slices sublane-aligned
        r0, r1 = b * S, (b + 1) * S
        bias_full = jnp.broadcast_to(bias_ref[b:b + 1, :], (S, S))       # hoisted, once/batch
        ctx_heads = []
        p_heads = []
        for h in range(NH):                # NH=4, python-unrolled
            qh = qkv_bf[r0:r1, h * DH:(h + 1) * DH]
            kh = qkv_bf[r0:r1, H + h * DH:H + (h + 1) * DH]
            vh = qkv_bf[r0:r1, 2 * H + h * DH:2 * H + (h + 1) * DH]
            s = jax.lax.dot_general(
                qh, kh, (((1,), (1,)), ((), ())),
                preferred_element_type=jnp.float32) + bias_full          # (S, S)
            m = jnp.max(s, axis=-1, keepdims=True)
            e = jnp.exp(s - m)                                           # f32 softmax stats
            p = e * pl.reciprocal(jnp.sum(e, axis=-1, keepdims=True), approx=True)
            ctx_heads.append(jnp.dot(p.astype(jnp.bfloat16), vh,
                                     preferred_element_type=jnp.float32))  # (S, DH)
            p_heads.append(p)
        ctx_rows.append(jnp.concatenate(ctx_heads, axis=-1))             # (S, H)
        p_all.append(p_heads)
    ctx = jnp.concatenate(ctx_rows, axis=0)                              # (M, H)

    # --- attention output dense + residual + LayerNorm ---
    attn_out = (jnp.dot(ctx.astype(jnp.bfloat16), wo_ref[...],
                        preferred_element_type=jnp.float32) + bo_ref[...])
    x1 = _layernorm(attn_out + x, ln1g_ref[...], ln1b_ref[...])

    # --- FFN (dense -> GELU -> dense) + residual + LayerNorm ---
    h1 = (jnp.dot(x1.astype(jnp.bfloat16), w1_ref[...],
                  preferred_element_type=jnp.float32) + b1_ref[...])
    # TODO(synk): HF BERT uses exact erf GELU; tanh approximation kept here since erf has
    # no guaranteed Mosaic lowering (~1e-3 level deviation on a synthetic stack).
    h1 = jax.nn.gelu(h1, approximate=True)
    ffn = (jnp.dot(h1.astype(jnp.bfloat16), w2_ref[...],
                   preferred_element_type=jnp.float32) + b2_ref[...])
    x2 = _layernorm(ffn + x1, ln2g_ref[...], ln2b_ref[...])
    hid_ref[...] = x2                      # carry residual stream to next layer step

    # only the last layer's head-averaged q=0 attention row is consumed downstream;
    # the row extraction / average is runtime-gated so intermediate layers skip it.
    @pl.when(l == n_layers - 1)
    def _():
        rows = [sum(p[0:1, :] for p in p_all[b]) * (1.0 / NH) for b in range(B)]
        # TODO(synk): for production S (not a multiple of 128) pad this row to a
        # lane-dense slab to avoid masked partial stores; negligible at S=8.
        attn_ref[...] = jnp.concatenate(rows, axis=0)                    # (B, S)


def encoder_stack(emb2d, mask_bias, p):
    """emb2d:(B*S,H) f32, mask_bias:(B,S) f32 -> (last_hidden (B*S,H), attn_q0 (B,S))."""
    weight_spec = lambda shape: pl.BlockSpec((None,) + shape, lambda l: (l, 0, 0))
    in_specs = [
        pl.BlockSpec((M, H), lambda l: (0, 0)),   # embeddings (flattened batch*seq)
        pl.BlockSpec((B, S), lambda l: (0, 0)),   # additive mask bias
        pl.BlockSpec((1, H), lambda l: (0, 0)),   # emb LN gamma
        pl.BlockSpec((1, H), lambda l: (0, 0)),   # emb LN beta
        weight_spec((H, 3 * H)),   # wqkv (bf16, Q cols pre-scaled by 1/sqrt(DH))
        weight_spec((1, 3 * H)),   # bqkv
        weight_spec((H, H)),       # wo   (bf16)
        weight_spec((1, H)),       # bo
        weight_spec((1, H)),       # ln1 gamma
        weight_spec((1, H)),       # ln1 beta
        weight_spec((H, FF)),      # w1   (bf16)
        weight_spec((1, FF)),      # b1
        weight_spec((FF, H)),      # w2   (bf16)
        weight_spec((1, H)),       # b2
        weight_spec((1, H)),       # ln2 gamma
        weight_spec((1, H)),       # ln2 beta
    ]
    out_specs = (
        pl.BlockSpec((M, H), lambda l: (0, 0)),   # last hidden state (resident carry)
        pl.BlockSpec((B, S), lambda l: (0, 0)),   # last-layer q=0 attention rows
    )

    # --- advisory cost estimate for XLA scheduling of the single fused call ---
    mm_flops_layer = (2 * M * H * 3 * H            # qkv
                      + B * NH * 2 * 2 * S * S * DH  # scores + PV
                      + 2 * M * H * H              # attn out dense
                      + 2 * M * H * FF             # ffn up
                      + 2 * M * FF * H)            # ffn down
    transc_layer = B * NH * S * S + M * FF + 3 * M   # exp + gelu tanh + rsqrt (rough)
    weight_bytes_layer = (H * 3 * H + H * H + H * FF + FF * H) * 2 \
        + (3 * H + H + FF + H + 4 * H) * 4
    cost = pl.CostEstimate(
        flops=NLAYERS * mm_flops_layer,
        transcendentals=NLAYERS * transc_layer,
        bytes_accessed=NLAYERS * weight_bytes_layer + 2 * M * H * 4 + B * S * 4 * 2)

    return pl.pallas_call(
        _encoder_kernel,
        grid=(NLAYERS,),
        in_specs=in_specs,
        out_specs=out_specs,
        out_shape=(jax.ShapeDtypeStruct((M, H), jnp.float32),
                   jax.ShapeDtypeStruct((B, S), jnp.float32)),
        compiler_params=pltpu.CompilerParams(
            # layer axis carries the residual stream -> must be "arbitrary".
            # (For production shapes add a leading batch/seq-tile "parallel" axis so
            #  v7x's second TensorCore gets work.)
            dimension_semantics=("arbitrary",),
            # safe everywhere at these shapes; re-budget + tile FF for real BERT on v7x.
            vmem_limit_bytes=32 * 1024 * 1024),
        cost_estimate=cost,
    )(emb2d, mask_bias, p["emb_ln_g"], p["emb_ln_b"],
      p["wqkv"], p["bqkv"], p["wo"], p["bo"], p["ln1_g"], p["ln1_b"],
      p["w1"], p["b1"], p["w2"], p["b2"], p["ln2_g"], p["ln2_b"])


# ---------------------------------------------------------------------------
# Model glue (plain JAX): embedding gather, synthetic params, output slicing
# ---------------------------------------------------------------------------
def init_params(key):
    keys = jax.random.split(key, 8)
    n = lambda k, shape, s=0.02: s * jax.random.normal(k, shape, jnp.float32)

    # fold the 1/sqrt(DH) attention scale into the Q projection (one-time, host-side)
    scale = 1.0 / math.sqrt(DH)
    wqkv = n(keys[3], (NLAYERS, H, 3 * H)).at[:, :, :H].multiply(scale)
    bqkv = jnp.zeros((NLAYERS, 1, 3 * H), jnp.float32).at[:, :, :H].multiply(scale)

    return {
        "word_emb": n(keys[0], (VOCAB, H)),
        "pos_emb": n(keys[1], (S, H)),
        "type_emb": n(keys[2], (NTYPES, H)),
        "emb_ln_g": jnp.ones((1, H), jnp.float32),
        "emb_ln_b": jnp.zeros((1, H), jnp.float32),
        # per-layer weights stacked on a leading layer axis; matmul weights stored bf16
        "wqkv": wqkv.astype(jnp.bfloat16),
        "bqkv": bqkv,
        "wo": n(keys[4], (NLAYERS, H, H)).astype(jnp.bfloat16),
        "bo": jnp.zeros((NLAYERS, 1, H), jnp.float32),
        "ln1_g": jnp.ones((NLAYERS, 1, H), jnp.float32),
        "ln1_b": jnp.zeros((NLAYERS, 1, H), jnp.float32),
        "w1": n(keys[5], (NLAYERS, H, FF)).astype(jnp.bfloat16),
        "b1": jnp.zeros((NLAYERS, 1, FF), jnp.float32),
        "w2": n(keys[6], (NLAYERS, FF, H)).astype(jnp.bfloat16),
        "b2": jnp.zeros((NLAYERS, 1, H), jnp.float32),
        "ln2_g": jnp.ones((NLAYERS, 1, H), jnp.float32),
        "ln2_b": jnp.zeros((NLAYERS, 1, H), jnp.float32),
    }


def bert_encoder_forward(ids, attn_mask, token_type, params):
    """Mirrors BertEncoder.forward: returns (report_feat, word_feat, last_atten_pt, sents)."""
    # --- BertModel embeddings (gather is glue; LayerNorm happens inside the kernel) ---
    emb = (params["word_emb"][ids]
           + params["pos_emb"][None, :, :]
           + params["type_emb"][token_type]).astype(jnp.float32)          # (B, S, H)
    emb2d = emb.reshape(B * S, H)

    # BERT extended attention mask, precomputed once (additive bias)
    mask_bias = (1.0 - attn_mask.astype(jnp.float32)) * -10000.0          # (B, S)

    last_hidden2d, attn_q0 = encoder_stack(emb2d, mask_bias, params)
    last_hidden = last_hidden2d.reshape(B, S, H)

    # outputs.attentions[-1][:, :, 0, 1:].mean(dim=1)
    last_atten_pt = attn_q0[:, 1:]                                        # (B, S-1)

    # TODO(synk): aggregate_tokens() merges '##' wordpieces via host-side tokenizer string
    # logic -- no Pallas equivalent; pass-through.
    report_feat = last_hidden[:, 0]                                       # (B, H)
    word_feat = last_hidden[:, 1:]                                        # (B, S-1, H)
    sents = [[int(w) for w in sent] for sent in ids.tolist()]             # ids stand in for words
    return report_feat, word_feat, last_atten_pt, sents


if __name__ == "__main__":
    root = jax.random.PRNGKey(0)
    k_param, k_ids = jax.random.split(root)
    params = init_params(k_param)

    ids = jax.random.randint(k_ids, (B, S), 0, VOCAB, dtype=jnp.int32)
    attn_mask = jnp.ones((B, S), jnp.int32)
    token_type = jnp.zeros((B, S), jnp.int32)

    report_feat, word_feat, last_atten_pt, sents = bert_encoder_forward(
        ids, attn_mask, token_type, params)
    jax.block_until_ready((report_feat, word_feat, last_atten_pt))

    assert report_feat.shape == (B, H)
    assert word_feat.shape == (B, S - 1, H)
    assert last_atten_pt.shape == (B, S - 1)
    assert bool(jnp.all(jnp.isfinite(report_feat)))
    assert bool(jnp.all(jnp.isfinite(last_atten_pt)))
    print("KERNEL_OK")
</pallas_src>

<mosaic_0001>
module attributes {stable_mosaic.version = 11 : i64} {
  func.func @_encoder_kernel(%arg0: i32, %arg1: memref<16x128xf32, #tpu.memory_space<vmem>>, %arg2: memref<2x8xf32, #tpu.memory_space<vmem>>, %arg3: memref<1x128xf32, #tpu.memory_space<vmem>>, %arg4: memref<1x128xf32, #tpu.memory_space<vmem>>, %arg5: memref<1x128x384xbf16, #tpu.memory_space<vmem>>, %arg6: memref<1x1x384xf32, #tpu.memory_space<vmem>>, %arg7: memref<1x128x128xbf16, #tpu.memory_space<vmem>>, %arg8: memref<1x1x128xf32, #tpu.memory_space<vmem>>, %arg9: memref<1x1x128xf32, #tpu.memory_space<vmem>>, %arg10: memref<1x1x128xf32, #tpu.memory_space<vmem>>, %arg11: memref<1x128x512xbf16, #tpu.memory_space<vmem>>, %arg12: memref<1x1x512xf32, #tpu.memory_space<vmem>>, %arg13: memref<1x512x128xbf16, #tpu.memory_space<vmem>>, %arg14: memref<1x1x128xf32, #tpu.memory_space<vmem>>, %arg15: memref<1x1x128xf32, #tpu.memory_space<vmem>>, %arg16: memref<1x1x128xf32, #tpu.memory_space<vmem>>, %arg17: memref<16x128xf32, #tpu.memory_space<vmem>>, %arg18: memref<2x8xf32, #tpu.memory_space<vmem>>) attributes {dimension_semantics = [#tpu.dimension_semantics<arbitrary>], iteration_bounds = array<i64: 2>, scalar_prefetch = 0 : i64, scratch_operands = 0 : i64, tpu.core_type = #tpu.core_type<tc>, window_params = [{pipeline_mode = #tpu.pipeline_mode<synchronous>, transform_indices = @transform_0, window_bounds = array<i64: 16, 128>}, {pipeline_mode = #tpu.pipeline_mode<synchronous>, transform_indices = @transform_1, window_bounds = array<i64: 2, 8>}, {pipeline_mode = #tpu.pipeline_mode<synchronous>, transform_indices = @transform_2, window_bounds = array<i64: 1, 128>}, {pipeline_mode = #tpu.pipeline_mode<synchronous>, transform_indices = @transform_3, window_bounds = array<i64: 1, 128>}, {transform_indices = @transform_4, window_bounds = array<i64: 1, 128, 384>}, {transform_indices = @transform_5, window_bounds = array<i64: 1, 1, 384>}, {transform_indices = @transform_6, window_bounds = array<i64: 1, 128, 128>}, {transform_indices = @transform_7, window_bounds = array<i64: 1, 1, 128>}, {transform_indices = @transform_8, window_bounds = array<i64: 1, 1, 128>}, {transform_indices = @transform_9, window_bounds = array<i64: 1, 1, 128>}, {transform_indices = @transform_10, window_bounds = array<i64: 1, 128, 512>}, {transform_indices = @transform_11, window_bounds = array<i64: 1, 1, 512>}, {transform_indices = @transform_12, window_bounds = array<i64: 1, 512, 128>}, {transform_indices = @transform_13, window_bounds = array<i64: 1, 1, 128>}, {transform_indices = @transform_14, window_bounds = array<i64: 1, 1, 128>}, {transform_indices = @transform_15, window_bounds = array<i64: 1, 1, 128>}, {pipeline_mode = #tpu.pipeline_mode<synchronous>, transform_indices = @transform_16, window_bounds = array<i64: 16, 128>}, {pipeline_mode = #tpu.pipeline_mode<synchronous>, transform_indices = @transform_17, window_bounds = array<i64: 2, 8>}]} {
    %c0_i32 = arith.constant 0 : i32
    %0 = arith.cmpi eq, %arg0, %c0_i32 : i32
    %1 = arith.extui %0 : i1 to i32
    %c0_i32_0 = arith.constant 0 : i32
    %2 = arith.cmpi ne, %1, %c0_i32_0 : i32
    scf.if %2 {
      %c0_93 = arith.constant 0 : index
      %c0_94 = arith.constant 0 : index
      %253 = vector.load %arg1[%c0_93, %c0_94] : memref<16x128xf32, #tpu.memory_space<vmem>>, vector<16x128xf32>
      %c0_95 = arith.constant 0 : index
      %c0_96 = arith.constant 0 : index
      %254 = vector.load %arg3[%c0_95, %c0_96] : memref<1x128xf32, #tpu.memory_space<vmem>>, vector<1x128xf32>
      %c0_97 = arith.constant 0 : index
      %c0_98 = arith.constant 0 : index
      %255 = vector.load %arg4[%c0_97, %c0_98] : memref<1x128xf32, #tpu.memory_space<vmem>>, vector<1x128xf32>
      %cst_99 = arith.constant dense<0.000000e+00> : vector<16xf32>
      %256 = vector.multi_reduction <add>, %253, %cst_99 [1] : vector<16x128xf32> to vector<16xf32>
      %257 = vector.shape_cast %256 : vector<16xf32> to vector<16x1xf32>
      %cst_100 = arith.constant 1.280000e+02 : f32
      %258 = vector.broadcast %cst_100 : f32 to vector<16x1xf32>
      %259 = arith.divf %257, %258 : vector<16x1xf32>
      %260 = vector.broadcast %259 : vector<16x1xf32> to vector<16x128xf32>
      %261 = arith.subf %253, %260 : vector<16x128xf32>
      %262 = arith.mulf %261, %261 : vector<16x128xf32>
      %cst_101 = arith.constant dense<0.000000e+00> : vector<16xf32>
      %263 = vector.multi_reduction <add>, %262, %cst_101 [1] : vector<16x128xf32> to vector<16xf32>
      %264 = vector.shape_cast %263 : vector<16xf32> to vector<16x1xf32>
      %cst_102 = arith.constant 1.280000e+02 : f32
      %265 = vector.broadcast %cst_102 : f32 to vector<16x1xf32>
      %266 = arith.divf %264, %265 : vector<16x1xf32>
      %267 = vector.broadcast %259 : vector<16x1xf32> to vector<16x128xf32>
      %268 = arith.subf %253, %267 : vector<16x128xf32>
      %cst_103 = arith.constant 9.99999996E-13 : f32
      %269 = vector.broadcast %cst_103 : f32 to vector<16x1xf32>
      %270 = arith.addf %266, %269 : vector<16x1xf32>
      %271 = math.rsqrt %270 : vector<16x1xf32>
      %272 = vector.broadcast %271 : vector<16x1xf32> to vector<16x128xf32>
      %273 = arith.mulf %268, %272 : vector<16x128xf32>
      %274 = vector.broadcast %254 : vector<1x128xf32> to vector<16x128xf32>
      %275 = arith.mulf %273, %274 : vector<16x128xf32>
      %276 = vector.broadcast %255 : vector<1x128xf32> to vector<16x128xf32>
      %277 = arith.addf %275, %276 : vector<16x128xf32>
      %c0_104 = arith.constant 0 : index
      %c0_105 = arith.constant 0 : index
      %278 = vector.load %arg17[%c0_104, %c0_105] : memref<16x128xf32, #tpu.memory_space<vmem>>, vector<16x128xf32>
      tpu.vector_store %arg17[%c0_104, %c0_105], %277 {strides = array<i32>} : memref<16x128xf32, #tpu.memory_space<vmem>>, vector<16x128xf32>,
    } else {
    }
    %c0 = arith.constant 0 : index
    %c0_1 = arith.constant 0 : index
    %3 = vector.load %arg17[%c0, %c0_1] : memref<16x128xf32, #tpu.memory_space<vmem>>, vector<16x128xf32>
    %4 = arith.truncf %3 : vector<16x128xf32> to vector<16x128xbf16>
    %c0_2 = arith.constant 0 : index
    %c0_3 = arith.constant 0 : index
    %c0_4 = arith.constant 0 : index
    %5 = vector.load %arg5[%c0_2, %c0_3, %c0_4] : memref<1x128x384xbf16, #tpu.memory_space<vmem>>, vector<1x128x384xbf16>
    %6 = vector.shape_cast %5 : vector<1x128x384xbf16> to vector<128x384xbf16>
    %cst = arith.constant dense<0.000000e+00> : vector<16x384xf32>
    %7 = tpu.matmul %4, %6, %cst {dimension_numbers = #tpu.dot_dimension_numbers<[1], [0], [0], [1], [0, 0, 1, 1], [], []>} : vector<16x128xbf16>, vector<128x384xbf16>, vector<16x384xf32> -> vector<16x384xf32>
    %c0_5 = arith.constant 0 : index
    %c0_6 = arith.constant 0 : index
    %c0_7 = arith.constant 0 : index
    %8 = vector.load %arg6[%c0_5, %c0_6, %c0_7] : memref<1x1x384xf32, #tpu.memory_space<vmem>>, vector<1x1x384xf32>
    %9 = vector.shape_cast %8 : vector<1x1x384xf32> to vector<1x384xf32>
    %10 = vector.broadcast %9 : vector<1x384xf32> to vector<16x384xf32>
    %11 = arith.addf %7, %10 : vector<16x384xf32>
    %12 = arith.truncf %11 : vector<16x384xf32> to vector<16x384xbf16>
    %c0_8 = arith.constant 0 : index
    %c0_9 = arith.constant 0 : index
    %13 = vector.load %arg2[%c0_8, %c0_9] : memref<2x8xf32, #tpu.memory_space<vmem>>, vector<1x8xf32>
    %14 = vector.shape_cast %13 : vector<1x8xf32> to vector<1x8xf32>
    %15 = vector.broadcast %14 : vector<1x8xf32> to vector<8x8xf32>
    %16 = vector.extract_strided_slice %12 {offsets = [0, 0], sizes = [8, 32], strides = [1, 1]} : vector<16x384xbf16> to vector<8x32xbf16>
    %17 = vector.extract_strided_slice %12 {offsets = [0, 128], sizes = [8, 32], strides = [1, 1]} : vector<16x384xbf16> to vector<8x32xbf16>
    %18 = vector.extract_strided_slice %12 {offsets = [0, 256], sizes = [8, 32], strides = [1, 1]} : vector<16x384xbf16> to vector<8x32xbf16>
    %cst_10 = arith.constant dense<0.000000e+00> : vector<8x8xf32>
    %19 = tpu.matmul %16, %17, %cst_10 {dimension_numbers = #tpu.dot_dimension_numbers<[1], [1], [0], [0], [0, 0, 1, 0], [], []>} : vector<8x32xbf16>, vector<8x32xbf16>, vector<8x8xf32> -> vector<8x8xf32>
    %20 = arith.addf %19, %15 : vector<8x8xf32>
    %cst_11 = arith.constant dense<0xFF800000> : vector<8xf32>
    %21 = vector.multi_reduction <maximumf>, %20, %cst_11 [1] : vector<8x8xf32> to vector<8xf32>
    %22 = vector.shape_cast %21 : vector<8xf32> to vector<8x1xf32>
    %23 = vector.broadcast %22 : vector<8x1xf32> to vector<8x8xf32>
    %24 = arith.subf %20, %23 : vector<8x8xf32>
    %25 = math.exp %24 : vector<8x8xf32>
    %cst_12 = arith.constant dense<0.000000e+00> : vector<8xf32>
    %26 = vector.multi_reduction <add>, %25, %cst_12 [1] : vector<8x8xf32> to vector<8xf32>
    %27 = vector.shape_cast %26 : vector<8xf32> to vector<8x1xf32>
    %28 = tpu.reciprocal %27 {approx = true} : vector<8x1xf32> -> vector<8x1xf32>
    %29 = vector.broadcast %28 : vector<8x1xf32> to vector<8x8xf32>
    %30 = arith.mulf %25, %29 : vector<8x8xf32>
    %31 = arith.truncf %30 : vector<8x8xf32> to vector<8x8xbf16>
    %cst_13 = arith.constant dense<0.000000e+00> : vector<8x32xf32>
    %32 = tpu.matmul %31, %18, %cst_13 {dimension_numbers = #tpu.dot_dimension_numbers<[1], [0], [0], [1], [0, 0, 1, 1], [], []>} : vector<8x8xbf16>, vector<8x32xbf16>, vector<8x32xf32> -> vector<8x32xf32>
    %33 = vector.extract_strided_slice %12 {offsets = [0, 32], sizes = [8, 32], strides = [1, 1]} : vector<16x384xbf16> to vector<8x32xbf16>
    %34 = vector.extract_strided_slice %12 {offsets = [0, 160], sizes = [8, 32], strides = [1, 1]} : vector<16x384xbf16> to vector<8x32xbf16>
    %35 = vector.extract_strided_slice %12 {offsets = [0, 288], sizes = [8, 32], strides = [1, 1]} : vector<16x384xbf16> to vector<8x32xbf16>
    %cst_14 = arith.constant dense<0.000000e+00> : vector<8x8xf32>
    %36 = tpu.matmul %33, %34, %cst_14 {dimension_numbers = #tpu.dot_dimension_numbers<[1], [1], [0], [0], [0, 0, 1, 0], [], []>} : vector<8x32xbf16>, vector<8x32xbf16>, vector<8x8xf32> -> vector<8x8xf32>
    %37 = arith.addf %36, %15 : vector<8x8xf32>
    %cst_15 = arith.constant dense<0xFF800000> : vector<8xf32>
    %38 = vector.multi_reduction <maximumf>, %37, %cst_15 [1] : vector<8x8xf32> to vector<8xf32>
    %39 = vector.shape_cast %38 : vector<8xf32> to vector<8x1xf32>
    %40 = vector.broadcast %39 : vector<8x1xf32> to vector<8x8xf32>
    %41 = arith.subf %37, %40 : vector<8x8xf32>
    %42 = math.exp %41 : vector<8x8xf32>
    %cst_16 = arith.constant dense<0.000000e+00> : vector<8xf32>
    %43 = vector.multi_reduction <add>, %42, %cst_16 [1] : vector<8x8xf32> to vector<8xf32>
    %44 = vector.shape_cast %43 : vector<8xf32> to vector<8x1xf32>
    %45 = tpu.reciprocal %44 {approx = true} : vector<8x1xf32> -> vector<8x1xf32>
    %46 = vector.broadcast %45 : vector<8x1xf32> to vector<8x8xf32>
    %47 = arith.mulf %42, %46 : vector<8x8xf32>
    %48 = arith.truncf %47 : vector<8x8xf32> to vector<8x8xbf16>
    %cst_17 = arith.constant dense<0.000000e+00> : vector<8x32xf32>
    %49 = tpu.matmul %48, %35, %cst_17 {dimension_numbers = #tpu.dot_dimension_numbers<[1], [0], [0], [1], [0, 0, 1, 1], [], []>} : vector<8x8xbf16>, vector<8x32xbf16>, vector<8x32xf32> -> vector<8x32xf32>
    %50 = vector.extract_strided_slice %12 {offsets = [0, 64], sizes = [8, 32], strides = [1, 1]} : vector<16x384xbf16> to vector<8x32xbf16>
    %51 = vector.extract_strided_slice %12 {offsets = [0, 192], sizes = [8, 32], strides = [1, 1]} : vector<16x384xbf16> to vector<8x32xbf16>
    %52 = vector.extract_strided_slice %12 {offsets = [0, 320], sizes = [8, 32], strides = [1, 1]} : vector<16x384xbf16> to vector<8x32xbf16>
    %cst_18 = arith.constant dense<0.000000e+00> : vector<8x8xf32>
    %53 = tpu.matmul %50, %51, %cst_18 {dimension_numbers = #tpu.dot_dimension_numbers<[1], [1], [0], [0], [0, 0, 1, 0], [], []>} : vector<8x32xbf16>, vector<8x32xbf16>, vector<8x8xf32> -> vector<8x8xf32>
    %54 = arith.addf %53, %15 : vector<8x8xf32>
    %cst_19 = arith.constant dense<0xFF800000> : vector<8xf32>
    %55 = vector.multi_reduction <maximumf>, %54, %cst_19 [1] : vector<8x8xf32> to vector<8xf32>
    %56 = vector.shape_cast %55 : vector<8xf32> to vector<8x1xf32>
    %57 = vector.broadcast %56 : vector<8x1xf32> to vector<8x8xf32>
    %58 = arith.subf %54, %57 : vector<8x8xf32>
    %59 = math.exp %58 : vector<8x8xf32>
    %cst_20 = arith.constant dense<0.000000e+00> : vector<8xf32>
    %60 = vector.multi_reduction <add>, %59, %cst_20 [1] : vector<8x8xf32> to vector<8xf32>
    %61 = vector.shape_cast %60 : vector<8xf32> to vector<8x1xf32>
    %62 = tpu.reciprocal %61 {approx = true} : vector<8x1xf32> -> vector<8x1xf32>
    %63 = vector.broadcast %62 : vector<8x1xf32> to vector<8x8xf32>
    %64 = arith.mulf %59, %63 : vector<8x8xf32>
    %65 = arith.truncf %64 : vector<8x8xf32> to vector<8x8xbf16>
    %cst_21 = arith.constant dense<0.000000e+00> : vector<8x32xf32>
    %66 = tpu.matmul %65, %52, %cst_21 {dimension_numbers = #tpu.dot_dimension_numbers<[1], [0], [0], [1], [0, 0, 1, 1], [], []>} : vector<8x8xbf16>, vector<8x32xbf16>, vector<8x32xf32> -> vector<8x32xf32>
    %67 = vector.extract_strided_slice %12 {offsets = [0, 96], sizes = [8, 32], strides = [1, 1]} : vector<16x384xbf16> to vector<8x32xbf16>
    %68 = vector.extract_strided_slice %12 {offsets = [0, 224], sizes = [8, 32], strides = [1, 1]} : vector<16x384xbf16> to vector<8x32xbf16>
    %69 = vector.extract_strided_slice %12 {offsets = [0, 352], sizes = [8, 32], strides = [1, 1]} : vector<16x384xbf16> to vector<8x32xbf16>
    %cst_22 = arith.constant dense<0.000000e+00> : vector<8x8xf32>
    %70 = tpu.matmul %67, %68, %cst_22 {dimension_numbers = #tpu.dot_dimension_numbers<[1], [1], [0], [0], [0, 0, 1, 0], [], []>} : vector<8x32xbf16>, vector<8x32xbf16>, vector<8x8xf32> -> vector<8x8xf32>
    %71 = arith.addf %70, %15 : vector<8x8xf32>
    %cst_23 = arith.constant dense<0xFF800000> : vector<8xf32>
    %72 = vector.multi_reduction <maximumf>, %71, %cst_23 [1] : vector<8x8xf32> to vector<8xf32>
    %73 = vector.shape_cast %72 : vector<8xf32> to vector<8x1xf32>
    %74 = vector.broadcast %73 : vector<8x1xf32> to vector<8x8xf32>
    %75 = arith.subf %71, %74 : vector<8x8xf32>
    %76 = math.exp %75 : vector<8x8xf32>
    %cst_24 = arith.constant dense<0.000000e+00> : vector<8xf32>
    %77 = vector.multi_reduction <add>, %76, %cst_24 [1] : vector<8x8xf32> to vector<8xf32>
    %78 = vector.shape_cast %77 : vector<8xf32> to vector<8x1xf32>
    %79 = tpu.reciprocal %78 {approx = true} : vector<8x1xf32> -> vector<8x1xf32>
    %80 = vector.broadcast %79 : vector<8x1xf32> to vector<8x8xf32>
    %81 = arith.mulf %76, %80 : vector<8x8xf32>
    %82 = arith.truncf %81 : vector<8x8xf32> to vector<8x8xbf16>
    %cst_25 = arith.constant dense<0.000000e+00> : vector<8x32xf32>
    %83 = tpu.matmul %82, %69, %cst_25 {dimension_numbers = #tpu.dot_dimension_numbers<[1], [0], [0], [1], [0, 0, 1, 1], [], []>} : vector<8x8xbf16>, vector<8x32xbf16>, vector<8x32xf32> -> vector<8x32xf32>
    %84 = tpu.concatenate %32, %49, %66, %83 in 1 : vector<8x32xf32>, vector<8x32xf32>, vector<8x32xf32>, vector<8x32xf32> -> vector<8x128xf32>
    %c1 = arith.constant 1 : index
    %c0_26 = arith.constant 0 : index
    %85 = vector.load %arg2[%c1, %c0_26] : memref<2x8xf32, #tpu.memory_space<vmem>>, vector<1x8xf32>
    %86 = vector.shape_cast %85 : vector<1x8xf32> to vector<1x8xf32>
    %87 = vector.broadcast %86 : vector<1x8xf32> to vector<8x8xf32>
    %88 = vector.extract_strided_slice %12 {offsets = [8, 0], sizes = [8, 32], strides = [1, 1]} : vector<16x384xbf16> to vector<8x32xbf16>
    %89 = vector.extract_strided_slice %12 {offsets = [8, 128], sizes = [8, 32], strides = [1, 1]} : vector<16x384xbf16> to vector<8x32xbf16>
    %90 = vector.extract_strided_slice %12 {offsets = [8, 256], sizes = [8, 32], strides = [1, 1]} : vector<16x384xbf16> to vector<8x32xbf16>
    %cst_27 = arith.constant dense<0.000000e+00> : vector<8x8xf32>
    %91 = tpu.matmul %88, %89, %cst_27 {dimension_numbers = #tpu.dot_dimension_numbers<[1], [1], [0], [0], [0, 0, 1, 0], [], []>} : vector<8x32xbf16>, vector<8x32xbf16>, vector<8x8xf32> -> vector<8x8xf32>
    %92 = arith.addf %91, %87 : vector<8x8xf32>
    %cst_28 = arith.constant dense<0xFF800000> : vector<8xf32>
    %93 = vector.multi_reduction <maximumf>, %92, %cst_28 [1] : vector<8x8xf32> to vector<8xf32>
    %94 = vector.shape_cast %93 : vector<8xf32> to vector<8x1xf32>
    %95 = vector.broadcast %94 : vector<8x1xf32> to vector<8x8xf32>
    %96 = arith.subf %92, %95 : vector<8x8xf32>
    %97 = math.exp %96 : vector<8x8xf32>
    %cst_29 = arith.constant dense<0.000000e+00> : vector<8xf32>
    %98 = vector.multi_reduction <add>, %97, %cst_29 [1] : vector<8x8xf32> to vector<8xf32>
    %99 = vector.shape_cast %98 : vector<8xf32> to vector<8x1xf32>
    %100 = tpu.reciprocal %99 {approx = true} : vector<8x1xf32> -> vector<8x1xf32>
    %101 = vector.broadcast %100 : vector<8x1xf32> to vector<8x8xf32>
    %102 = arith.mulf %97, %101 : vector<8x8xf32>
    %103 = arith.truncf %102 : vector<8x8xf32> to vector<8x8xbf16>
    %cst_30 = arith.constant dense<0.000000e+00> : vector<8x32xf32>
    %104 = tpu.matmul %103, %90, %cst_30 {dimension_numbers = #tpu.dot_dimension_numbers<[1], [0], [0], [1], [0, 0, 1, 1], [], []>} : vector<8x8xbf16>, vector<8x32xbf16>, vector<8x32xf32> -> vector<8x32xf32>
    %105 = vector.extract_strided_slice %12 {offsets = [8, 32], sizes = [8, 32], strides = [1, 1]} : vector<16x384xbf16> to vector<8x32xbf16>
    %106 = vector.extract_strided_slice %12 {offsets = [8, 160], sizes = [8, 32], strides = [1, 1]} : vector<16x384xbf16> to vector<8x32xbf16>
    %107 = vector.extract_strided_slice %12 {offsets = [8, 288], sizes = [8, 32], strides = [1, 1]} : vector<16x384xbf16> to vector<8x32xbf16>
    %cst_31 = arith.constant dense<0.000000e+00> : vector<8x8xf32>
    %108 = tpu.matmul %105, %106, %cst_31 {dimension_numbers = #tpu.dot_dimension_numbers<[1], [1], [0], [0], [0, 0, 1, 0], [], []>} : vector<8x32xbf16>, vector<8x32xbf16>, vector<8x8xf32> -> vector<8x8xf32>
    %109 = arith.addf %108, %87 : vector<8x8xf32>
    %cst_32 = arith.constant dense<0xFF800000> : vector<8xf32>
    %110 = vector.multi_reduction <maximumf>, %109, %cst_32 [1] : vector<8x8xf32> to vector<8xf32>
    %111 = vector.shape_cast %110 : vector<8xf32> to vector<8x1xf32>
    %112 = vector.broadcast %111 : vector<8x1xf32> to vector<8x8xf32>
    %113 = arith.subf %109, %112 : vector<8x8xf32>
    %114 = math.exp %113 : vector<8x8xf32>
    %cst_33 = arith.constant dense<0.000000e+00> : vector<8xf32>
    %115 = vector.multi_reduction <add>, %114, %cst_33 [1] : vector<8x8xf32> to vector<8xf32>
    %116 = vector.shape_cast %115 : vector<8xf32> to vector<8x1xf32>
    %117 = tpu.reciprocal %116 {approx = true} : vector<8x1xf32> -> vector<8x1xf32>
    %118 = vector.broadcast %117 : vector<8x1xf32> to vector<8x8xf32>
    %119 = arith.mulf %114, %118 : vector<8x8xf32>
    %120 = arith.truncf %119 : vector<8x8xf32> to vector<8x8xbf16>
    %cst_34 = arith.constant dense<0.000000e+00> : vector<8x32xf32>
    %121 = tpu.matmul %120, %107, %cst_34 {dimension_numbers = #tpu.dot_dimension_numbers<[1], [0], [0], [1], [0, 0, 1, 1], [], []>} : vector<8x8xbf16>, vector<8x32xbf16>, vector<8x32xf32> -> vector<8x32xf32>
    %122 = vector.extract_strided_slice %12 {offsets = [8, 64], sizes = [8, 32], strides = [1, 1]} : vector<16x384xbf16> to vector<8x32xbf16>
    %123 = vector.extract_strided_slice %12 {offsets = [8, 192], sizes = [8, 32], strides = [1, 1]} : vector<16x384xbf16> to vector<8x32xbf16>
    %124 = vector.extract_strided_slice %12 {offsets = [8, 320], sizes = [8, 32], strides = [1, 1]} : vector<16x384xbf16> to vector<8x32xbf16>
    %cst_35 = arith.constant dense<0.000000e+00> : vector<8x8xf32>
    %125 = tpu.matmul %122, %123, %cst_35 {dimension_numbers = #tpu.dot_dimension_numbers<[1], [1], [0], [0], [0, 0, 1, 0], [], []>} : vector<8x32xbf16>, vector<8x32xbf16>, vector<8x8xf32> -> vector<8x8xf32>
    %126 = arith.addf %125, %87 : vector<8x8xf32>
    %cst_36 = arith.constant dense<0xFF800000> : vector<8xf32>
    %127 = vector.multi_reduction <maximumf>, %126, %cst_36 [1] : vector<8x8xf32> to vector<8xf32>
    %128 = vector.shape_cast %127 : vector<8xf32> to vector<8x1xf32>
    %129 = vector.broadcast %128 : vector<8x1xf32> to vector<8x8xf32>
    %130 = arith.subf %126, %129 : vector<8x8xf32>
    %131 = math.exp %130 : vector<8x8xf32>
    %cst_37 = arith.constant dense<0.000000e+00> : vector<8xf32>
    %132 = vector.multi_reduction <add>, %131, %cst_37 [1] : vector<8x8xf32> to vector<8xf32>
    %133 = vector.shape_cast %132 : vector<8xf32> to vector<8x1xf32>
    %134 = tpu.reciprocal %133 {approx = true} : vector<8x1xf32> -> vector<8x1xf32>
    %135 = vector.broadcast %134 : vector<8x1xf32> to vector<8x8xf32>
    %136 = arith.mulf %131, %135 : vector<8x8xf32>
    %137 = arith.truncf %136 : vector<8x8xf32> to vector<8x8xbf16>
    %cst_38 = arith.constant dense<0.000000e+00> : vector<8x32xf32>
    %138 = tpu.matmul %137, %124, %cst_38 {dimension_numbers = #tpu.dot_dimension_numbers<[1], [0], [0], [1], [0, 0, 1, 1], [], []>} : vector<8x8xbf16>, vector<8x32xbf16>, vector<8x32xf32> -> vector<8x32xf32>
    %139 = vector.extract_strided_slice %12 {offsets = [8, 96], sizes = [8, 32], strides = [1, 1]} : vector<16x384xbf16> to vector<8x32xbf16>
    %140 = vector.extract_strided_slice %12 {offsets = [8, 224], sizes = [8, 32], strides = [1, 1]} : vector<16x384xbf16> to vector<8x32xbf16>
    %141 = vector.extract_strided_slice %12 {offsets = [8, 352], sizes = [8, 32], strides = [1, 1]} : vector<16x384xbf16> to vector<8x32xbf16>
    %cst_39 = arith.constant dense<0.000000e+00> : vector<8x8xf32>
    %142 = tpu.matmul %139, %140, %cst_39 {dimension_numbers = #tpu.dot_dimension_numbers<[1], [1], [0], [0], [0, 0, 1, 0], [], []>} : vector<8x32xbf16>, vector<8x32xbf16>, vector<8x8xf32> -> vector<8x8xf32>
    %143 = arith.addf %142, %87 : vector<8x8xf32>
    %cst_40 = arith.constant dense<0xFF800000> : vector<8xf32>
    %144 = vector.multi_reduction <maximumf>, %143, %cst_40 [1] : vector<8x8xf32> to vector<8xf32>
    %145 = vector.shape_cast %144 : vector<8xf32> to vector<8x1xf32>
    %146 = vector.broadcast %145 : vector<8x1xf32> to vector<8x8xf32>
    %147 = arith.subf %143, %146 : vector<8x8xf32>
    %148 = math.exp %147 : vector<8x8xf32>
    %cst_41 = arith.constant dense<0.000000e+00> : vector<8xf32>
    %149 = vector.multi_reduction <add>, %148, %cst_41 [1] : vector<8x8xf32> to vector<8xf32>
    %150 = vector.shape_cast %149 : vector<8xf32> to vector<8x1xf32>
    %151 = tpu.reciprocal %150 {approx = true} : vector<8x1xf32> -> vector<8x1xf32>
    %152 = vector.broadcast %151 : vector<8x1xf32> to vector<8x8xf32>
    %153 = arith.mulf %148, %152 : vector<8x8xf32>
    %154 = arith.truncf %153 : vector<8x8xf32> to vector<8x8xbf16>
    %cst_42 = arith.constant dense<0.000000e+00> : vector<8x32xf32>
    %155 = tpu.matmul %154, %141, %cst_42 {dimension_numbers = #tpu.dot_dimension_numbers<[1], [0], [0], [1], [0, 0, 1, 1], [], []>} : vector<8x8xbf16>, vector<8x32xbf16>, vector<8x32xf32> -> vector<8x32xf32>
    %156 = tpu.concatenate %104, %121, %138, %155 in 1 : vector<8x32xf32>, vector<8x32xf32>, vector<8x32xf32>, vector<8x32xf32> -> vector<8x128xf32>
    %157 = tpu.concatenate %84, %156 in 0 : vector<8x128xf32>, vector<8x128xf32> -> vector<16x128xf32>
    %158 = arith.truncf %157 : vector<16x128xf32> to vector<16x128xbf16>
    %c0_43 = arith.constant 0 : index
    %c0_44 = arith.constant 0 : index
    %c0_45 = arith.constant 0 : index
    %159 = vector.load %arg7[%c0_43, %c0_44, %c0_45] : memref<1x128x128xbf16, #tpu.memory_space<vmem>>, vector<1x128x128xbf16>
    %160 = vector.shape_cast %159 : vector<1x128x128xbf16> to vector<128x128xbf16>
    %cst_46 = arith.constant dense<0.000000e+00> : vector<16x128xf32>
    %161 = tpu.matmul %158, %160, %cst_46 {dimension_numbers = #tpu.dot_dimension_numbers<[1], [0], [0], [1], [0, 0, 1, 1], [], []>} : vector<16x128xbf16>, vector<128x128xbf16>, vector<16x128xf32> -> vector<16x128xf32>
    %c0_47 = arith.constant 0 : index
    %c0_48 = arith.constant 0 : index
    %c0_49 = arith.constant 0 : index
    %162 = vector.load %arg8[%c0_47, %c0_48, %c0_49] : memref<1x1x128xf32, #tpu.memory_space<vmem>>, vector<1x1x128xf32>
    %163 = vector.shape_cast %162 : vector<1x1x128xf32> to vector<1x128xf32>
    %164 = vector.broadcast %163 : vector<1x128xf32> to vector<16x128xf32>
    %165 = arith.addf %161, %164 : vector<16x128xf32>
    %166 = arith.addf %165, %3 : vector<16x128xf32>
    %c0_50 = arith.constant 0 : index
    %c0_51 = arith.constant 0 : index
    %c0_52 = arith.constant 0 : index
    %167 = vector.load %arg9[%c0_50, %c0_51, %c0_52] : memref<1x1x128xf32, #tpu.memory_space<vmem>>, vector<1x1x128xf32>
    %168 = vector.shape_cast %167 : vector<1x1x128xf32> to vector<1x128xf32>
    %c0_53 = arith.constant 0 : index
    %c0_54 = arith.constant 0 : index
    %c0_55 = arith.constant 0 : index
    %169 = vector.load %arg10[%c0_53, %c0_54, %c0_55] : memref<1x1x128xf32, #tpu.memory_space<vmem>>, vector<1x1x128xf32>
    %170 = vector.shape_cast %169 : vector<1x1x128xf32> to vector<1x128xf32>
    %cst_56 = arith.constant dense<0.000000e+00> : vector<16xf32>
    %171 = vector.multi_reduction <add>, %166, %cst_56 [1] : vector<16x128xf32> to vector<16xf32>
    %172 = vector.shape_cast %171 : vector<16xf32> to vector<16x1xf32>
    %cst_57 = arith.constant 1.280000e+02 : f32
    %173 = vector.broadcast %cst_57 : f32 to vector<16x1xf32>
    %174 = arith.divf %172, %173 : vector<16x1xf32>
    %175 = vector.broadcast %174 : vector<16x1xf32> to vector<16x128xf32>
    %176 = arith.subf %166, %175 : vector<16x128xf32>
    %177 = arith.mulf %176, %176 : vector<16x128xf32>
    %cst_58 = arith.constant dense<0.000000e+00> : vector<16xf32>
    %178 = vector.multi_reduction <add>, %177, %cst_58 [1] : vector<16x128xf32> to vector<16xf32>
    %179 = vector.shape_cast %178 : vector<16xf32> to vector<16x1xf32>
    %cst_59 = arith.constant 1.280000e+02 : f32
    %180 = vector.broadcast %cst_59 : f32 to vector<16x1xf32>
    %181 = arith.divf %179, %180 : vector<16x1xf32>
    %182 = vector.broadcast %174 : vector<16x1xf32> to vector<16x128xf32>
    %183 = arith.subf %166, %182 : vector<16x128xf32>
    %cst_60 = arith.constant 9.99999996E-13 : f32
    %184 = vector.broadcast %cst_60 : f32 to vector<16x1xf32>
    %185 = arith.addf %181, %184 : vector<16x1xf32>
    %186 = math.rsqrt %185 : vector<16x1xf32>
    %187 = vector.broadcast %186 : vector<16x1xf32> to vector<16x128xf32>
    %188 = arith.mulf %183, %187 : vector<16x128xf32>
    %189 = vector.broadcast %168 : vector<1x128xf32> to vector<16x128xf32>
    %190 = arith.mulf %188, %189 : vector<16x128xf32>
    %191 = vector.broadcast %170 : vector<1x128xf32> to vector<16x128xf32>
    %192 = arith.addf %190, %191 : vector<16x128xf32>
    %193 = arith.truncf %192 : vector<16x128xf32> to vector<16x128xbf16>
    %c0_61 = arith.constant 0 : index
    %c0_62 = arith.constant 0 : index
    %c0_63 = arith.constant 0 : index
    %194 = vector.load %arg11[%c0_61, %c0_62, %c0_63] : memref<1x128x512xbf16, #tpu.memory_space<vmem>>, vector<1x128x512xbf16>
    %195 = vector.shape_cast %194 : vector<1x128x512xbf16> to vector<128x512xbf16>
    %cst_64 = arith.constant dense<0.000000e+00> : vector<16x512xf32>
    %196 = tpu.matmul %193, %195, %cst_64 {dimension_numbers = #tpu.dot_dimension_numbers<[1], [0], [0], [1], [0, 0, 1, 1], [], []>} : vector<16x128xbf16>, vector<128x512xbf16>, vector<16x512xf32> -> vector<16x512xf32>
    %c0_65 = arith.constant 0 : index
    %c0_66 = arith.constant 0 : index
    %c0_67 = arith.constant 0 : index
    %197 = vector.load %arg12[%c0_65, %c0_66, %c0_67] : memref<1x1x512xf32, #tpu.memory_space<vmem>>, vector<1x1x512xf32>
    %198 = vector.shape_cast %197 : vector<1x1x512xf32> to vector<1x512xf32>
    %199 = vector.broadcast %198 : vector<1x512xf32> to vector<16x512xf32>
    %200 = arith.addf %196, %199 : vector<16x512xf32>
    %201 = arith.mulf %200, %200 : vector<16x512xf32>
    %202 = arith.mulf %200, %201 : vector<16x512xf32>
    %cst_68 = arith.constant 4.471500e-02 : f32
    %203 = vector.broadcast %cst_68 : f32 to vector<16x512xf32>
    %204 = arith.mulf %203, %202 : vector<16x512xf32>
    %205 = arith.addf %200, %204 : vector<16x512xf32>
    %cst_69 = arith.constant 0.797884583 : f32
    %206 = vector.broadcast %cst_69 : f32 to vector<16x512xf32>
    %207 = arith.mulf %206, %205 : vector<16x512xf32>
    %208 = math.tanh %207 : vector<16x512xf32>
    %cst_70 = arith.constant 1.000000e+00 : f32
    %209 = vector.broadcast %cst_70 : f32 to vector<16x512xf32>
    %210 = arith.addf %209, %208 : vector<16x512xf32>
    %cst_71 = arith.constant 5.000000e-01 : f32
    %211 = vector.broadcast %cst_71 : f32 to vector<16x512xf32>
    %212 = arith.mulf %211, %210 : vector<16x512xf32>
    %213 = arith.mulf %200, %212 : vector<16x512xf32>
    %214 = arith.truncf %213 : vector<16x512xf32> to vector<16x512xbf16>
    %c0_72 = arith.constant 0 : index
    %c0_73 = arith.constant 0 : index
    %c0_74 = arith.constant 0 : index
    %215 = vector.load %arg13[%c0_72, %c0_73, %c0_74] : memref<1x512x128xbf16, #tpu.memory_space<vmem>>, vector<1x512x128xbf16>
    %216 = vector.shape_cast %215 : vector<1x512x128xbf16> to vector<512x128xbf16>
    %cst_75 = arith.constant dense<0.000000e+00> : vector<16x128xf32>
    %217 = tpu.matmul %214, %216, %cst_75 {dimension_numbers = #tpu.dot_dimension_numbers<[1], [0], [0], [1], [0, 0, 1, 1], [], []>} : vector<16x512xbf16>, vector<512x128xbf16>, vector<16x128xf32> -> vector<16x128xf32>
    %c0_76 = arith.constant 0 : index
    %c0_77 = arith.constant 0 : index
    %c0_78 = arith.constant 0 : index
    %218 = vector.load %arg14[%c0_76, %c0_77, %c0_78] : memref<1x1x128xf32, #tpu.memory_space<vmem>>, vector<1x1x128xf32>
    %219 = vector.shape_cast %218 : vector<1x1x128xf32> to vector<1x128xf32>
    %220 = vector.broadcast %219 : vector<1x128xf32> to vector<16x128xf32>
    %221 = arith.addf %217, %220 : vector<16x128xf32>
    %222 = arith.addf %221, %192 : vector<16x128xf32>
    %c0_79 = arith.constant 0 : index
    %c0_80 = arith.constant 0 : index
    %c0_81 = arith.constant 0 : index
    %223 = vector.load %arg15[%c0_79, %c0_80, %c0_81] : memref<1x1x128xf32, #tpu.memory_space<vmem>>, vector<1x1x128xf32>
    %224 = vector.shape_cast %223 : vector<1x1x128xf32> to vector<1x128xf32>
    %c0_82 = arith.constant 0 : index
    %c0_83 = arith.constant 0 : index
    %c0_84 = arith.constant 0 : index
    %225 = vector.load %arg16[%c0_82, %c0_83, %c0_84] : memref<1x1x128xf32, #tpu.memory_space<vmem>>, vector<1x1x128xf32>
    %226 = vector.shape_cast %225 : vector<1x1x128xf32> to vector<1x128xf32>
    %cst_85 = arith.constant dense<0.000000e+00> : vector<16xf32>
    %227 = vector.multi_reduction <add>, %222, %cst_85 [1] : vector<16x128xf32> to vector<16xf32>
    %228 = vector.shape_cast %227 : vector<16xf32> to vector<16x1xf32>
    %cst_86 = arith.constant 1.280000e+02 : f32
    %229 = vector.broadcast %cst_86 : f32 to vector<16x1xf32>
    %230 = arith.divf %228, %229 : vector<16x1xf32>
    %231 = vector.broadcast %230 : vector<16x1xf32> to vector<16x128xf32>
    %232 = arith.subf %222, %231 : vector<16x128xf32>
    %233 = arith.mulf %232, %232 : vector<16x128xf32>
    %cst_87 = arith.constant dense<0.000000e+00> : vector<16xf32>
    %234 = vector.multi_reduction <add>, %233, %cst_87 [1] : vector<16x128xf32> to vector<16xf32>
    %235 = vector.shape_cast %234 : vector<16xf32> to vector<16x1xf32>
    %cst_88 = arith.constant 1.280000e+02 : f32
    %236 = vector.broadcast %cst_88 : f32 to vector<16x1xf32>
    %237 = arith.divf %235, %236 : vector<16x1xf32>
    %238 = vector.broadcast %230 : vector<16x1xf32> to vector<16x128xf32>
    %239 = arith.subf %222, %238 : vector<16x128xf32>
    %cst_89 = arith.constant 9.99999996E-13 : f32
    %240 = vector.broadcast %cst_89 : f32 to vector<16x1xf32>
    %241 = arith.addf %237, %240 : vector<16x1xf32>
    %242 = math.rsqrt %241 : vector<16x1xf32>
    %243 = vector.broadcast %242 : vector<16x1xf32> to vector<16x128xf32>
    %244 = arith.mulf %239, %243 : vector<16x128xf32>
    %245 = vector.broadcast %224 : vector<1x128xf32> to vector<16x128xf32>
    %246 = arith.mulf %244, %245 : vector<16x128xf32>
    %247 = vector.broadcast %226 : vector<1x128xf32> to vector<16x128xf32>
    %248 = arith.addf %246, %247 : vector<16x128xf32>
    %c0_90 = arith.constant 0 : index
    %c0_91 = arith.constant 0 : index
    %249 = vector.load %arg17[%c0_90, %c0_91] : memref<16x128xf32, #tpu.memory_space<vmem>>, vector<16x128xf32>
    tpu.vector_store %arg17[%c0_90, %c0_91], %248 {strides = array<i32>} : memref<16x128xf32, #tpu.memory_space<vmem>>, vector<16x128xf32>,
    %c1_i32 = arith.constant 1 : i32
    %250 = arith.cmpi eq, %arg0, %c1_i32 : i32
    %251 = arith.extui %250 : i1 to i32
    %c0_i32_92 = arith.constant 0 : i32
    %252 = arith.cmpi ne, %251, %c0_i32_92 : i32
    scf.if %252 {
      %253 = vector.extract_strided_slice %30 {offsets = [0, 0], sizes = [1, 8], strides = [1, 1]} : vector<8x8xf32> to vector<1x8xf32>
      %cst_93 = arith.constant 0.000000e+00 : f32
      %254 = vector.broadcast %cst_93 : f32 to vector<1x8xf32>
      %255 = arith.addf %254, %253 : vector<1x8xf32>
      %256 = vector.extract_strided_slice %47 {offsets = [0, 0], sizes = [1, 8], strides = [1, 1]} : vector<8x8xf32> to vector<1x8xf32>
      %257 = arith.addf %255, %256 : vector<1x8xf32>
      %258 = vector.extract_strided_slice %64 {offsets = [0, 0], sizes = [1, 8], strides = [1, 1]} : vector<8x8xf32> to vector<1x8xf32>
      %259 = arith.addf %257, %258 : vector<1x8xf32>
      %260 = vector.extract_strided_slice %81 {offsets = [0, 0], sizes = [1, 8], strides = [1, 1]} : vector<8x8xf32> to vector<1x8xf32>
      %261 = arith.addf %259, %260 : vector<1x8xf32>
      %cst_94 = arith.constant 2.500000e-01 : f32
      %262 = vector.broadcast %cst_94 : f32 to vector<1x8xf32>
      %263 = arith.mulf %261, %262 : vector<1x8xf32>
      %264 = vector.extract_strided_slice %102 {offsets = [0, 0], sizes = [1, 8], strides = [1, 1]} : vector<8x8xf32> to vector<1x8xf32>
      %cst_95 = arith.constant 0.000000e+00 : f32
      %265 = vector.broadcast %cst_95 : f32 to vector<1x8xf32>
      %266 = arith.addf %265, %264 : vector<1x8xf32>
      %267 = vector.extract_strided_slice %119 {offsets = [0, 0], sizes = [1, 8], strides = [1, 1]} : vector<8x8xf32> to vector<1x8xf32>
      %268 = arith.addf %266, %267 : vector<1x8xf32>
      %269 = vector.extract_strided_slice %136 {offsets = [0, 0], sizes = [1, 8], strides = [1, 1]} : vector<8x8xf32> to vector<1x8xf32>
      %270 = arith.addf %268, %269 : vector<1x8xf32>
      %271 = vector.extract_strided_slice %153 {offsets = [0, 0], sizes = [1, 8], strides = [1, 1]} : vector<8x8xf32> to vector<1x8xf32>
      %272 = arith.addf %270, %271 : vector<1x8xf32>
      %cst_96 = arith.constant 2.500000e-01 : f32
      %273 = vector.broadcast %cst_96 : f32 to vector<1x8xf32>
      %274 = arith.mulf %272, %273 : vector<1x8xf32>
      %275 = tpu.concatenate %263, %274 in 0 : vector<1x8xf32>, vector<1x8xf32> -> vector<2x8xf32>
      %c0_97 = arith.constant 0 : index
      %c0_98 = arith.constant 0 : index
      %276 = vector.load %arg18[%c0_97, %c0_98] : memref<2x8xf32, #tpu.memory_space<vmem>>, vector<2x8xf32>
      tpu.vector_store %arg18[%c0_97, %c0_98], %275 {strides = array<i32>} : memref<2x8xf32, #tpu.memory_space<vmem>>, vector<2x8xf32>,
    } else {
    }
    return
  }
  func.func @transform_0(%arg0: i32) -> (i32, i32) {
    %c0_i32 = arith.constant 0 : i32
    %c0_i32_0 = arith.constant 0 : i32
    %c0_i32_1 = arith.constant 0 : i32
    return %c0_i32, %c0_i32_0 : i32, i32
  }
  func.func @transform_1(%arg0: i32) -> (i32, i32) {
    %c0_i32 = arith.constant 0 : i32
    %c0_i32_0 = arith.constant 0 : i32
    %c0_i32_1 = arith.constant 0 : i32
    return %c0_i32, %c0_i32_0 : i32, i32
  }
  func.func @transform_2(%arg0: i32) -> (i32, i32) {
    %c0_i32 = arith.constant 0 : i32
    %c0_i32_0 = arith.constant 0 : i32
    %c0_i32_1 = arith.constant 0 : i32
    return %c0_i32, %c0_i32_0 : i32, i32
  }
  func.func @transform_3(%arg0: i32) -> (i32, i32) {
    %c0_i32 = arith.constant 0 : i32
    %c0_i32_0 = arith.constant 0 : i32
    %c0_i32_1 = arith.constant 0 : i32
    return %c0_i32, %c0_i32_0 : i32, i32
  }
  func.func @transform_4(%arg0: i32) -> (i32, i32, i32) {
    %c0_i32 = arith.constant 0 : i32
    %c0_i32_0 = arith.constant 0 : i32
    %c0_i32_1 = arith.constant 0 : i32
    return %arg0, %c0_i32, %c0_i32_0 : i32, i32, i32
  }
  func.func @transform_5(%arg0: i32) -> (i32, i32, i32) {
    %c0_i32 = arith.constant 0 : i32
    %c0_i32_0 = arith.constant 0 : i32
    %c0_i32_1 = arith.constant 0 : i32
    return %arg0, %c0_i32, %c0_i32_0 : i32, i32, i32
  }
  func.func @transform_6(%arg0: i32) -> (i32, i32, i32) {
    %c0_i32 = arith.constant 0 : i32
    %c0_i32_0 = arith.constant 0 : i32
    %c0_i32_1 = arith.constant 0 : i32
    return %arg0, %c0_i32, %c0_i32_0 : i32, i32, i32
  }
  func.func @transform_7(%arg0: i32) -> (i32, i32, i32) {
    %c0_i32 = arith.constant 0 : i32
    %c0_i32_0 = arith.constant 0 : i32
    %c0_i32_1 = arith.constant 0 : i32
    return %arg0, %c0_i32, %c0_i32_0 : i32, i32, i32
  }
  func.func @transform_8(%arg0: i32) -> (i32, i32, i32) {
    %c0_i32 = arith.constant 0 : i32
    %c0_i32_0 = arith.constant 0 : i32
    %c0_i32_1 = arith.constant 0 : i32
    return %arg0, %c0_i32, %c0_i32_0 : i32, i32, i32
  }
  func.func @transform_9(%arg0: i32) -> (i32, i32, i32) {
    %c0_i32 = arith.constant 0 : i32
    %c0_i32_0 = arith.constant 0 : i32
    %c0_i32_1 = arith.constant 0 : i32
    return %arg0, %c0_i32, %c0_i32_0 : i32, i32, i32
  }
  func.func @transform_10(%arg0: i32) -> (i32, i32, i32) {
    %c0_i32 = arith.constant 0 : i32
    %c0_i32_0 = arith.constant 0 : i32
    %c0_i32_1 = arith.constant 0 : i32
    return %arg0, %c0_i32, %c0_i32_0 : i32, i32, i32
  }
  func.func @transform_11(%arg0: i32) -> (i32, i32, i32) {
    %c0_i32 = arith.constant 0 : i32
    %c0_i32_0 = arith.constant 0 : i32
    %c0_i32_1 = arith.constant 0 : i32
    return %arg0, %c0_i32, %c0_i32_0 : i32, i32, i32
  }
  func.func @transform_12(%arg0: i32) -> (i32, i32, i32) {
    %c0_i32 = arith.constant 0 : i32
    %c0_i32_0 = arith.constant 0 : i32
    %c0_i32_1 = arith.constant 0 : i32
    return %arg0, %c0_i32, %c0_i32_0 : i32, i32, i32
  }
  func.func @transform_13(%arg0: i32) -> (i32, i32, i32) {
    %c0_i32 = arith.constant 0 : i32
    %c0_i32_0 = arith.constant 0 : i32
    %c0_i32_1 = arith.constant 0 : i32
    return %arg0, %c0_i32, %c0_i32_0 : i32, i32, i32
  }
  func.func @transform_14(%arg0: i32) -> (i32, i32, i32) {
    %c0_i32 = arith.constant 0 : i32
    %c0_i32_0 = arith.constant 0 : i32
    %c0_i32_1 = arith.constant 0 : i32
    return %arg0, %c0_i32, %c0_i32_0 : i32, i32, i32
  }
  func.func @transform_15(%arg0: i32) -> (i32, i32, i32) {
    %c0_i32 = arith.constant 0 : i32
    %c0_i32_0 = arith.constant 0 : i32
    %c0_i32_1 = arith.constant 0 : i32
    return %arg0, %c0_i32, %c0_i32_0 : i32, i32, i32
  }
  func.func @transform_16(%arg0: i32) -> (i32, i32) {
    %c0_i32 = arith.constant 0 : i32
    %c0_i32_0 = arith.constant 0 : i32
    %c0_i32_1 = arith.constant 0 : i32
    return %c0_i32, %c0_i32_0 : i32, i32
  }
  func.func @transform_17(%arg0: i32) -> (i32, i32) {
    %c0_i32 = arith.constant 0 : i32
    %c0_i32_0 = arith.constant 0 : i32
    %c0_i32_1 = arith.constant 0 : i32
    return %c0_i32, %c0_i32_0 : i32, i32
  }
}

</mosaic_0001>

<llo_original>
// kernel: tpu_custom_call.1
$region0: #{tpu_custom_call.1}
  #allocation0 [shape = 'u32[]', space=smem, size = 0x4, offset = 0x4, fixed_abs, tag = 'smem constant byte address 0x4 - core index']
  #allocation1 [shape = 'u32[144,128]{1,0:T(1,128)}', space=vmem, size = 0x12000, scoped, tag = 'internal scratch']
  %s0 = inlined_call_operand.hbm [shape: f32[16,128], index: 0, kind: input, shape index: {}]
  %s1 = inlined_call_operand.hbm [shape: f32[2,8], index: 1, kind: input, shape index: {}]
  %s2 = inlined_call_operand.hbm [shape: f32[1,128], index: 2, kind: input, shape index: {}]
  %s3 = inlined_call_operand.hbm [shape: f32[1,128], index: 3, kind: input, shape index: {}]
  %s4 = inlined_call_operand.hbm [shape: bf16[2,128,384], index: 4, kind: input, shape index: {}]
  %s5 = inlined_call_operand.vmem [shape: f32[2,1,384], index: 5, kind: input, shape index: {}]
  %s6 = inlined_call_operand.hbm [shape: bf16[2,128,128], index: 6, kind: input, shape index: {}]
  %s7 = inlined_call_operand.vmem [shape: f32[2,1,128], index: 7, kind: input, shape index: {}]
  %s8 = inlined_call_operand.vmem [shape: f32[2,1,128], index: 8, kind: input, shape index: {}]
  %s9 = inlined_call_operand.vmem [shape: f32[2,1,128], index: 9, kind: input, shape index: {}]
  %s10 = inlined_call_operand.hbm [shape: bf16[2,128,512], index: 10, kind: input, shape index: {}]
  %s11 = inlined_call_operand.vmem [shape: f32[2,1,512], index: 11, kind: input, shape index: {}]
  %s12 = inlined_call_operand.hbm [shape: bf16[2,512,128], index: 12, kind: input, shape index: {}]
  %s13 = inlined_call_operand.vmem [shape: f32[2,1,128], index: 13, kind: input, shape index: {}]
  %s14 = inlined_call_operand.vmem [shape: f32[2,1,128], index: 14, kind: input, shape index: {}]
  %s15 = inlined_call_operand.vmem [shape: f32[2,1,128], index: 15, kind: input, shape index: {}]
  %s16 = inlined_call_operand.hbm [shape: f32[16,128], index: 16, kind: output, shape index: {0}]
  %s17 = inlined_call_operand.hbm [shape: f32[2,8], index: 17, kind: output, shape index: {1}]
  %18 = xla_tuple %s16, %s17
  %s19 = sld [smem:[#allocation0]]
  $region145: #{tpu_custom_call.1} parent=0
    _
  %s21 = ssub.s32 1, %s19
  %s22 = scalar_select 0, %s21, %s19
  $region1: #{tpu_custom_call.1} parent=0
    #allocation2 [shape = 'u8[8192]{0}', space=vmem, size = 0x2000, scoped, tag = 'input window, operand 0, single buffered']
    #allocation3 [shape = 's32[2]{0}', space=sflag, size = 0x8, scoped, tag = 'scoped memory for tpu_custom_call.1']
    #allocation4 [shape = 's32[2]{0}', space=sflag, size = 0x8, scoped, tag = 'scoped memory for tpu_custom_call.1']
    #allocation5 [shape = 'u8[1024]{0}', space=vmem, size = 0x400, scoped, tag = 'input window, operand 1, single buffered']
    #allocation6 [shape = 's32[1]{0}', space=sflag, size = 0x4, scoped, tag = 'scoped memory for tpu_custom_call.1']
    #allocation7 [shape = 'u8[512]{0}', space=vmem, size = 0x400, scoped, tag = 'input window, operand 2, single buffered']
    #allocation8 [shape = 'u8[512]{0}', space=vmem, size = 0x400, scoped, tag = 'input window, operand 3, single buffered']
    #allocation9 [shape = 's32[1]{0}', space=sflag, size = 0x4, scoped, tag = 'scoped memory for tpu_custom_call.1']
    #allocation10 [shape = 'u8[196608]{0}', space=vmem, size = 0x30000, scoped, tag = 'input window, operand 4']
    #allocation11 [shape = 'u8[65536]{0}', space=vmem, size = 0x10000, scoped, tag = 'input window, operand 6']
    #allocation12 [shape = 'u8[262144]{0}', space=vmem, size = 0x40000, scoped, tag = 'input window, operand 10']
    #allocation13 [shape = 'u8[262144]{0}', space=vmem, size = 0x40000, scoped, tag = 'input window, operand 12']
    #allocation14 [shape = 'u8[8192]{0}', space=vmem, size = 0x2000, scoped, tag = 'output window, operand 0, single buffered']
    #allocation15 [shape = 'u8[1024]{0}', space=vmem, size = 0x400, scoped, tag = 'output window, operand 1, single buffered']
    #allocation16 [shape = 's32[1]{0}', space=sflag, size = 0x4, scoped, tag = 'scoped memory for tpu_custom_call.1']
    %23 = vsyncpa [#allocation3], 0
    %24 = vsyncpa [#allocation6], 0
    %25 = vsyncpa [#allocation9], 0
    %26 = vsyncpa [#allocation4], 0
    %27 = vsyncpa [#allocation16], 0
    loop: start=0, step=1, limit=4
    $region2: #{tpu_custom_call.1} parent=1 // loop_pre_header
      _
    $region3: #{tpu_custom_call.1} parent=1 // loop_header
      %s29 = sphi 0, %s33
      %p30 = scmp.ge.s32.totalorder %s29, 4
      %s37 = sphi 0, %s37
      %s39 = sphi 0, %s37
      %s40 = sphi 0, %s39
      %s54 = sphi 0, %s40
      %s58 = sphi 0, %s58
      %s60 = sphi 0, %s58
      %s61 = sphi 0, %s60
      %s75 = sphi 0, %s61
      %s79 = sphi 0, %s79
      %s81 = sphi 0, %s79
      %s82 = sphi 0, %s81
      %s96 = sphi 0, %s82
      %s100 = sphi 0, %s100
      %s102 = sphi 0, %s100
      %s103 = sphi 0, %s102
      %s117 = sphi 0, %s103
      %s123 = sphi 0, %s125
      %s126 = sphi 0, %s123
      %s127 = sphi 0, %s126
      %s143 = sphi 0, %s127
      %s149 = sphi 0, %s151
      %s152 = sphi 0, %s149
      %s153 = sphi 0, %s152
      %s169 = sphi 0, %s153
      %s175 = sphi 0, %s177
      %s178 = sphi 0, %s175
      %s179 = sphi 0, %s178
      %s195 = sphi 0, %s179
      %s201 = sphi 0, %s203
      %s204 = sphi 0, %s201
      %s205 = sphi 0, %s204
      %s221 = sphi 0, %s205
      %s227 = sphi 0, %s229
      %s230 = sphi 0, %s227
      %s231 = sphi 0, %s230
      %s247 = sphi 0, %s231
      %s253 = sphi 0, %s255
      %s256 = sphi 0, %s253
      %s257 = sphi 0, %s256
      %s273 = sphi 0, %s257
      %s279 = sphi 0, %s281
      %s282 = sphi 0, %s279
      %s283 = sphi 0, %s282
      %s299 = sphi 0, %s283
      %s305 = sphi 0, %s307
      %s308 = sphi 0, %s305
      %s309 = sphi 0, %s308
      %s325 = sphi 0, %s309
      %s331 = sphi 0, %s333
      %s334 = sphi 0, %s331
      %s335 = sphi 0, %s334
      %s351 = sphi 0, %s335
      %s357 = sphi 0, %s359
      %s360 = sphi 0, %s357
      %s361 = sphi 0, %s360
      %s377 = sphi 0, %s361
      %s383 = sphi 0, %s385
      %s386 = sphi 0, %s383
      %s387 = sphi 0, %s386
      %s403 = sphi 0, %s387
      %s409 = sphi 0, %s411
      %s412 = sphi 0, %s409
      %s413 = sphi 0, %s412
      %s429 = sphi 0, %s413
      %s433 = sphi 0, %s433
      %s435 = sphi 0, %s433
      %s436 = sphi 0, %s435
      %s450 = sphi 0, %s436
      %s454 = sphi 0, %s454
      %s456 = sphi 0, %s454
      %s457 = sphi 0, %s456
      %s471 = sphi 0, %s457
    $region4: #{tpu_custom_call.1} parent=1 // loop_header_branch
      %32 = sbr.rel (%p30) target = $region8
    $region5: #{tpu_custom_call.1} parent=1 // loop_body
      %s34 = ssub.s32 %s29, 1
      %s35 = ssub.s32 %s29, 2
      %s36 = sadd.s32 %s29, 1
      %s38 = sadd.s32 %s37, 1
      %p41 = scmp.eq.s32.totalorder %s29, 1
      %p42 = scmp.ne.s32.totalorder %s37, %s39
      %p43 = scmp.eq.s32.totalorder %s29, 0
      %p44 = por %p42, %p43
      %p45 = scmp.ne.s32.totalorder %s37, %s39
      %p46 = scmp.eq.s32.totalorder %s34, 1
      %p47 = por %p45, %p46
      %p48 = scmp.ne.s32.totalorder %s39, %s40
      %p49 = scmp.eq.s32.totalorder %s34, 0
      %p50 = por %p48, %p49
      %p51 = scmp.ne.s32.totalorder %s39, %s40
      %p52 = scmp.eq.s32.totalorder %s35, 1
      %p53 = por %p51, %p52
      %p55 = scmp.ne.s32.totalorder %s40, %s54
      %p56 = scmp.eq.s32.totalorder %s35, 0
      %p57 = por %p55, %p56
      %s59 = sadd.s32 %s58, 1
      %p62 = scmp.eq.s32.totalorder %s29, 1
      %p63 = scmp.ne.s32.totalorder %s58, %s60
      %p64 = scmp.eq.s32.totalorder %s29, 0
      %p65 = por %p63, %p64
      %p66 = scmp.ne.s32.totalorder %s58, %s60
      %p67 = scmp.eq.s32.totalorder %s34, 1
      %p68 = por %p66, %p67
      %p69 = scmp.ne.s32.totalorder %s60, %s61
      %p70 = scmp.eq.s32.totalorder %s34, 0
      %p71 = por %p69, %p70
      %p72 = scmp.ne.s32.totalorder %s60, %s61
      %p73 = scmp.eq.s32.totalorder %s35, 1
      %p74 = por %p72, %p73
      %p76 = scmp.ne.s32.totalorder %s61, %s75
      %p77 = scmp.eq.s32.totalorder %s35, 0
      %p78 = por %p76, %p77
      %s80 = sadd.s32 %s79, 1
      %p83 = scmp.eq.s32.totalorder %s29, 1
      %p84 = scmp.ne.s32.totalorder %s79, %s81
      %p85 = scmp.eq.s32.totalorder %s29, 0
      %p86 = por %p84, %p85
      %p87 = scmp.ne.s32.totalorder %s79, %s81
      %p88 = scmp.eq.s32.totalorder %s34, 1
      %p89 = por %p87, %p88
      %p90 = scmp.ne.s32.totalorder %s81, %s82
      %p91 = scmp.eq.s32.totalorder %s34, 0
      %p92 = por %p90, %p91
      %p93 = scmp.ne.s32.totalorder %s81, %s82
      %p94 = scmp.eq.s32.totalorder %s35, 1
      %p95 = por %p93, %p94
      %p97 = scmp.ne.s32.totalorder %s82, %s96
      %p98 = scmp.eq.s32.totalorder %s35, 0
      %p99 = por %p97, %p98
      %s101 = sadd.s32 %s100, 1
      %p104 = scmp.eq.s32.totalorder %s29, 1
      %p105 = scmp.ne.s32.totalorder %s100, %s102
      %p106 = scmp.eq.s32.totalorder %s29, 0
      %p107 = por %p105, %p106
      %p108 = scmp.ne.s32.totalorder %s100, %s102
      %p109 = scmp.eq.s32.totalorder %s34, 1
      %p110 = por %p108, %p109
      %p111 = scmp.ne.s32.totalorder %s102, %s103
      %p112 = scmp.eq.s32.totalorder %s34, 0
      %p113 = por %p111, %p112
      %p114 = scmp.ne.s32.totalorder %s102, %s103
      %p115 = scmp.eq.s32.totalorder %s35, 1
      %p116 = por %p114, %p115
      %p118 = scmp.ne.s32.totalorder %s103, %s117
      %p119 = scmp.eq.s32.totalorder %s35, 0
      %p120 = por %p118, %p119
      %s121 = ssub.s32 %s29, %s36
      %p122 = scmp.eq.s32.totalorder %s121, 0
      %s124 = sadd.s32 %s123, 1
      %s125 = scalar_select %p122, %s123, %s124
      %p128 = pneg %p122
      %p129 = scmp.eq.s32.totalorder %s29, 1
      %p130 = por %p128, %p129
      %p131 = scmp.ne.s32.totalorder %s123, %s126
      %p132 = scmp.eq.s32.totalorder %s29, 0
      %p133 = por %p131, %p132
      %p134 = scmp.ne.s32.totalorder %s123, %s126
      %p135 = scmp.eq.s32.totalorder %s34, 1
      %p136 = por %p134, %p135
      %p137 = scmp.ne.s32.totalorder %s126, %s127
      %p138 = scmp.eq.s32.totalorder %s34, 0
      %p139 = por %p137, %p138
      %p140 = scmp.ne.s32.totalorder %s126, %s127
      %p141 = scmp.eq.s32.totalorder %s35, 1
      %p142 = por %p140, %p141
      %p144 = scmp.ne.s32.totalorder %s127, %s143
      %p145 = scmp.eq.s32.totalorder %s35, 0
      %p146 = por %p144, %p145
      %s147 = ssub.s32 %s29, %s36
      %p148 = scmp.eq.s32.totalorder %s147, 0
      %s150 = sadd.s32 %s149, 1
      %s151 = scalar_select %p148, %s149, %s150
      %p154 = pneg %p148
      %p155 = scmp.eq.s32.totalorder %s29, 1
      %p156 = por %p154, %p155
      %p157 = scmp.ne.s32.totalorder %s149, %s152
      %p158 = scmp.eq.s32.totalorder %s29, 0
      %p159 = por %p157, %p158
      %p160 = scmp.ne.s32.totalorder %s149, %s152
      %p161 = scmp.eq.s32.totalorder %s34, 1
      %p162 = por %p160, %p161
      %p163 = scmp.ne.s32.totalorder %s152, %s153
      %p164 = scmp.eq.s32.totalorder %s34, 0
      %p165 = por %p163, %p164
      %p166 = scmp.ne.s32.totalorder %s152, %s153
      %p167 = scmp.eq.s32.totalorder %s35, 1
      %p168 = por %p166, %p167
      %p170 = scmp.ne.s32.totalorder %s153, %s169
      %p171 = scmp.eq.s32.totalorder %s35, 0
      %p172 = por %p170, %p171
      %s173 = ssub.s32 %s29, %s36
      %p174 = scmp.eq.s32.totalorder %s173, 0
      %s176 = sadd.s32 %s175, 1
      %s177 = scalar_select %p174, %s175, %s176
      %p180 = pneg %p174
      %p181 = scmp.eq.s32.totalorder %s29, 1
      %p182 = por %p180, %p181
      %p183 = scmp.ne.s32.totalorder %s175, %s178
      %p184 = scmp.eq.s32.totalorder %s29, 0
      %p185 = por %p183, %p184
      %p186 = scmp.ne.s32.totalorder %s175, %s178
      %p187 = scmp.eq.s32.totalorder %s34, 1
      %p188 = por %p186, %p187
      %p189 = scmp.ne.s32.totalorder %s178, %s179
      %p190 = scmp.eq.s32.totalorder %s34, 0
      %p191 = por %p189, %p190
      %p192 = scmp.ne.s32.totalorder %s178, %s179
      %p193 = scmp.eq.s32.totalorder %s35, 1
      %p194 = por %p192, %p193
      %p196 = scmp.ne.s32.totalorder %s179, %s195
      %p197 = scmp.eq.s32.totalorder %s35, 0
      %p198 = por %p196, %p197
      %s199 = ssub.s32 %s29, %s36
      %p200 = scmp.eq.s32.totalorder %s199, 0
      %s202 = sadd.s32 %s201, 1
      %s203 = scalar_select %p200, %s201, %s202
      %p206 = pneg %p200
      %p207 = scmp.eq.s32.totalorder %s29, 1
      %p208 = por %p206, %p207
      %p209 = scmp.ne.s32.totalorder %s201, %s204
      %p210 = scmp.eq.s32.totalorder %s29, 0
      %p211 = por %p209, %p210
      %p212 = scmp.ne.s32.totalorder %s201, %s204
      %p213 = scmp.eq.s32.totalorder %s34, 1
      %p214 = por %p212, %p213
      %p215 = scmp.ne.s32.totalorder %s204, %s205
      %p216 = scmp.eq.s32.totalorder %s34, 0
      %p217 = por %p215, %p216
      %p218 = scmp.ne.s32.totalorder %s204, %s205
      %p219 = scmp.eq.s32.totalorder %s35, 1
      %p220 = por %p218, %p219
      %p222 = scmp.ne.s32.totalorder %s205, %s221
      %p223 = scmp.eq.s32.totalorder %s35, 0
      %p224 = por %p222, %p223
      %s225 = ssub.s32 %s29, %s36
      %p226 = scmp.eq.s32.totalorder %s225, 0
      %s228 = sadd.s32 %s227, 1
      %s229 = scalar_select %p226, %s227, %s228
      %p232 = pneg %p226
      %p233 = scmp.eq.s32.totalorder %s29, 1
      %p234 = por %p232, %p233
      %p235 = scmp.ne.s32.totalorder %s227, %s230
      %p236 = scmp.eq.s32.totalorder %s29, 0
      %p237 = por %p235, %p236
      %p238 = scmp.ne.s32.totalorder %s227, %s230
      %p239 = scmp.eq.s32.totalorder %s34, 1
      %p240 = por %p238, %p239
      %p241 = scmp.ne.s32.totalorder %s230, %s231
      %p242 = scmp.eq.s32.totalorder %s34, 0
      %p243 = por %p241, %p242
      %p244 = scmp.ne.s32.totalorder %s230, %s231
      %p245 = scmp.eq.s32.totalorder %s35, 1
      %p246 = por %p244, %p245
      %p248 = scmp.ne.s32.totalorder %s231, %s247
      %p249 = scmp.eq.s32.totalorder %s35, 0
      %p250 = por %p248, %p249
      %s251 = ssub.s32 %s29, %s36
      %p252 = scmp.eq.s32.totalorder %s251, 0
      %s254 = sadd.s32 %s253, 1
      %s255 = scalar_select %p252, %s253, %s254
      %p258 = pneg %p252
      %p259 = scmp.eq.s32.totalorder %s29, 1
      %p260 = por %p258, %p259
      %p261 = scmp.ne.s32.totalorder %s253, %s256
      %p262 = scmp.eq.s32.totalorder %s29, 0
      %p263 = por %p261, %p262
      %p264 = scmp.ne.s32.totalorder %s253, %s256
      %p265 = scmp.eq.s32.totalorder %s34, 1
      %p266 = por %p264, %p265
      %p267 = scmp.ne.s32.totalorder %s256, %s257
      %p268 = scmp.eq.s32.totalorder %s34, 0
      %p269 = por %p267, %p268
      %p270 = scmp.ne.s32.totalorder %s256, %s257
      %p271 = scmp.eq.s32.totalorder %s35, 1
      %p272 = por %p270, %p271
      %p274 = scmp.ne.s32.totalorder %s257, %s273
      %p275 = scmp.eq.s32.totalorder %s35, 0
      %p276 = por %p274, %p275
      %s277 = ssub.s32 %s29, %s36
      %p278 = scmp.eq.s32.totalorder %s277, 0
      %s280 = sadd.s32 %s279, 1
      %s281 = scalar_select %p278, %s279, %s280
      %p284 = pneg %p278
      %p285 = scmp.eq.s32.totalorder %s29, 1
      %p286 = por %p284, %p285
      %p287 = scmp.ne.s32.totalorder %s279, %s282
      %p288 = scmp.eq.s32.totalorder %s29, 0
      %p289 = por %p287, %p288
      %p290 = scmp.ne.s32.totalorder %s279, %s282
      %p291 = scmp.eq.s32.totalorder %s34, 1
      %p292 = por %p290, %p291
      %p293 = scmp.ne.s32.totalorder %s282, %s283
      %p294 = scmp.eq.s32.totalorder %s34, 0
      %p295 = por %p293, %p294
      %p296 = scmp.ne.s32.totalorder %s282, %s283
      %p297 = scmp.eq.s32.totalorder %s35, 1
      %p298 = por %p296, %p297
      %p300 = scmp.ne.s32.totalorder %s283, %s299
      %p301 = scmp.eq.s32.totalorder %s35, 0
      %p302 = por %p300, %p301
      %s303 = ssub.s32 %s29, %s36
      %p304 = scmp.eq.s32.totalorder %s303, 0
      %s306 = sadd.s32 %s305, 1
      %s307 = scalar_select %p304, %s305, %s306
      %p310 = pneg %p304
      %p311 = scmp.eq.s32.totalorder %s29, 1
      %p312 = por %p310, %p311
      %p313 = scmp.ne.s32.totalorder %s305, %s308
      %p314 = scmp.eq.s32.totalorder %s29, 0
      %p315 = por %p313, %p314
      %p316 = scmp.ne.s32.totalorder %s305, %s308
      %p317 = scmp.eq.s32.totalorder %s34, 1
      %p318 = por %p316, %p317
      %p319 = scmp.ne.s32.totalorder %s308, %s309
      %p320 = scmp.eq.s32.totalorder %s34, 0
      %p321 = por %p319, %p320
      %p322 = scmp.ne.s32.totalorder %s308, %s309
      %p323 = scmp.eq.s32.totalorder %s35, 1
      %p324 = por %p322, %p323
      %p326 = scmp.ne.s32.totalorder %s309, %s325
      %p327 = scmp.eq.s32.totalorder %s35, 0
      %p328 = por %p326, %p327
      %s329 = ssub.s32 %s29, %s36
      %p330 = scmp.eq.s32.totalorder %s329, 0
      %s332 = sadd.s32 %s331, 1
      %s333 = scalar_select %p330, %s331, %s332
      %p336 = pneg %p330
      %p337 = scmp.eq.s32.totalorder %s29, 1
      %p338 = por %p336, %p337
      %p339 = scmp.ne.s32.totalorder %s331, %s334
      %p340 = scmp.eq.s32.totalorder %s29, 0
      %p341 = por %p339, %p340
      %p342 = scmp.ne.s32.totalorder %s331, %s334
      %p343 = scmp.eq.s32.totalorder %s34, 1
      %p344 = por %p342, %p343
      %p345 = scmp.ne.s32.totalorder %s334, %s335
      %p346 = scmp.eq.s32.totalorder %s34, 0
      %p347 = por %p345, %p346
      %p348 = scmp.ne.s32.totalorder %s334, %s335
      %p349 = scmp.eq.s32.totalorder %s35, 1
      %p350 = por %p348, %p349
      %p352 = scmp.ne.s32.totalorder %s335, %s351
      %p353 = scmp.eq.s32.totalorder %s35, 0
      %p354 = por %p352, %p353
      %s355 = ssub.s32 %s29, %s36
      %p356 = scmp.eq.s32.totalorder %s355, 0
      %s358 = sadd.s32 %s357, 1
      %s359 = scalar_select %p356, %s357, %s358
      %p362 = pneg %p356
      %p363 = scmp.eq.s32.totalorder %s29, 1
      %p364 = por %p362, %p363
      %p365 = scmp.ne.s32.totalorder %s357, %s360
      %p366 = scmp.eq.s32.totalorder %s29, 0
      %p367 = por %p365, %p366
      %p368 = scmp.ne.s32.totalorder %s357, %s360
      %p369 = scmp.eq.s32.totalorder %s34, 1
      %p370 = por %p368, %p369
      %p371 = scmp.ne.s32.totalorder %s360, %s361
      %p372 = scmp.eq.s32.totalorder %s34, 0
      %p373 = por %p371, %p372
      %p374 = scmp.ne.s32.totalorder %s360, %s361
      %p375 = scmp.eq.s32.totalorder %s35, 1
      %p376 = por %p374, %p375
      %p378 = scmp.ne.s32.totalorder %s361, %s377
      %p379 = scmp.eq.s32.totalorder %s35, 0
      %p380 = por %p378, %p379
      %s381 = ssub.s32 %s29, %s36
      %p382 = scmp.eq.s32.totalorder %s381, 0
      %s384 = sadd.s32 %s383, 1
      %s385 = scalar_select %p382, %s383, %s384
      %p388 = pneg %p382
      %p389 = scmp.eq.s32.totalorder %s29, 1
      %p390 = por %p388, %p389
      %p391 = scmp.ne.s32.totalorder %s383, %s386
      %p392 = scmp.eq.s32.totalorder %s29, 0
      %p393 = por %p391, %p392
      %p394 = scmp.ne.s32.totalorder %s383, %s386
      %p395 = scmp.eq.s32.totalorder %s34, 1
      %p396 = por %p394, %p395
      %p397 = scmp.ne.s32.totalorder %s386, %s387
      %p398 = scmp.eq.s32.totalorder %s34, 0
      %p399 = por %p397, %p398
      %p400 = scmp.ne.s32.totalorder %s386, %s387
      %p401 = scmp.eq.s32.totalorder %s35, 1
      %p402 = por %p400, %p401
      %p404 = scmp.ne.s32.totalorder %s387, %s403
      %p405 = scmp.eq.s32.totalorder %s35, 0
      %p406 = por %p404, %p405
      %s407 = ssub.s32 %s29, %s36
      %p408 = scmp.eq.s32.totalorder %s407, 0
      %s410 = sadd.s32 %s409, 1
      %s411 = scalar_select %p408, %s409, %s410
      %p414 = pneg %p408
      %p415 = scmp.eq.s32.totalorder %s29, 1
      %p416 = por %p414, %p415
      %p417 = scmp.ne.s32.totalorder %s409, %s412
      %p418 = scmp.eq.s32.totalorder %s29, 0
      %p419 = por %p417, %p418
      %p420 = scmp.ne.s32.totalorder %s409, %s412
      %p421 = scmp.eq.s32.totalorder %s34, 1
      %p422 = por %p420, %p421
      %p423 = scmp.ne.s32.totalorder %s412, %s413
      %p424 = scmp.eq.s32.totalorder %s34, 0
      %p425 = por %p423, %p424
      %p426 = scmp.ne.s32.totalorder %s412, %s413
      %p427 = scmp.eq.s32.totalorder %s35, 1
      %p428 = por %p426, %p427
      %p430 = scmp.ne.s32.totalorder %s413, %s429
      %p431 = scmp.eq.s32.totalorder %s35, 0
      %p432 = por %p430, %p431
      %s434 = sadd.s32 %s433, 1
      %p437 = scmp.eq.s32.totalorder %s29, 1
      %p438 = scmp.ne.s32.totalorder %s433, %s435
      %p439 = scmp.eq.s32.totalorder %s29, 0
      %p440 = por %p438, %p439
      %p441 = scmp.ne.s32.totalorder %s433, %s435
      %p442 = scmp.eq.s32.totalorder %s34, 1
      %p443 = por %p441, %p442
      %p444 = scmp.ne.s32.totalorder %s435, %s436
      %p445 = scmp.eq.s32.totalorder %s34, 0
      %p446 = por %p444, %p445
      %p447 = scmp.ne.s32.totalorder %s435, %s436
      %p448 = scmp.eq.s32.totalorder %s35, 1
      %p449 = por %p447, %p448
      %p451 = scmp.ne.s32.totalorder %s436, %s450
      %p452 = scmp.eq.s32.totalorder %s35, 0
      %p453 = por %p451, %p452
      %s455 = sadd.s32 %s454, 1
      %p458 = scmp.eq.s32.totalorder %s29, 1
      %p459 = scmp.ne.s32.totalorder %s454, %s456
      %p460 = scmp.eq.s32.totalorder %s29, 0
      %p461 = por %p459, %p460
      %p462 = scmp.ne.s32.totalorder %s454, %s456
      %p463 = scmp.eq.s32.totalorder %s34, 1
      %p464 = por %p462, %p463
      %p465 = scmp.ne.s32.totalorder %s456, %s457
      %p466 = scmp.eq.s32.totalorder %s34, 0
      %p467 = por %p465, %p466
      %p468 = scmp.ne.s32.totalorder %s456, %s457
      %p469 = scmp.eq.s32.totalorder %s35, 1
      %p470 = por %p468, %p469
      %p472 = scmp.ne.s32.totalorder %s457, %s471
      %p473 = scmp.eq.s32.totalorder %s35, 0
      %p474 = por %p472, %p473
      %p475 = scmp.le.s32.totalorder 1, %s29
      %p476 = scmp.lt.s32.totalorder %s29, 3
      %p477 = pnand %p475, %p476
      %p478 = pneg %p477
      // Predicated region
      $region9: #{tpu_custom_call.1} parent=5 // pred_check
        _
      $region10: #{tpu_custom_call.1} parent=5 // pred_check_branch
        %480 = sbr.rel (%p477) target = $region12
      $region11: #{tpu_custom_call.1} parent=5 // pred_region
        %s481 = ssub.s32 %s29, 1
        // Predicated region
        $region13: #{tpu_custom_call.1} parent=11 // pred_check
          %p482 = pneg %p50
        $region14: #{tpu_custom_call.1} parent=11 // pred_check_branch
          %484 = sbr.rel (%p482) target = $region16
        $region15: #{tpu_custom_call.1} parent=11 // pred_region
          %s486 = ssub.s32 256, 256
          %487 = vsyncadd [#allocation3], %s486
          %s488 = sshll.u32 [#allocation2], 4
          %s489 = int_to_ptr.vmem [resolvable:$true] %s488
          %494 = dma.hbm_to_vmem [thread:$0]  %s0, 256, %s489, [#allocation3], 128, 128, 8
        $region16: #{tpu_custom_call.1} parent=11 // pred_fallthru
          _
        // Predicated region
        $region17: #{tpu_custom_call.1} parent=11 // pred_check
          %p495 = pneg %p71
        $region18: #{tpu_custom_call.1} parent=11 // pred_check_branch
          %497 = sbr.rel (%p495) target = $region20
        $region19: #{tpu_custom_call.1} parent=11 // pred_region
          %s499 = ssub.s32 32, 32
          %500 = vsyncadd [#allocation6], %s499
          %s502 = sshll.u32 [#allocation5], 4
          %s503 = int_to_ptr.vmem [resolvable:$true] %s502
          %505 = dma.hbm_to_vmem [thread:$0]  %s1, 32, %s503, [#allocation6]
        $region20: #{tpu_custom_call.1} parent=11 // pred_fallthru
          _
        // Predicated region
        $region21: #{tpu_custom_call.1} parent=11 // pred_check
          %p506 = pneg %p92
        $region22: #{tpu_custom_call.1} parent=11 // pred_check_branch
          %508 = sbr.rel (%p506) target = $region24
        $region23: #{tpu_custom_call.1} parent=11 // pred_region
          %s510 = ssub.s32 16, 16
          %511 = vsyncadd [#allocation6], %s510
          %s513 = sshll.u32 [#allocation7], 4
          %s514 = int_to_ptr.vmem [resolvable:$true] %s513
          %516 = dma.hbm_to_vmem [thread:$0]  %s2, 16, %s514, [#allocation6]
        $region24: #{tpu_custom_call.1} parent=11 // pred_fallthru
          _
        // Predicated region
        $region25: #{tpu_custom_call.1} parent=11 // pred_check
          %p517 = pneg %p113
        $region26: #{tpu_custom_call.1} parent=11 // pred_check_branch
          %519 = sbr.rel (%p517) target = $region28
        $region27: #{tpu_custom_call.1} parent=11 // pred_region
          %s521 = ssub.s32 16, 16
          %522 = vsyncadd [#allocation9], %s521
          %s524 = sshll.u32 [#allocation8], 4
          %s525 = int_to_ptr.vmem [resolvable:$true] %s524
          %527 = dma.hbm_to_vmem [thread:$0]  %s3, 16, %s525, [#allocation9]
        $region28: #{tpu_custom_call.1} parent=11 // pred_fallthru
          _
      $region12: #{tpu_custom_call.1} parent=5 // pred_fallthru
        _
      %p528 = scmp.lt.s32.totalorder %s29, 2
      // Predicated region
      $region29: #{tpu_custom_call.1} parent=5 // pred_check
        %p529 = pneg %p528
      $region30: #{tpu_custom_call.1} parent=5 // pred_check_branch
        %531 = sbr.rel (%p529) target = $region32
      $region31: #{tpu_custom_call.1} parent=5 // pred_region
        // Predicated region
        $region33: #{tpu_custom_call.1} parent=31 // pred_check
          %p532 = pneg %p133
        $region34: #{tpu_custom_call.1} parent=31 // pred_check_branch
          %534 = sbr.rel (%p532) target = $region36
        $region35: #{tpu_custom_call.1} parent=31 // pred_region
          %s535 = sand.u32 %s29, 1
          %s536 = scalar_lea.sflag [#allocation3], %s535
          %s537 = sand.u32 %s123, 1
          %s538 = smul.addr %s537, 192
          %s539 = scalar_lea.vmem [#allocation10], %s538
          %s541 = ssub.s32 3072, 3072
          %542 = vsyncadd %s536, %s541
          %s543 = smul.addr %s29, 48
          %s544 = smul.addr %s543, 64
          %s545 = scalar_lea.hbm %s4, %s544
          %s546 = sshll.u32 %s539, 4
          %s547 = int_to_ptr.vmem [resolvable:$true] %s546
          %552 = dma.hbm_to_vmem [thread:$0]  %s545, 3072, %s547, %s536, 192, 192, 12
        $region36: #{tpu_custom_call.1} parent=31 // pred_fallthru
          _
        // Predicated region
        $region37: #{tpu_custom_call.1} parent=31 // pred_check
          %p553 = pneg %p159
        $region38: #{tpu_custom_call.1} parent=31 // pred_check_branch
          %555 = sbr.rel (%p553) target = $region40
        $region39: #{tpu_custom_call.1} parent=31 // pred_region
          %p556 = scmp.lt.s32.totalorder %s29, 1
          %s557 = scalar_select %p556, %s29, 1
          %s558 = smul.addr %s557, 3
          %s559 = scalar_lea.vmem %s5, %s558
        $region40: #{tpu_custom_call.1} parent=31 // pred_fallthru
          _
        // Predicated region
        $region41: #{tpu_custom_call.1} parent=31 // pred_check
          %p560 = pneg %p185
        $region42: #{tpu_custom_call.1} parent=31 // pred_check_branch
          %562 = sbr.rel (%p560) target = $region44
        $region43: #{tpu_custom_call.1} parent=31 // pred_region
          %s563 = sand.u32 %s29, 1
          %s564 = scalar_lea.sflag [#allocation3], %s563
          %s565 = sand.u32 %s175, 1
          %s566 = smul.addr %s565, 64
          %s567 = scalar_lea.vmem [#allocation11], %s566
          %s569 = ssub.s32 1024, 1024
          %570 = vsyncadd %s564, %s569
          %s571 = smul.addr %s29, 16
          %s572 = smul.addr %s571, 64
          %s573 = scalar_lea.hbm %s6, %s572
          %s574 = sshll.u32 %s567, 4
          %s575 = int_to_ptr.vmem [resolvable:$true] %s574
          %580 = dma.hbm_to_vmem [thread:$0]  %s573, 1024, %s575, %s564, 64, 64, 4
        $region44: #{tpu_custom_call.1} parent=31 // pred_fallthru
          _
        // Predicated region
        $region45: #{tpu_custom_call.1} parent=31 // pred_check
          %p581 = pneg %p211
        $region46: #{tpu_custom_call.1} parent=31 // pred_check_branch
          %583 = sbr.rel (%p581) target = $region48
        $region47: #{tpu_custom_call.1} parent=31 // pred_region
          %p584 = scmp.lt.s32.totalorder %s29, 1
          %s585 = scalar_select %p584, %s29, 1
          %s586 = scalar_lea.vmem %s7, %s585
        $region48: #{tpu_custom_call.1} parent=31 // pred_fallthru
          _
        // Predicated region
        $region49: #{tpu_custom_call.1} parent=31 // pred_check
          %p587 = pneg %p237
        $region50: #{tpu_custom_call.1} parent=31 // pred_check_branch
          %589 = sbr.rel (%p587) target = $region52
        $region51: #{tpu_custom_call.1} parent=31 // pred_region
          %p590 = scmp.lt.s32.totalorder %s29, 1
          %s591 = scalar_select %p590, %s29, 1
          %s592 = scalar_lea.vmem %s8, %s591
        $region52: #{tpu_custom_call.1} parent=31 // pred_fallthru
          _
        // Predicated region
        $region53: #{tpu_custom_call.1} parent=31 // pred_check
          %p593 = pneg %p263
        $region54: #{tpu_custom_call.1} parent=31 // pred_check_branch
          %595 = sbr.rel (%p593) target = $region56
        $region55: #{tpu_custom_call.1} parent=31 // pred_region
          %p596 = scmp.lt.s32.totalorder %s29, 1
          %s597 = scalar_select %p596, %s29, 1
          %s598 = scalar_lea.vmem %s9, %s597
        $region56: #{tpu_custom_call.1} parent=31 // pred_fallthru
          _
        // Predicated region
        $region57: #{tpu_custom_call.1} parent=31 // pred_check
          %p599 = pneg %p289
        $region58: #{tpu_custom_call.1} parent=31 // pred_check_branch
          %601 = sbr.rel (%p599) target = $region60
        $region59: #{tpu_custom_call.1} parent=31 // pred_region
          %s602 = sand.u32 %s29, 1
          %s603 = scalar_lea.sflag [#allocation3], %s602
          %s604 = sand.u32 %s279, 1
          %s605 = smul.addr %s604, 256
          %s606 = scalar_lea.vmem [#allocation12], %s605
          %s608 = ssub.s32 4096, 4096
          %609 = vsyncadd %s603, %s608
          %s610 = smul.addr %s29, 64
          %s611 = smul.addr %s610, 64
          %s612 = scalar_lea.hbm %s10, %s611
          %s613 = sshll.u32 %s606, 4
          %s614 = int_to_ptr.vmem [resolvable:$true] %s613
          %619 = dma.hbm_to_vmem [thread:$0]  %s612, 4096, %s614, %s603, 256, 256, 16
        $region60: #{tpu_custom_call.1} parent=31 // pred_fallthru
          _
        // Predicated region
        $region61: #{tpu_custom_call.1} parent=31 // pred_check
          %p620 = pneg %p315
        $region62: #{tpu_custom_call.1} parent=31 // pred_check_branch
          %622 = sbr.rel (%p620) target = $region64
        $region63: #{tpu_custom_call.1} parent=31 // pred_region
          %p623 = scmp.lt.s32.totalorder %s29, 1
          %s624 = scalar_select %p623, %s29, 1
          %s625 = smul.addr %s624, 4
          %s626 = scalar_lea.vmem %s11, %s625
        $region64: #{tpu_custom_call.1} parent=31 // pred_fallthru
          _
        // Predicated region
        $region65: #{tpu_custom_call.1} parent=31 // pred_check
          %p627 = pneg %p341
        $region66: #{tpu_custom_call.1} parent=31 // pred_check_branch
          %629 = sbr.rel (%p627) target = $region68
        $region67: #{tpu_custom_call.1} parent=31 // pred_region
          %s630 = sand.u32 %s29, 1
          %s631 = scalar_lea.sflag [#allocation3], %s630
          %s632 = sand.u32 %s331, 1
          %s633 = smul.addr %s632, 256
          %s634 = scalar_lea.vmem [#allocation13], %s633
          %s636 = ssub.s32 4096, 4096
          %637 = vsyncadd %s631, %s636
          %s638 = smul.addr %s29, 64
          %s639 = smul.addr %s638, 64
          %s640 = scalar_lea.hbm %s12, %s639
          %s641 = sshll.u32 %s634, 4
          %s642 = int_to_ptr.vmem [resolvable:$true] %s641
          %647 = dma.hbm_to_vmem [thread:$0]  %s640, 4096, %s642, %s631, 64, 64, 4
        $region68: #{tpu_custom_call.1} parent=31 // pred_fallthru
          _
        // Predicated region
        $region69: #{tpu_custom_call.1} parent=31 // pred_check
          %p648 = pneg %p367
        $region70: #{tpu_custom_call.1} parent=31 // pred_check_branch
          %650 = sbr.rel (%p648) target = $region72
        $region71: #{tpu_custom_call.1} parent=31 // pred_region
          %p651 = scmp.lt.s32.totalorder %s29, 1
          %s652 = scalar_select %p651, %s29, 1
          %s653 = scalar_lea.vmem %s13, %s652
        $region72: #{tpu_custom_call.1} parent=31 // pred_fallthru
          _
        // Predicated region
        $region73: #{tpu_custom_call.1} parent=31 // pred_check
          %p654 = pneg %p393
        $region74: #{tpu_custom_call.1} parent=31 // pred_check_branch
          %656 = sbr.rel (%p654) target = $region76
        $region75: #{tpu_custom_call.1} parent=31 // pred_region
          %p657 = scmp.lt.s32.totalorder %s29, 1
          %s658 = scalar_select %p657, %s29, 1
          %s659 = scalar_lea.vmem %s14, %s658
        $region76: #{tpu_custom_call.1} parent=31 // pred_fallthru
          _
        // Predicated region
        $region77: #{tpu_custom_call.1} parent=31 // pred_check
          %p660 = pneg %p419
        $region78: #{tpu_custom_call.1} parent=31 // pred_check_branch
          %662 = sbr.rel (%p660) target = $region80
        $region79: #{tpu_custom_call.1} parent=31 // pred_region
          %p663 = scmp.lt.s32.totalorder %s29, 1
          %s664 = scalar_select %p663, %s29, 1
          %s665 = scalar_lea.vmem %s15, %s664
        $region80: #{tpu_custom_call.1} parent=31 // pred_fallthru
          _
      $region32: #{tpu_custom_call.1} parent=5 // pred_fallthru
        _
      %p666 = scmp.le.s32.totalorder 1, %s29
      %p667 = scmp.lt.s32.totalorder %s29, 3
      %p668 = pnand %p666, %p667
      %p669 = pneg %p668
      // Predicated region
      $region81: #{tpu_custom_call.1} parent=5 // pred_check
        _
      $region82: #{tpu_custom_call.1} parent=5 // pred_check_branch
        %671 = sbr.rel (%p668) target = $region84
      $region83: #{tpu_custom_call.1} parent=5 // pred_region
        %s672 = ssub.s32 %s29, 1
        // Predicated region
        $region85: #{tpu_custom_call.1} parent=83 // pred_check
          %p673 = pneg %p50
        $region86: #{tpu_custom_call.1} parent=83 // pred_check_branch
          %675 = sbr.rel (%p673) target = $region88
        $region87: #{tpu_custom_call.1} parent=83 // pred_region
          %676 = dma.done [#allocation3], 256
        $region88: #{tpu_custom_call.1} parent=83 // pred_fallthru
          _
        // Predicated region
        $region89: #{tpu_custom_call.1} parent=83 // pred_check
          %p677 = pneg %p71
        $region90: #{tpu_custom_call.1} parent=83 // pred_check_branch
          %679 = sbr.rel (%p677) target = $region92
        $region91: #{tpu_custom_call.1} parent=83 // pred_region
          %680 = dma.done [#allocation6], 32
        $region92: #{tpu_custom_call.1} parent=83 // pred_fallthru
          _
        // Predicated region
        $region93: #{tpu_custom_call.1} parent=83 // pred_check
          %p681 = pneg %p92
        $region94: #{tpu_custom_call.1} parent=83 // pred_check_branch
          %683 = sbr.rel (%p681) target = $region96
        $region95: #{tpu_custom_call.1} parent=83 // pred_region
          %684 = dma.done [#allocation6], 16
        $region96: #{tpu_custom_call.1} parent=83 // pred_fallthru
          _
        // Predicated region
        $region97: #{tpu_custom_call.1} parent=83 // pred_check
          %p685 = pneg %p113
        $region98: #{tpu_custom_call.1} parent=83 // pred_check_branch
          %687 = sbr.rel (%p685) target = $region100
        $region99: #{tpu_custom_call.1} parent=83 // pred_region
          %688 = dma.done [#allocation9], 16
        $region100: #{tpu_custom_call.1} parent=83 // pred_fallthru
          _
        %s689 = sand.u32 %s34, 1
        %s690 = scalar_lea.sflag [#allocation3], %s689
        %s691 = sand.u32 %s126, 1
        %s692 = smul.addr %s691, 192
        %s693 = scalar_lea.vmem [#allocation10], %s692
        // Predicated region
        $region101: #{tpu_custom_call.1} parent=83 // pred_check
          %p694 = pneg %p139
        $region102: #{tpu_custom_call.1} parent=83 // pred_check_branch
          %696 = sbr.rel (%p694) target = $region104
        $region103: #{tpu_custom_call.1} parent=83 // pred_region
          %697 = dma.done %s690, 3072
        $region104: #{tpu_custom_call.1} parent=83 // pred_fallthru
          _
        %s698 = sand.u32 %s34, 1
        %s699 = scalar_lea.sflag [#allocation3], %s698
        %s700 = sand.u32 %s178, 1
        %s701 = smul.addr %s700, 64
        %s702 = scalar_lea.vmem [#allocation11], %s701
        // Predicated region
        $region105: #{tpu_custom_call.1} parent=83 // pred_check
          %p703 = pneg %p191
        $region106: #{tpu_custom_call.1} parent=83 // pred_check_branch
          %705 = sbr.rel (%p703) target = $region108
        $region107: #{tpu_custom_call.1} parent=83 // pred_region
          %706 = dma.done %s699, 1024
        $region108: #{tpu_custom_call.1} parent=83 // pred_fallthru
          _
        %s707 = sand.u32 %s34, 1
        %s708 = scalar_lea.sflag [#allocation3], %s707
        %s709 = sand.u32 %s282, 1
        %s710 = smul.addr %s709, 256
        %s711 = scalar_lea.vmem [#allocation12], %s710
        // Predicated region
        $region109: #{tpu_custom_call.1} parent=83 // pred_check
          %p712 = pneg %p295
        $region110: #{tpu_custom_call.1} parent=83 // pred_check_branch
          %714 = sbr.rel (%p712) target = $region112
        $region111: #{tpu_custom_call.1} parent=83 // pred_region
          %715 = dma.done %s708, 4096
        $region112: #{tpu_custom_call.1} parent=83 // pred_fallthru
          _
        %s716 = sand.u32 %s34, 1
        %s717 = scalar_lea.sflag [#allocation3], %s716
        %s718 = sand.u32 %s334, 1
        %s719 = smul.addr %s718, 256
        %s720 = scalar_lea.vmem [#allocation13], %s719
        // Predicated region
        $region113: #{tpu_custom_call.1} parent=83 // pred_check
          %p721 = pneg %p347
        $region114: #{tpu_custom_call.1} parent=83 // pred_check_branch
          %723 = sbr.rel (%p721) target = $region116
        $region115: #{tpu_custom_call.1} parent=83 // pred_region
          %724 = dma.done %s717, 4096
        $region116: #{tpu_custom_call.1} parent=83 // pred_fallthru
          _
        %p725 = pneg %p50
        %p726 = pneg %p47
        %p727 = pneg %p71
        %p728 = pneg %p68
        %p729 = pneg %p92
        %p730 = pneg %p89
        %p731 = pneg %p113
        %p732 = pneg %p110
        %s733 = sand.u32 %s34, 1
        %s734 = scalar_lea.sflag [#allocation3], %s733
        %s735 = sand.u32 %s126, 1
        %s736 = smul.addr %s735, 192
        %s737 = scalar_lea.vmem [#allocation10], %s736
        %p738 = pneg %p139
        %p739 = pneg %p136
        %p740 = scmp.lt.s32.totalorder %s34, 1
        %s741 = scalar_select %p740, %s34, 1
        %s742 = smul.addr %s741, 3
        %s743 = scalar_lea.vmem %s5, %s742
        %p744 = pneg %p165
        %p745 = pneg %p162
        %s746 = sand.u32 %s34, 1
        %s747 = scalar_lea.sflag [#allocation3], %s746
        %s748 = sand.u32 %s178, 1
        %s749 = smul.addr %s748, 64
        %s750 = scalar_lea.vmem [#allocation11], %s749
        %p751 = pneg %p191
        %p752 = pneg %p188
        %p753 = scmp.lt.s32.totalorder %s34, 1
        %s754 = scalar_select %p753, %s34, 1
        %s755 = scalar_lea.vmem %s7, %s754
        %p756 = pneg %p217
        %p757 = pneg %p214
        %p758 = scmp.lt.s32.totalorder %s34, 1
        %s759 = scalar_select %p758, %s34, 1
        %s760 = scalar_lea.vmem %s8, %s759
        %p761 = pneg %p243
        %p762 = pneg %p240
        %p763 = scmp.lt.s32.totalorder %s34, 1
        %s764 = scalar_select %p763, %s34, 1
        %s765 = scalar_lea.vmem %s9, %s764
        %p766 = pneg %p269
        %p767 = pneg %p266
        %s768 = sand.u32 %s34, 1
        %s769 = scalar_lea.sflag [#allocation3], %s768
        %s770 = sand.u32 %s282, 1
        %s771 = smul.addr %s770, 256
        %s772 = scalar_lea.vmem [#allocation12], %s771
        %p773 = pneg %p295
        %p774 = pneg %p292
        %p775 = scmp.lt.s32.totalorder %s34, 1
        %s776 = scalar_select %p775, %s34, 1
        %s777 = smul.addr %s776, 4
        %s778 = scalar_lea.vmem %s11, %s777
        %p779 = pneg %p321
        %p780 = pneg %p318
        %s781 = sand.u32 %s34, 1
        %s782 = scalar_lea.sflag [#allocation3], %s781
        %s783 = sand.u32 %s334, 1
        %s784 = smul.addr %s783, 256
        %s785 = scalar_lea.vmem [#allocation13], %s784
        %p786 = pneg %p347
        %p787 = pneg %p344
        %p788 = scmp.lt.s32.totalorder %s34, 1
        %s789 = scalar_select %p788, %s34, 1
        %s790 = scalar_lea.vmem %s13, %s789
        %p791 = pneg %p373
        %p792 = pneg %p370
        %p793 = scmp.lt.s32.totalorder %s34, 1
        %s794 = scalar_select %p793, %s34, 1
        %s795 = scalar_lea.vmem %s14, %s794
        %p796 = pneg %p399
        %p797 = pneg %p396
        %p798 = scmp.lt.s32.totalorder %s34, 1
        %s799 = scalar_select %p798, %s34, 1
        %s800 = scalar_lea.vmem %s15, %s799
        %p801 = pneg %p425
        %p802 = pneg %p422
        %p803 = pneg %p446
        %p804 = pneg %p443
        %p805 = pneg %p467
        %p806 = pneg %p464
        %p807 = scmp.lt.s32.totalorder %s34, 1
        %s808 = scalar_select %p807, %s34, 1
        %s809 = smul.addr %s808, 3
        %s810 = scalar_lea.vmem %s5, %s809
        %p811 = scmp.lt.s32.totalorder %s34, 1
        %s812 = scalar_select %p811, %s34, 1
        %s813 = scalar_lea.vmem %s7, %s812
        %p814 = scmp.lt.s32.totalorder %s34, 1
        %s815 = scalar_select %p814, %s34, 1
        %s816 = scalar_lea.vmem %s8, %s815
        %p817 = scmp.lt.s32.totalorder %s34, 1
        %s818 = scalar_select %p817, %s34, 1
        %s819 = scalar_lea.vmem %s9, %s818
        %p820 = scmp.lt.s32.totalorder %s34, 1
        %s821 = scalar_select %p820, %s34, 1
        %s822 = smul.addr %s821, 4
        %s823 = scalar_lea.vmem %s11, %s822
        %p824 = scmp.lt.s32.totalorder %s34, 1
        %s825 = scalar_select %p824, %s34, 1
        %s826 = scalar_lea.vmem %s13, %s825
        %p827 = scmp.lt.s32.totalorder %s34, 1
        %s828 = scalar_select %p827, %s34, 1
        %s829 = scalar_lea.vmem %s14, %s828
        %p830 = scmp.lt.s32.totalorder %s34, 1
        %s831 = scalar_select %p830, %s34, 1
        %s832 = scalar_lea.vmem %s15, %s831
        %p834 = scmp.eq.s32.totalorder %s34, 0
        // Predicated region
        $region117: #{tpu_custom_call.1} parent=83 // pred_check
          %p835 = pneg %p834
        $region118: #{tpu_custom_call.1} parent=83 // pred_check_branch
          %837 = sbr.rel (%p835) target = $region120
        $region119: #{tpu_custom_call.1} parent=83 // pred_region
          %v838 = vld [vmem:[#allocation2] sm:$0xff]
          %v839 = vld [vmem:[#allocation2 + $0x8] sm:$0xff]
          %v840 = vld [vmem:[#allocation7] sm:$0x1]
          %v841 = vld [vmem:[#allocation8] sm:$0x1]
          %842 = vadd.xlane.f32.xlu0 %v838
          %v843 = vpop.xlane.xlu0 %842
          %844 = vadd.xlane.f32.xlu0 %v839
          %v845 = vpop.xlane.xlu0 %844
          %v846 = vrcp.pop 128.0
          %v847 = vmul.f32 %v843, %v846
          %v848 = vmul.f32 %v845, %v846
          %v849 = vsub.f32 %v838, %v847
          %v850 = vsub.f32 %v839, %v848
          %v851 = vmul.f32 %v849, %v849
          %v852 = vmul.f32 %v850, %v850
          %853 = vadd.xlane.f32.xlu0 %v851
          %v854 = vpop.xlane.xlu0 %853
          %855 = vadd.xlane.f32.xlu0 %v852
          %v856 = vpop.xlane.xlu0 %855
          %v857 = vmul.f32 %v854, %v846
          %v858 = vmul.f32 %v856, %v846
          %v859 = vadd.f32 %v857, 1e-12
          %v860 = vadd.f32 %v858, 1e-12
          %v861 = vrsqrt.pop %v859
          %v862 = vrsqrt.pop %v860
          %v863 = vmul.f32 %v849, %v861
          %v864 = vmul.f32 %v850, %v862
          %v866 = vlaneseq
          %v867 = vshrl.u32 %v866, 7
          %v868 = vsub.s32 0, %v867
          %v869 = vrot.slane %v840, %v868
          %v871 = vmul.f32 %v863, %v869
          %v872 = vmul.f32 %v864, %v869
          %v874 = vlaneseq
          %v875 = vshrl.u32 %v874, 7
          %v876 = vsub.s32 0, %v875
          %v877 = vrot.slane %v841, %v876
          %v879 = vadd.f32 %v871, %v877
          %v880 = vadd.f32 %v872, %v877
          %881 = vst [vmem:[#allocation14] sm:$0xff] %v879
          %882 = vst [vmem:[#allocation14 + $0x8] sm:$0xff] %v880
        $region120: #{tpu_custom_call.1} parent=83 // pred_fallthru
          _
        %v883 = vld [vmem:[#allocation14] sm:$0xff]
        %v884 = vld [vmem:[#allocation14 + $0x8] sm:$0xff]
        %v885 = vpack.c.bf16 %v884, %v883
        %v886 = vld [vmem:[%s693] sm:$0xff]
        %v887 = vld [vmem:[%s693 + $0x8] sm:$0xf]
        %v888 = vld [vmem:[%s693 + $0xc] sm:$0xff]
        %v889 = vld [vmem:[%s693 + $0x14] sm:$0xf]
        %v890 = vld [vmem:[%s693 + $0x18] sm:$0xff]
        %v891 = vld [vmem:[%s693 + $0x20] sm:$0xf]
        %v892 = vld [vmem:[%s693 + $0x24] sm:$0xff]
        %v893 = vld [vmem:[%s693 + $0x2c] sm:$0xf]
        %v894 = vld [vmem:[%s693 + $0x30] sm:$0xff]
        %v895 = vld [vmem:[%s693 + $0x38] sm:$0xf]
        %v896 = vld [vmem:[%s693 + $0x3c] sm:$0xff]
        %v897 = vld [vmem:[%s693 + $0x44] sm:$0xf]
        %v898 = vld [vmem:[%s693 + $0x48] sm:$0xff]
        %v899 = vld [vmem:[%s693 + $0x50] sm:$0xf]
        %v900 = vld [vmem:[%s693 + $0x54] sm:$0xff]
        %v901 = vld [vmem:[%s693 + $0x5c] sm:$0xf]
        %v902 = vld [vmem:[%s693 + $0x60] sm:$0xff]
        %v903 = vld [vmem:[%s693 + $0x68] sm:$0xf]
        %v904 = vld [vmem:[%s693 + $0x6c] sm:$0xff]
        %v905 = vld [vmem:[%s693 + $0x74] sm:$0xf]
        %v906 = vld [vmem:[%s693 + $0x78] sm:$0xff]
        %v907 = vld [vmem:[%s693 + $0x80] sm:$0xf]
        %v908 = vld [vmem:[%s693 + $0x84] sm:$0xff]
        %v909 = vld [vmem:[%s693 + $0x8c] sm:$0xf]
        %v910 = vld [vmem:[%s693 + $0x90] sm:$0xff]
        %v911 = vld [vmem:[%s693 + $0x98] sm:$0xf]
        %v912 = vld [vmem:[%s693 + $0x9c] sm:$0xff]
        %v913 = vld [vmem:[%s693 + $0xa4] sm:$0xf]
        %v914 = vld [vmem:[%s693 + $0xa8] sm:$0xff]
        %v915 = vld [vmem:[%s693 + $0xb0] sm:$0xf]
        %v916 = vld [vmem:[%s693 + $0xb4] sm:$0xff]
        %v917 = vld [vmem:[%s693 + $0xbc] sm:$0xf]
        %v918 = vld [vmem:[%s810] sm:$0x7]
        %v920 = vlaneseq
        %v921 = vshrl.u32 %v920, 7
        %v922 = vsub.s32 0, %v921
        %v923 = vrot.slane %v918, %v922
        %v924 = vlaneseq
        %v925 = vshrl.u32 %v924, 7
        %v926 = vsub.s32 1, %v925
        %v927 = vrot.slane %v918, %v926
        %v928 = vlaneseq
        %v929 = vshrl.u32 %v928, 7
        %v930 = vsub.s32 2, %v929
        %v931 = vrot.slane %v918, %v930
        %v967 = vunpack.c.l.b16 %v886
        %v968 = vunpack.c.h.b16 %v886
        %v969 = vunpack.c.l.b16 %v887
        %v970 = vunpack.c.l.b16 %v888
        %v971 = vunpack.c.h.b16 %v888
        %v972 = vunpack.c.l.b16 %v889
        %v973 = vunpack.c.l.b16 %v890
        %v974 = vunpack.c.h.b16 %v890
        %v975 = vunpack.c.l.b16 %v891
        %v976 = vunpack.c.l.b16 %v892
        %v977 = vunpack.c.h.b16 %v892
        %v978 = vunpack.c.l.b16 %v893
        %v979 = vunpack.c.l.b16 %v894
        %v980 = vunpack.c.h.b16 %v894
        %v981 = vunpack.c.l.b16 %v895
        %v982 = vunpack.c.l.b16 %v896
        %v983 = vunpack.c.h.b16 %v896
        %v984 = vunpack.c.l.b16 %v897
        %v985 = vunpack.c.l.b16 %v898
        %v986 = vunpack.c.h.b16 %v898
        %v987 = vunpack.c.l.b16 %v899
        %v988 = vunpack.c.l.b16 %v900
        %v989 = vunpack.c.h.b16 %v900
        %v990 = vunpack.c.l.b16 %v901
        %v991 = vunpack.c.l.b16 %v902
        %v992 = vunpack.c.h.b16 %v902
        %v993 = vunpack.c.l.b16 %v903
        %v994 = vunpack.c.l.b16 %v904
        %v995 = vunpack.c.h.b16 %v904
        %v996 = vunpack.c.l.b16 %v905
        %v997 = vunpack.c.l.b16 %v906
        %v998 = vunpack.c.h.b16 %v906
        %v999 = vunpack.c.l.b16 %v907
        %v1000 = vunpack.c.l.b16 %v908
        %v1001 = vunpack.c.h.b16 %v908
        %v1002 = vunpack.c.l.b16 %v909
        %v1003 = vunpack.c.l.b16 %v910
        %v1004 = vunpack.c.h.b16 %v910
        %v1005 = vunpack.c.l.b16 %v911
        %v1006 = vunpack.c.l.b16 %v912
        %v1007 = vunpack.c.h.b16 %v912
        %v1008 = vunpack.c.l.b16 %v913
        %v1009 = vunpack.c.l.b16 %v914
        %v1010 = vunpack.c.h.b16 %v914
        %v1011 = vunpack.c.l.b16 %v915
        %v1012 = vunpack.c.l.b16 %v916
        %v1013 = vunpack.c.h.b16 %v916
        %v1014 = vunpack.c.l.b16 %v917
        %v1015 = vpack.c.b16 %v970, %v967
        %v1016 = vpack.c.b16 %v971, %v968
        %v1017 = vpack.c.b16 %v972, %v969
        %v1018 = vpack.c.b16 %v976, %v973
        %v1019 = vpack.c.b16 %v977, %v974
        %v1020 = vpack.c.b16 %v978, %v975
        %v1021 = vpack.c.b16 %v982, %v979
        %v1022 = vpack.c.b16 %v983, %v980
        %v1023 = vpack.c.b16 %v984, %v981
        %v1024 = vpack.c.b16 %v988, %v985
        %v1025 = vpack.c.b16 %v989, %v986
        %v1026 = vpack.c.b16 %v990, %v987
        %v1027 = vpack.c.b16 %v994, %v991
        %v1028 = vpack.c.b16 %v995, %v992
        %v1029 = vpack.c.b16 %v996, %v993
        %v1030 = vpack.c.b16 %v1000, %v997
        %v1031 = vpack.c.b16 %v1001, %v998
        %v1032 = vpack.c.b16 %v1002, %v999
        %v1033 = vpack.c.b16 %v1006, %v1003
        %v1034 = vpack.c.b16 %v1007, %v1004
        %v1035 = vpack.c.b16 %v1008, %v1005
        %v1036 = vpack.c.b16 %v1012, %v1009
        %v1037 = vpack.c.b16 %v1013, %v1010
        %v1038 = vpack.c.b16 %v1014, %v1011
        %1063 = vmatprep.subr.bf16.mxu0 %v1016
        %1064 = vmatpush1.bf16.msra.mxu0 %v1015
        %1065 = vmatprep.subr.bf16.mxu0 %v1019
        %1066 = vmatpush1.bf16.msra.mxu0 %v1018
        %1067 = vmatprep.subr.bf16.mxu0 %v1022
        %1068 = vmatpush1.bf16.msra.mxu0 %v1021
        %1069 = vmatprep.subr.bf16.mxu0 %v1025
        %1070 = vmatpush1.bf16.msra.mxu0 %v1024
        %1071 = vmatprep.subr.bf16.mxu0 %v1028
        %1072 = vmatpush1.bf16.msra.mxu0 %v1027
        %1073 = vmatprep.subr.bf16.mxu0 %v1031
        %1074 = vmatpush1.bf16.msra.mxu0 %v1030
        %1075 = vmatprep.subr.bf16.mxu0 %v1034
        %1076 = vmatpush1.bf16.msra.mxu0 %v1033
        %1077 = vmatprep.subr.bf16.mxu0 %v1037
        %1078 = vmatpush1.bf16.msra.mxu0 %v1036
        %1079 = vmatprep.subr.bf16.mxu0 0
        %1080 = vmatpush1.bf16.msra.mxu0 0
        %1081 = vmatprep.subr.bf16.mxu0 0
        %1082 = vmatpush1.bf16.msra.mxu0 0
        %1083 = vmatprep.subr.bf16.mxu0 0
        %1084 = vmatpush1.bf16.msra.mxu0 0
        %1085 = vmatprep.subr.bf16.mxu0 0
        %1086 = vmatpush1.bf16.msra.mxu0 0
        %1087 = vmatprep.subr.bf16.mxu0 0
        %1088 = vmatpush1.bf16.msra.mxu0 0
        %1089 = vmatprep.subr.bf16.mxu0 0
        %1090 = vmatpush1.bf16.msra.mxu0 0
        %1091 = vmatprep.subr.bf16.mxu0 0
        %1092 = vmatpush1.bf16.msra.mxu0 0
        %1093 = vmatprep.subr.bf16.mxu0 0
        %1094 = vmatpush1.bf16.msra.mxu0 0
        %1095 = vmatprep.mubr.bf16.mxu0 0
        %1096 = vmatmul.mubr.bf16.gmra.mrb[0].mxu0 %v885
        %v1097 = vpop.f32.mrb[0].mxu0
        %v1098 = vadd.f32 %v923, %v1097
        %v1099 = vpop.f32.mrb[0].mxu0
        %v1100 = vadd.f32 %v927, %v1099
        %v1101 = vpop.f32.mrb[0].mxu0
        %v1102 = vadd.f32 %v923, %v1101
        %v1103 = vpop.f32.mrb[0].mxu0
        %v1104 = vadd.f32 %v927, %v1103
        %1105 = vdwg.mxu0
        %1106 = vmatprep.subr.bf16.mxu0 0
        %1107 = vmatpush1.bf16.msra.mxu0 %v1017
        %1108 = vmatprep.subr.bf16.mxu0 0
        %1109 = vmatpush1.bf16.msra.mxu0 %v1020
        %1110 = vmatprep.subr.bf16.mxu0 0
        %1111 = vmatpush1.bf16.msra.mxu0 %v1023
        %1112 = vmatprep.subr.bf16.mxu0 0
        %1113 = vmatpush1.bf16.msra.mxu0 %v1026
        %1114 = vmatprep.subr.bf16.mxu0 0
        %1115 = vmatpush1.bf16.msra.mxu0 %v1029
        %1116 = vmatprep.subr.bf16.mxu0 0
        %1117 = vmatpush1.bf16.msra.mxu0 %v1032
        %1118 = vmatprep.subr.bf16.mxu0 0
        %1119 = vmatpush1.bf16.msra.mxu0 %v1035
        %1120 = vmatprep.subr.bf16.mxu0 0
        %1121 = vmatpush1.bf16.msra.mxu0 %v1038
        %1122 = vmatprep.subr.bf16.mxu0 0
        %1123 = vmatpush1.bf16.msra.mxu0 0
        %1124 = vmatprep.subr.bf16.mxu0 0
        %1125 = vmatpush1.bf16.msra.mxu0 0
        %1126 = vmatprep.subr.bf16.mxu0 0
        %1127 = vmatpush1.bf16.msra.mxu0 0
        %1128 = vmatprep.subr.bf16.mxu0 0
        %1129 = vmatpush1.bf16.msra.mxu0 0
        %1130 = vmatprep.subr.bf16.mxu0 0
        %1131 = vmatpush1.bf16.msra.mxu0 0
        %1132 = vmatprep.subr.bf16.mxu0 0
        %1133 = vmatpush1.bf16.msra.mxu0 0
        %1134 = vmatprep.subr.bf16.mxu0 0
        %1135 = vmatpush1.bf16.msra.mxu0 0
        %1136 = vmatprep.subr.bf16.mxu0 0
        %1137 = vmatpush1.bf16.msra.mxu0 0
        %1138 = vmatprep.mubr.bf16.mxu0 0
        %1139 = vmatmul.mubr.bf16.gmra.mrb[0].mxu0 %v885
        %v1140 = vpop.f32.mrb[0].mxu0
        %v1141 = vadd.f32 %v931, %v1140
        %v1142 = vpop.f32.mrb[0].mxu0
        %v1143 = vpop.f32.mrb[0].mxu0
        %v1144 = vadd.f32 %v931, %v1143
        %v1145 = vpop.f32.mrb[0].mxu0
        %1146 = vdwg.mxu0
        %v1147 = vpack.c.bf16 %v1102, %v1098
        %v1148 = vpack.c.bf16 %v1104, %v1100
        %v1149 = vpack.c.bf16 %v1144, %v1141
        %v1150 = vld [vmem:[#allocation5] sm:$0x1]
        %v1151 = vlaneseq
        %v1152 = vshrl.u32 %v1151, 7
        %v1153 = vsub.s32 0, %v1152
        %v1154 = vrot.slane %v1150, %v1153
        %vm1155 = vcmask 261120
        %v1157 = vsel %vm1155, %v1147, 0
        %v1160 = vsel %vm1155, %v1148, 0
        %1162 = vmatprep.subr.bf16.mxu0 0
        %1163 = vmatpush1.bf16.xpose.msra.mxu0 %v1160
        %1164 = vmatprep.subr.bf16.mxu0 0
        %1165 = vmatpush1.bf16.xpose.msra.mxu0 0
        %1166 = vmatprep.subr.bf16.mxu0 0
        %1167 = vmatpush1.bf16.xpose.msra.mxu0 0
        %1168 = vmatprep.subr.bf16.mxu0 0
        %1169 = vmatpush1.bf16.xpose.msra.mxu0 0
        %1170 = vmatprep.subr.bf16.mxu0 0
        %1171 = vmatpush1.bf16.xpose.msra.mxu0 0
        %1172 = vmatprep.subr.bf16.mxu0 0
        %1173 = vmatpush1.bf16.xpose.msra.mxu0 0
        %1174 = vmatprep.subr.bf16.mxu0 0
        %1175 = vmatpush1.bf16.xpose.msra.mxu0 0
        %1176 = vmatprep.subr.bf16.mxu0 0
        %1177 = vmatpush1.bf16.xpose.msra.mxu0 0
        %1178 = vmatprep.subr.bf16.mxu0 0
        %1179 = vmatpush1.bf16.xpose.msra.mxu0 0
        %1180 = vmatprep.subr.bf16.mxu0 0
        %1181 = vmatpush1.bf16.xpose.msra.mxu0 0
        %1182 = vmatprep.subr.bf16.mxu0 0
        %1183 = vmatpush1.bf16.xpose.msra.mxu0 0
        %1184 = vmatprep.subr.bf16.mxu0 0
        %1185 = vmatpush1.bf16.xpose.msra.mxu0 0
        %1186 = vmatprep.subr.bf16.mxu0 0
        %1187 = vmatpush1.bf16.xpose.msra.mxu0 0
        %1188 = vmatprep.subr.bf16.mxu0 0
        %1189 = vmatpush1.bf16.xpose.msra.mxu0 0
        %1190 = vmatprep.subr.bf16.mxu0 0
        %1191 = vmatpush1.bf16.xpose.msra.mxu0 0
        %1192 = vmatprep.subr.bf16.mxu0 0
        %1193 = vmatpush1.bf16.xpose.msra.mxu0 0
        %1194 = vmatprep.mubr.bf16.mxu0 0
        %1195 = vmatmul.mubr.bf16.gmra.mrb[0].mxu0 %v1157
        %v1196 = vpop.f32.mrb[0].mxu0
        %v1197 = vadd.f32 %v1154, %v1196
        %v1198 = vpop.f32.mrb[0].mxu0
        %v1199 = vpop.f32.mrb[0].mxu0
        %v1200 = vpop.f32.mrb[0].mxu0
        %1201 = vdwg.mxu0
        %vm1202 = vcmask 64512
        %v1203 = vsel %vm1202, %v1197, -inf
        %1204 = vmax.xlane.f32.xlu0 %v1203
        %v1205 = vpop.xlane.xlu0 %1204
        %v1206 = vsub.f32 %v1197, %v1205
        %v1207 = vmul.f32 %v1206, 1.442695
        %v1208 = vpow.pop %v1207
        %v1209 = vsel %vm1202, %v1208, 0.0
        %1210 = vadd.xlane.f32.xlu0 %v1209
        %v1211 = vpop.xlane.xlu0 %1210
        %v1212 = vrcp.pop %v1211
        %v1213 = vmul.f32 %v1208, %v1212
        %v1214 = vpack.c.bf16 %v1213, %v1213
        %v1216 = vsel %vm1202, %v1214, 0
        %vm1218 = vcmask 1043456
        %v1220 = vsel %vm1218, %v1149, 0
        %1222 = vmatprep.subr.bf16.mxu0 0
        %1223 = vmatpush1.bf16.msra.mxu0 %v1220
        %1224 = vmatprep.subr.bf16.mxu0 0
        %1225 = vmatpush1.bf16.msra.mxu0 0
        %1226 = vmatprep.subr.bf16.mxu0 0
        %1227 = vmatpush1.bf16.msra.mxu0 0
        %1228 = vmatprep.subr.bf16.mxu0 0
        %1229 = vmatpush1.bf16.msra.mxu0 0
        %1230 = vmatprep.subr.bf16.mxu0 0
        %1231 = vmatpush1.bf16.msra.mxu0 0
        %1232 = vmatprep.subr.bf16.mxu0 0
        %1233 = vmatpush1.bf16.msra.mxu0 0
        %1234 = vmatprep.subr.bf16.mxu0 0
        %1235 = vmatpush1.bf16.msra.mxu0 0
        %1236 = vmatprep.subr.bf16.mxu0 0
        %1237 = vmatpush1.bf16.msra.mxu0 0
        %1238 = vmatprep.subr.bf16.mxu0 0
        %1239 = vmatpush1.bf16.msra.mxu0 0
        %1240 = vmatprep.subr.bf16.mxu0 0
        %1241 = vmatpush1.bf16.msra.mxu0 0
        %1242 = vmatprep.subr.bf16.mxu0 0
        %1243 = vmatpush1.bf16.msra.mxu0 0
        %1244 = vmatprep.subr.bf16.mxu0 0
        %1245 = vmatpush1.bf16.msra.mxu0 0
        %1246 = vmatprep.subr.bf16.mxu0 0
        %1247 = vmatpush1.bf16.msra.mxu0 0
        %1248 = vmatprep.subr.bf16.mxu0 0
        %1249 = vmatpush1.bf16.msra.mxu0 0
        %1250 = vmatprep.subr.bf16.mxu0 0
        %1251 = vmatpush1.bf16.msra.mxu0 0
        %1252 = vmatprep.subr.bf16.mxu0 0
        %1253 = vmatpush1.bf16.msra.mxu0 0
        %1254 = vmatprep.mubr.bf16.mxu0 0
        %1255 = vmatmul.mubr.bf16.gmra.mrb[0].mxu0 %v1216
        %v1256 = vpop.f32.mrb[0].mxu0
        %v1257 = vadd.f32 0.0, %v1256
        %v1258 = vpop.f32.mrb[0].mxu0
        %v1259 = vpop.f32.mrb[0].mxu0
        %v1260 = vpop.f32.mrb[0].mxu0
        %1261 = vdwg.mxu0
        %1263 = vrot.lane.b32.xlu0 %v1147, 96
        %v1264 = vpop.permute.xlu0 %1263
        %1266 = vrot.lane.b32.xlu0 %v1148, 96
        %v1267 = vpop.permute.xlu0 %1266
        %v1269 = vsel %vm1155, %v1264, 0
        %v1272 = vsel %vm1155, %v1267, 0
        %1274 = vmatprep.subr.bf16.mxu0 0
        %1275 = vmatpush1.bf16.xpose.msra.mxu0 %v1272
        %1276 = vmatprep.subr.bf16.mxu0 0
        %1277 = vmatpush1.bf16.xpose.msra.mxu0 0
        %1278 = vmatprep.subr.bf16.mxu0 0
        %1279 = vmatpush1.bf16.xpose.msra.mxu0 0
        %1280 = vmatprep.subr.bf16.mxu0 0
        %1281 = vmatpush1.bf16.xpose.msra.mxu0 0
        %1282 = vmatprep.subr.bf16.mxu0 0
        %1283 = vmatpush1.bf16.xpose.msra.mxu0 0
        %1284 = vmatprep.subr.bf16.mxu0 0
        %1285 = vmatpush1.bf16.xpose.msra.mxu0 0
        %1286 = vmatprep.subr.bf16.mxu0 0
        %1287 = vmatpush1.bf16.xpose.msra.mxu0 0
        %1288 = vmatprep.subr.bf16.mxu0 0
        %1289 = vmatpush1.bf16.xpose.msra.mxu0 0
        %1290 = vmatprep.subr.bf16.mxu0 0
        %1291 = vmatpush1.bf16.xpose.msra.mxu0 0
        %1292 = vmatprep.subr.bf16.mxu0 0
        %1293 = vmatpush1.bf16.xpose.msra.mxu0 0
        %1294 = vmatprep.subr.bf16.mxu0 0
        %1295 = vmatpush1.bf16.xpose.msra.mxu0 0
        %1296 = vmatprep.subr.bf16.mxu0 0
        %1297 = vmatpush1.bf16.xpose.msra.mxu0 0
        %1298 = vmatprep.subr.bf16.mxu0 0
        %1299 = vmatpush1.bf16.xpose.msra.mxu0 0
        %1300 = vmatprep.subr.bf16.mxu0 0
        %1301 = vmatpush1.bf16.xpose.msra.mxu0 0
        %1302 = vmatprep.subr.bf16.mxu0 0
        %1303 = vmatpush1.bf16.xpose.msra.mxu0 0
        %1304 = vmatprep.subr.bf16.mxu0 0
        %1305 = vmatpush1.bf16.xpose.msra.mxu0 0
        %1306 = vmatprep.mubr.bf16.mxu0 0
        %1307 = vmatmul.mubr.bf16.gmra.mrb[0].mxu0 %v1269
        %v1308 = vpop.f32.mrb[0].mxu0
        %v1309 = vadd.f32 %v1154, %v1308
        %v1310 = vpop.f32.mrb[0].mxu0
        %v1311 = vpop.f32.mrb[0].mxu0
        %v1312 = vpop.f32.mrb[0].mxu0
        %1313 = vdwg.mxu0
        %v1314 = vsel %vm1202, %v1309, -inf
        %1315 = vmax.xlane.f32.xlu0 %v1314
        %v1316 = vpop.xlane.xlu0 %1315
        %v1317 = vsub.f32 %v1309, %v1316
        %v1318 = vmul.f32 %v1317, 1.442695
        %v1319 = vpow.pop %v1318
        %v1320 = vsel %vm1202, %v1319, 0.0
        %1321 = vadd.xlane.f32.xlu0 %v1320
        %v1322 = vpop.xlane.xlu0 %1321
        %v1323 = vrcp.pop %v1322
        %v1324 = vmul.f32 %v1319, %v1323
        %v1325 = vpack.c.bf16 %v1324, %v1324
        %1327 = vrot.lane.b32.xlu0 %v1149, 96
        %v1328 = vpop.permute.xlu0 %1327
        %v1330 = vsel %vm1202, %v1325, 0
        %v1333 = vsel %vm1218, %v1328, 0
        %1335 = vmatprep.subr.bf16.mxu0 0
        %1336 = vmatpush1.bf16.msra.mxu0 %v1333
        %1337 = vmatprep.subr.bf16.mxu0 0
        %1338 = vmatpush1.bf16.msra.mxu0 0
        %1339 = vmatprep.subr.bf16.mxu0 0
        %1340 = vmatpush1.bf16.msra.mxu0 0
        %1341 = vmatprep.subr.bf16.mxu0 0
        %1342 = vmatpush1.bf16.msra.mxu0 0
        %1343 = vmatprep.subr.bf16.mxu0 0
        %1344 = vmatpush1.bf16.msra.mxu0 0
        %1345 = vmatprep.subr.bf16.mxu0 0
        %1346 = vmatpush1.bf16.msra.mxu0 0
        %1347 = vmatprep.subr.bf16.mxu0 0
        %1348 = vmatpush1.bf16.msra.mxu0 0
        %1349 = vmatprep.subr.bf16.mxu0 0
        %1350 = vmatpush1.bf16.msra.mxu0 0
        %1351 = vmatprep.subr.bf16.mxu0 0
        %1352 = vmatpush1.bf16.msra.mxu0 0
        %1353 = vmatprep.subr.bf16.mxu0 0
        %1354 = vmatpush1.bf16.msra.mxu0 0
        %1355 = vmatprep.subr.bf16.mxu0 0
        %1356 = vmatpush1.bf16.msra.mxu0 0
        %1357 = vmatprep.subr.bf16.mxu0 0
        %1358 = vmatpush1.bf16.msra.mxu0 0
        %1359 = vmatprep.subr.bf16.mxu0 0
        %1360 = vmatpush1.bf16.msra.mxu0 0
        %1361 = vmatprep.subr.bf16.mxu0 0
        %1362 = vmatpush1.bf16.msra.mxu0 0
        %1363 = vmatprep.subr.bf16.mxu0 0
        %1364 = vmatpush1.bf16.msra.mxu0 0
        %1365 = vmatprep.subr.bf16.mxu0 0
        %1366 = vmatpush1.bf16.msra.mxu0 0
        %1367 = vmatprep.mubr.bf16.mxu0 0
        %1368 = vmatmul.mubr.bf16.gmra.mrb[0].mxu0 %v1330
        %v1369 = vpop.f32.mrb[0].mxu0
        %v1370 = vadd.f32 0.0, %v1369
        %v1371 = vpop.f32.mrb[0].mxu0
        %v1372 = vpop.f32.mrb[0].mxu0
        %v1373 = vpop.f32.mrb[0].mxu0
        %1374 = vdwg.mxu0
        %1375 = vrot.lane.b32.xlu0 %v1147, 64
        %v1376 = vpop.permute.xlu0 %1375
        %1377 = vrot.lane.b32.xlu0 %v1148, 64
        %v1378 = vpop.permute.xlu0 %1377
        %v1380 = vsel %vm1155, %v1376, 0
        %v1383 = vsel %vm1155, %v1378, 0
        %1385 = vmatprep.subr.bf16.mxu0 0
        %1386 = vmatpush1.bf16.xpose.msra.mxu0 %v1383
        %1387 = vmatprep.subr.bf16.mxu0 0
        %1388 = vmatpush1.bf16.xpose.msra.mxu0 0
        %1389 = vmatprep.subr.bf16.mxu0 0
        %1390 = vmatpush1.bf16.xpose.msra.mxu0 0
        %1391 = vmatprep.subr.bf16.mxu0 0
        %1392 = vmatpush1.bf16.xpose.msra.mxu0 0
        %1393 = vmatprep.subr.bf16.mxu0 0
        %1394 = vmatpush1.bf16.xpose.msra.mxu0 0
        %1395 = vmatprep.subr.bf16.mxu0 0
        %1396 = vmatpush1.bf16.xpose.msra.mxu0 0
        %1397 = vmatprep.subr.bf16.mxu0 0
        %1398 = vmatpush1.bf16.xpose.msra.mxu0 0
        %1399 = vmatprep.subr.bf16.mxu0 0
        %1400 = vmatpush1.bf16.xpose.msra.mxu0 0
        %1401 = vmatprep.subr.bf16.mxu0 0
        %1402 = vmatpush1.bf16.xpose.msra.mxu0 0
        %1403 = vmatprep.subr.bf16.mxu0 0
        %1404 = vmatpush1.bf16.xpose.msra.mxu0 0
        %1405 = vmatprep.subr.bf16.mxu0 0
        %1406 = vmatpush1.bf16.xpose.msra.mxu0 0
        %1407 = vmatprep.subr.bf16.mxu0 0
        %1408 = vmatpush1.bf16.xpose.msra.mxu0 0
        %1409 = vmatprep.subr.bf16.mxu0 0
        %1410 = vmatpush1.bf16.xpose.msra.mxu0 0
        %1411 = vmatprep.subr.bf16.mxu0 0
        %1412 = vmatpush1.bf16.xpose.msra.mxu0 0
        %1413 = vmatprep.subr.bf16.mxu0 0
        %1414 = vmatpush1.bf16.xpose.msra.mxu0 0
        %1415 = vmatprep.subr.bf16.mxu0 0
        %1416 = vmatpush1.bf16.xpose.msra.mxu0 0
        %1417 = vmatprep.mubr.bf16.mxu0 0
        %1418 = vmatmul.mubr.bf16.gmra.mrb[0].mxu0 %v1380
        %v1419 = vpop.f32.mrb[0].mxu0
        %v1420 = vadd.f32 %v1154, %v1419
        %v1421 = vpop.f32.mrb[0].mxu0
        %v1422 = vpop.f32.mrb[0].mxu0
        %v1423 = vpop.f32.mrb[0].mxu0
        %1424 = vdwg.mxu0
        %v1425 = vsel %vm1202, %v1420, -inf
        %1426 = vmax.xlane.f32.xlu0 %v1425
        %v1427 = vpop.xlane.xlu0 %1426
        %v1428 = vsub.f32 %v1420, %v1427
        %v1429 = vmul.f32 %v1428, 1.442695
        %v1430 = vpow.pop %v1429
        %v1431 = vsel %vm1202, %v1430, 0.0
        %1432 = vadd.xlane.f32.xlu0 %v1431
        %v1433 = vpop.xlane.xlu0 %1432
        %v1434 = vrcp.pop %v1433
        %v1435 = vmul.f32 %v1430, %v1434
        %v1436 = vpack.c.bf16 %v1435, %v1435
        %1437 = vrot.lane.b32.xlu0 %v1149, 64
        %v1438 = vpop.permute.xlu0 %1437
        %v1440 = vsel %vm1202, %v1436, 0
        %v1443 = vsel %vm1218, %v1438, 0
        %1445 = vmatprep.subr.bf16.mxu0 0
        %1446 = vmatpush1.bf16.msra.mxu0 %v1443
        %1447 = vmatprep.subr.bf16.mxu0 0
        %1448 = vmatpush1.bf16.msra.mxu0 0
        %1449 = vmatprep.subr.bf16.mxu0 0
        %1450 = vmatpush1.bf16.msra.mxu0 0
        %1451 = vmatprep.subr.bf16.mxu0 0
        %1452 = vmatpush1.bf16.msra.mxu0 0
        %1453 = vmatprep.subr.bf16.mxu0 0
        %1454 = vmatpush1.bf16.msra.mxu0 0
        %1455 = vmatprep.subr.bf16.mxu0 0
        %1456 = vmatpush1.bf16.msra.mxu0 0
        %1457 = vmatprep.subr.bf16.mxu0 0
        %1458 = vmatpush1.bf16.msra.mxu0 0
        %1459 = vmatprep.subr.bf16.mxu0 0
        %1460 = vmatpush1.bf16.msra.mxu0 0
        %1461 = vmatprep.subr.bf16.mxu0 0
        %1462 = vmatpush1.bf16.msra.mxu0 0
        %1463 = vmatprep.subr.bf16.mxu0 0
        %1464 = vmatpush1.bf16.msra.mxu0 0
        %1465 = vmatprep.subr.bf16.mxu0 0
        %1466 = vmatpush1.bf16.msra.mxu0 0
        %1467 = vmatprep.subr.bf16.mxu0 0
        %1468 = vmatpush1.bf16.msra.mxu0 0
        %1469 = vmatprep.subr.bf16.mxu0 0
        %1470 = vmatpush1.bf16.msra.mxu0 0
        %1471 = vmatprep.subr.bf16.mxu0 0
        %1472 = vmatpush1.bf16.msra.mxu0 0
        %1473 = vmatprep.subr.bf16.mxu0 0
        %1474 = vmatpush1.bf16.msra.mxu0 0
        %1475 = vmatprep.subr.bf16.mxu0 0
        %1476 = vmatpush1.bf16.msra.mxu0 0
        %1477 = vmatprep.mubr.bf16.mxu0 0
        %1478 = vmatmul.mubr.bf16.gmra.mrb[0].mxu0 %v1440
        %v1479 = vpop.f32.mrb[0].mxu0
        %v1480 = vadd.f32 0.0, %v1479
        %v1481 = vpop.f32.mrb[0].mxu0
        %v1482 = vpop.f32.mrb[0].mxu0
        %v1483 = vpop.f32.mrb[0].mxu0
        %1484 = vdwg.mxu0
        %1485 = vrot.lane.b32.xlu0 %v1147, 32
        %v1486 = vpop.permute.xlu0 %1485
        %1487 = vrot.lane.b32.xlu0 %v1148, 32
        %v1488 = vpop.permute.xlu0 %1487
        %v1490 = vsel %vm1155, %v1486, 0
        %v1493 = vsel %vm1155, %v1488, 0
        %1495 = vmatprep.subr.bf16.mxu0 0
        %1496 = vmatpush1.bf16.xpose.msra.mxu0 %v1493
        %1497 = vmatprep.subr.bf16.mxu0 0
        %1498 = vmatpush1.bf16.xpose.msra.mxu0 0
        %1499 = vmatprep.subr.bf16.mxu0 0
        %1500 = vmatpush1.bf16.xpose.msra.mxu0 0
        %1501 = vmatprep.subr.bf16.mxu0 0
        %1502 = vmatpush1.bf16.xpose.msra.mxu0 0
        %1503 = vmatprep.subr.bf16.mxu0 0
        %1504 = vmatpush1.bf16.xpose.msra.mxu0 0
        %1505 = vmatprep.subr.bf16.mxu0 0
        %1506 = vmatpush1.bf16.xpose.msra.mxu0 0
        %1507 = vmatprep.subr.bf16.mxu0 0
        %1508 = vmatpush1.bf16.xpose.msra.mxu0 0
        %1509 = vmatprep.subr.bf16.mxu0 0
        %1510 = vmatpush1.bf16.xpose.msra.mxu0 0
        %1511 = vmatprep.subr.bf16.mxu0 0
        %1512 = vmatpush1.bf16.xpose.msra.mxu0 0
        %1513 = vmatprep.subr.bf16.mxu0 0
        %1514 = vmatpush1.bf16.xpose.msra.mxu0 0
        %1515 = vmatprep.subr.bf16.mxu0 0
        %1516 = vmatpush1.bf16.xpose.msra.mxu0 0
        %1517 = vmatprep.subr.bf16.mxu0 0
        %1518 = vmatpush1.bf16.xpose.msra.mxu0 0
        %1519 = vmatprep.subr.bf16.mxu0 0
        %1520 = vmatpush1.bf16.xpose.msra.mxu0 0
        %1521 = vmatprep.subr.bf16.mxu0 0
        %1522 = vmatpush1.bf16.xpose.msra.mxu0 0
        %1523 = vmatprep.subr.bf16.mxu0 0
        %1524 = vmatpush1.bf16.xpose.msra.mxu0 0
        %1525 = vmatprep.subr.bf16.mxu0 0
        %1526 = vmatpush1.bf16.xpose.msra.mxu0 0
        %1527 = vmatprep.mubr.bf16.mxu0 0
        %1528 = vmatmul.mubr.bf16.gmra.mrb[0].mxu0 %v1490
        %v1529 = vpop.f32.mrb[0].mxu0
        %v1530 = vadd.f32 %v1154, %v1529
        %v1531 = vpop.f32.mrb[0].mxu0
        %v1532 = vpop.f32.mrb[0].mxu0
        %v1533 = vpop.f32.mrb[0].mxu0
        %1534 = vdwg.mxu0
        %v1535 = vsel %vm1202, %v1530, -inf
        %1536 = vmax.xlane.f32.xlu0 %v1535
        %v1537 = vpop.xlane.xlu0 %1536
        %v1538 = vsub.f32 %v1530, %v1537
        %v1539 = vmul.f32 %v1538, 1.442695
        %v1540 = vpow.pop %v1539
        %v1541 = vsel %vm1202, %v1540, 0.0
        %1542 = vadd.xlane.f32.xlu0 %v1541
        %v1543 = vpop.xlane.xlu0 %1542
        %v1544 = vrcp.pop %v1543
        %v1545 = vmul.f32 %v1540, %v1544
        %v1546 = vpack.c.bf16 %v1545, %v1545
        %1547 = vrot.lane.b32.xlu0 %v1149, 32
        %v1548 = vpop.permute.xlu0 %1547
        %v1550 = vsel %vm1202, %v1546, 0
        %v1553 = vsel %vm1218, %v1548, 0
        %1555 = vmatprep.subr.bf16.mxu0 0
        %1556 = vmatpush1.bf16.msra.mxu0 %v1553
        %1557 = vmatprep.subr.bf16.mxu0 0
        %1558 = vmatpush1.bf16.msra.mxu0 0
        %1559 = vmatprep.subr.bf16.mxu0 0
        %1560 = vmatpush1.bf16.msra.mxu0 0
        %1561 = vmatprep.subr.bf16.mxu0 0
        %1562 = vmatpush1.bf16.msra.mxu0 0
        %1563 = vmatprep.subr.bf16.mxu0 0
        %1564 = vmatpush1.bf16.msra.mxu0 0
        %1565 = vmatprep.subr.bf16.mxu0 0
        %1566 = vmatpush1.bf16.msra.mxu0 0
        %1567 = vmatprep.subr.bf16.mxu0 0
        %1568 = vmatpush1.bf16.msra.mxu0 0
        %1569 = vmatprep.subr.bf16.mxu0 0
        %1570 = vmatpush1.bf16.msra.mxu0 0
        %1571 = vmatprep.subr.bf16.mxu0 0
        %1572 = vmatpush1.bf16.msra.mxu0 0
        %1573 = vmatprep.subr.bf16.mxu0 0
        %1574 = vmatpush1.bf16.msra.mxu0 0
        %1575 = vmatprep.subr.bf16.mxu0 0
        %1576 = vmatpush1.bf16.msra.mxu0 0
        %1577 = vmatprep.subr.bf16.mxu0 0
        %1578 = vmatpush1.bf16.msra.mxu0 0
        %1579 = vmatprep.subr.bf16.mxu0 0
        %1580 = vmatpush1.bf16.msra.mxu0 0
        %1581 = vmatprep.subr.bf16.mxu0 0
        %1582 = vmatpush1.bf16.msra.mxu0 0
        %1583 = vmatprep.subr.bf16.mxu0 0
        %1584 = vmatpush1.bf16.msra.mxu0 0
        %1585 = vmatprep.subr.bf16.mxu0 0
        %1586 = vmatpush1.bf16.msra.mxu0 0
        %1587 = vmatprep.mubr.bf16.mxu0 0
        %1588 = vmatmul.mubr.bf16.gmra.mrb[0].mxu0 %v1550
        %v1589 = vpop.f32.mrb[0].mxu0
        %v1590 = vadd.f32 0.0, %v1589
        %v1591 = vpop.f32.mrb[0].mxu0
        %v1592 = vpop.f32.mrb[0].mxu0
        %v1593 = vpop.f32.mrb[0].mxu0
        %1594 = vdwg.mxu0
        %1596 = vrot.lane.b32.xlu0 %v1370, 32
        %v1597 = vpop.permute.xlu0 %1596
        %1600 = vrot.lane.b32.xlu0 %v1480, 64
        %v1601 = vpop.permute.xlu0 %1600
        %1604 = vrot.lane.b32.xlu0 %v1590, 96
        %v1605 = vpop.permute.xlu0 %1604
        %v1607 = vsel %vm1155, %v1257, %v1597
        %vm1608 = vcmask 523264
        %v1609 = vsel %vm1608, %v1607, %v1601
        %vm1610 = vcmask 785408
        %v1611 = vsel %vm1610, %v1609, %v1605
        %v1612 = vld [vmem:[#allocation5 + $0x1] sm:$0x1]
        %v1613 = vlaneseq
        %v1614 = vshrl.u32 %v1613, 7
        %v1615 = vsub.s32 0, %v1614
        %v1616 = vrot.slane %v1612, %v1615
        %v1617 = vrot.slane %v1147, 4
        %v1618 = vrot.slane %v1148, 4
        %v1620 = vsel %vm1155, %v1617, 0
        %v1623 = vsel %vm1155, %v1618, 0
        %1625 = vmatprep.subr.bf16.mxu0 0
        %1626 = vmatpush1.bf16.xpose.msra.mxu0 %v1623
        %1627 = vmatprep.subr.bf16.mxu0 0
        %1628 = vmatpush1.bf16.xpose.msra.mxu0 0
        %1629 = vmatprep.subr.bf16.mxu0 0
        %1630 = vmatpush1.bf16.xpose.msra.mxu0 0
        %1631 = vmatprep.subr.bf16.mxu0 0
        %1632 = vmatpush1.bf16.xpose.msra.mxu0 0
        %1633 = vmatprep.subr.bf16.mxu0 0
        %1634 = vmatpush1.bf16.xpose.msra.mxu0 0
        %1635 = vmatprep.subr.bf16.mxu0 0
        %1636 = vmatpush1.bf16.xpose.msra.mxu0 0
        %1637 = vmatprep.subr.bf16.mxu0 0
        %1638 = vmatpush1.bf16.xpose.msra.mxu0 0
        %1639 = vmatprep.subr.bf16.mxu0 0
        %1640 = vmatpush1.bf16.xpose.msra.mxu0 0
        %1641 = vmatprep.subr.bf16.mxu0 0
        %1642 = vmatpush1.bf16.xpose.msra.mxu0 0
        %1643 = vmatprep.subr.bf16.mxu0 0
        %1644 = vmatpush1.bf16.xpose.msra.mxu0 0
        %1645 = vmatprep.subr.bf16.mxu0 0
        %1646 = vmatpush1.bf16.xpose.msra.mxu0 0
        %1647 = vmatprep.subr.bf16.mxu0 0
        %1648 = vmatpush1.bf16.xpose.msra.mxu0 0
        %1649 = vmatprep.subr.bf16.mxu0 0
        %1650 = vmatpush1.bf16.xpose.msra.mxu0 0
        %1651 = vmatprep.subr.bf16.mxu0 0
        %1652 = vmatpush1.bf16.xpose.msra.mxu0 0
        %1653 = vmatprep.subr.bf16.mxu0 0
        %1654 = vmatpush1.bf16.xpose.msra.mxu0 0
        %1655 = vmatprep.subr.bf16.mxu0 0
        %1656 = vmatpush1.bf16.xpose.msra.mxu0 0
        %1657 = vmatprep.mubr.bf16.mxu0 0
        %1658 = vmatmul.mubr.bf16.gmra.mrb[0].mxu0 %v1620
        %v1659 = vpop.f32.mrb[0].mxu0
        %v1660 = vadd.f32 %v1616, %v1659
        %v1661 = vpop.f32.mrb[0].mxu0
        %v1662 = vpop.f32.mrb[0].mxu0
        %v1663 = vpop.f32.mrb[0].mxu0
        %1664 = vdwg.mxu0
        %v1665 = vsel %vm1202, %v1660, -inf
        %1666 = vmax.xlane.f32.xlu0 %v1665
        %v1667 = vpop.xlane.xlu0 %1666
        %v1668 = vsub.f32 %v1660, %v1667
        %v1669 = vmul.f32 %v1668, 1.442695
        %v1670 = vpow.pop %v1669
        %v1671 = vsel %vm1202, %v1670, 0.0
        %1672 = vadd.xlane.f32.xlu0 %v1671
        %v1673 = vpop.xlane.xlu0 %1672
        %v1674 = vrcp.pop %v1673
        %v1675 = vmul.f32 %v1670, %v1674
        %v1676 = vpack.c.bf16 %v1675, %v1675
        %v1677 = vrot.slane %v1149, 4
        %v1679 = vsel %vm1202, %v1676, 0
        %v1682 = vsel %vm1218, %v1677, 0
        %1684 = vmatprep.subr.bf16.mxu0 0
        %1685 = vmatpush1.bf16.msra.mxu0 %v1682
        %1686 = vmatprep.subr.bf16.mxu0 0
        %1687 = vmatpush1.bf16.msra.mxu0 0
        %1688 = vmatprep.subr.bf16.mxu0 0
        %1689 = vmatpush1.bf16.msra.mxu0 0
        %1690 = vmatprep.subr.bf16.mxu0 0
        %1691 = vmatpush1.bf16.msra.mxu0 0
        %1692 = vmatprep.subr.bf16.mxu0 0
        %1693 = vmatpush1.bf16.msra.mxu0 0
        %1694 = vmatprep.subr.bf16.mxu0 0
        %1695 = vmatpush1.bf16.msra.mxu0 0
        %1696 = vmatprep.subr.bf16.mxu0 0
        %1697 = vmatpush1.bf16.msra.mxu0 0
        %1698 = vmatprep.subr.bf16.mxu0 0
        %1699 = vmatpush1.bf16.msra.mxu0 0
        %1700 = vmatprep.subr.bf16.mxu0 0
        %1701 = vmatpush1.bf16.msra.mxu0 0
        %1702 = vmatprep.subr.bf16.mxu0 0
        %1703 = vmatpush1.bf16.msra.mxu0 0
        %1704 = vmatprep.subr.bf16.mxu0 0
        %1705 = vmatpush1.bf16.msra.mxu0 0
        %1706 = vmatprep.subr.bf16.mxu0 0
        %1707 = vmatpush1.bf16.msra.mxu0 0
        %1708 = vmatprep.subr.bf16.mxu0 0
        %1709 = vmatpush1.bf16.msra.mxu0 0
        %1710 = vmatprep.subr.bf16.mxu0 0
        %1711 = vmatpush1.bf16.msra.mxu0 0
        %1712 = vmatprep.subr.bf16.mxu0 0
        %1713 = vmatpush1.bf16.msra.mxu0 0
        %1714 = vmatprep.subr.bf16.mxu0 0
        %1715 = vmatpush1.bf16.msra.mxu0 0
        %1716 = vmatprep.mubr.bf16.mxu0 0
        %1717 = vmatmul.mubr.bf16.gmra.mrb[0].mxu0 %v1679
        %v1718 = vpop.f32.mrb[0].mxu0
        %v1719 = vadd.f32 0.0, %v1718
        %v1720 = vpop.f32.mrb[0].mxu0
        %v1721 = vpop.f32.mrb[0].mxu0
        %v1722 = vpop.f32.mrb[0].mxu0
        %1723 = vdwg.mxu0
        %1724 = vrot.lane.b32.xlu0 %v1617, 96
        %v1725 = vpop.permute.xlu0 %1724
        %1726 = vrot.lane.b32.xlu0 %v1618, 96
        %v1727 = vpop.permute.xlu0 %1726
        %v1729 = vsel %vm1155, %v1725, 0
        %v1732 = vsel %vm1155, %v1727, 0
        %1734 = vmatprep.subr.bf16.mxu0 0
        %1735 = vmatpush1.bf16.xpose.msra.mxu0 %v1732
        %1736 = vmatprep.subr.bf16.mxu0 0
        %1737 = vmatpush1.bf16.xpose.msra.mxu0 0
        %1738 = vmatprep.subr.bf16.mxu0 0
        %1739 = vmatpush1.bf16.xpose.msra.mxu0 0
        %1740 = vmatprep.subr.bf16.mxu0 0
        %1741 = vmatpush1.bf16.xpose.msra.mxu0 0
        %1742 = vmatprep.subr.bf16.mxu0 0
        %1743 = vmatpush1.bf16.xpose.msra.mxu0 0
        %1744 = vmatprep.subr.bf16.mxu0 0
        %1745 = vmatpush1.bf16.xpose.msra.mxu0 0
        %1746 = vmatprep.subr.bf16.mxu0 0
        %1747 = vmatpush1.bf16.xpose.msra.mxu0 0
        %1748 = vmatprep.subr.bf16.mxu0 0
        %1749 = vmatpush1.bf16.xpose.msra.mxu0 0
        %1750 = vmatprep.subr.bf16.mxu0 0
        %1751 = vmatpush1.bf16.xpose.msra.mxu0 0
        %1752 = vmatprep.subr.bf16.mxu0 0
        %1753 = vmatpush1.bf16.xpose.msra.mxu0 0
        %1754 = vmatprep.subr.bf16.mxu0 0
        %1755 = vmatpush1.bf16.xpose.msra.mxu0 0
        %1756 = vmatprep.subr.bf16.mxu0 0
        %1757 = vmatpush1.bf16.xpose.msra.mxu0 0
        %1758 = vmatprep.subr.bf16.mxu0 0
        %1759 = vmatpush1.bf16.xpose.msra.mxu0 0
        %1760 = vmatprep.subr.bf16.mxu0 0
        %1761 = vmatpush1.bf16.xpose.msra.mxu0 0
        %1762 = vmatprep.subr.bf16.mxu0 0
        %1763 = vmatpush1.bf16.xpose.msra.mxu0 0
        %1764 = vmatprep.subr.bf16.mxu0 0
        %1765 = vmatpush1.bf16.xpose.msra.mxu0 0
        %1766 = vmatprep.mubr.bf16.mxu0 0
        %1767 = vmatmul.mubr.bf16.gmra.mrb[0].mxu0 %v1729
        %v1768 = vpop.f32.mrb[0].mxu0
        %v1769 = vadd.f32 %v1616, %v1768
        %v1770 = vpop.f32.mrb[0].mxu0
        %v1771 = vpop.f32.mrb[0].mxu0
        %v1772 = vpop.f32.mrb[0].mxu0
        %1773 = vdwg.mxu0
        %v1774 = vsel %vm1202, %v1769, -inf
        %1775 = vmax.xlane.f32.xlu0 %v1774
        %v1776 = vpop.xlane.xlu0 %1775
        %v1777 = vsub.f32 %v1769, %v1776
        %v1778 = vmul.f32 %v1777, 1.442695
        %v1779 = vpow.pop %v1778
        %v1780 = vsel %vm1202, %v1779, 0.0
        %1781 = vadd.xlane.f32.xlu0 %v1780
        %v1782 = vpop.xlane.xlu0 %1781
        %v1783 = vrcp.pop %v1782
        %v1784 = vmul.f32 %v1779, %v1783
        %v1785 = vpack.c.bf16 %v1784, %v1784
        %1786 = vrot.lane.b32.xlu0 %v1677, 96
        %v1787 = vpop.permute.xlu0 %1786
        %v1789 = vsel %vm1202, %v1785, 0
        %v1792 = vsel %vm1218, %v1787, 0
        %1794 = vmatprep.subr.bf16.mxu0 0
        %1795 = vmatpush1.bf16.msra.mxu0 %v1792
        %1796 = vmatprep.subr.bf16.mxu0 0
        %1797 = vmatpush1.bf16.msra.mxu0 0
        %1798 = vmatprep.subr.bf16.mxu0 0
        %1799 = vmatpush1.bf16.msra.mxu0 0
        %1800 = vmatprep.subr.bf16.mxu0 0
        %1801 = vmatpush1.bf16.msra.mxu0 0
        %1802 = vmatprep.subr.bf16.mxu0 0
        %1803 = vmatpush1.bf16.msra.mxu0 0
        %1804 = vmatprep.subr.bf16.mxu0 0
        %1805 = vmatpush1.bf16.msra.mxu0 0
        %1806 = vmatprep.subr.bf16.mxu0 0
        %1807 = vmatpush1.bf16.msra.mxu0 0
        %1808 = vmatprep.subr.bf16.mxu0 0
        %1809 = vmatpush1.bf16.msra.mxu0 0
        %1810 = vmatprep.subr.bf16.mxu0 0
        %1811 = vmatpush1.bf16.msra.mxu0 0
        %1812 = vmatprep.subr.bf16.mxu0 0
        %1813 = vmatpush1.bf16.msra.mxu0 0
        %1814 = vmatprep.subr.bf16.mxu0 0
        %1815 = vmatpush1.bf16.msra.mxu0 0
        %1816 = vmatprep.subr.bf16.mxu0 0
        %1817 = vmatpush1.bf16.msra.mxu0 0
        %1818 = vmatprep.subr.bf16.mxu0 0
        %1819 = vmatpush1.bf16.msra.mxu0 0
        %1820 = vmatprep.subr.bf16.mxu0 0
        %1821 = vmatpush1.bf16.msra.mxu0 0
        %1822 = vmatprep.subr.bf16.mxu0 0
        %1823 = vmatpush1.bf16.msra.mxu0 0
        %1824 = vmatprep.subr.bf16.mxu0 0
        %1825 = vmatpush1.bf16.msra.mxu0 0
        %1826 = vmatprep.mubr.bf16.mxu0 0
        %1827 = vmatmul.mubr.bf16.gmra.mrb[0].mxu0 %v1789
        %v1828 = vpop.f32.mrb[0].mxu0
        %v1829 = vadd.f32 0.0, %v1828
        %v1830 = vpop.f32.mrb[0].mxu0
        %v1831 = vpop.f32.mrb[0].mxu0
        %v1832 = vpop.f32.mrb[0].mxu0
        %1833 = vdwg.mxu0
        %1834 = vrot.lane.b32.xlu0 %v1617, 64
        %v1835 = vpop.permute.xlu0 %1834
        %1836 = vrot.lane.b32.xlu0 %v1618, 64
        %v1837 = vpop.permute.xlu0 %1836
        %v1839 = vsel %vm1155, %v1835, 0
        %v1842 = vsel %vm1155, %v1837, 0
        %1844 = vmatprep.subr.bf16.mxu0 0
        %1845 = vmatpush1.bf16.xpose.msra.mxu0 %v1842
        %1846 = vmatprep.subr.bf16.mxu0 0
        %1847 = vmatpush1.bf16.xpose.msra.mxu0 0
        %1848 = vmatprep.subr.bf16.mxu0 0
        %1849 = vmatpush1.bf16.xpose.msra.mxu0 0
        %1850 = vmatprep.subr.bf16.mxu0 0
        %1851 = vmatpush1.bf16.xpose.msra.mxu0 0
        %1852 = vmatprep.subr.bf16.mxu0 0
        %1853 = vmatpush1.bf16.xpose.msra.mxu0 0
        %1854 = vmatprep.subr.bf16.mxu0 0
        %1855 = vmatpush1.bf16.xpose.msra.mxu0 0
        %1856 = vmatprep.subr.bf16.mxu0 0
        %1857 = vmatpush1.bf16.xpose.msra.mxu0 0
        %1858 = vmatprep.subr.bf16.mxu0 0
        %1859 = vmatpush1.bf16.xpose.msra.mxu0 0
        %1860 = vmatprep.subr.bf16.mxu0 0
        %1861 = vmatpush1.bf16.xpose.msra.mxu0 0
        %1862 = vmatprep.subr.bf16.mxu0 0
        %1863 = vmatpush1.bf16.xpose.msra.mxu0 0
        %1864 = vmatprep.subr.bf16.mxu0 0
        %1865 = vmatpush1.bf16.xpose.msra.mxu0 0
        %1866 = vmatprep.subr.bf16.mxu0 0
        %1867 = vmatpush1.bf16.xpose.msra.mxu0 0
        %1868 = vmatprep.subr.bf16.mxu0 0
        %1869 = vmatpush1.bf16.xpose.msra.mxu0 0
        %1870 = vmatprep.subr.bf16.mxu0 0
        %1871 = vmatpush1.bf16.xpose.msra.mxu0 0
        %1872 = vmatprep.subr.bf16.mxu0 0
        %1873 = vmatpush1.bf16.xpose.msra.mxu0 0
        %1874 = vmatprep.subr.bf16.mxu0 0
        %1875 = vmatpush1.bf16.xpose.msra.mxu0 0
        %1876 = vmatprep.mubr.bf16.mxu0 0
        %1877 = vmatmul.mubr.bf16.gmra.mrb[0].mxu0 %v1839
        %v1878 = vpop.f32.mrb[0].mxu0
        %v1879 = vadd.f32 %v1616, %v1878
        %v1880 = vpop.f32.mrb[0].mxu0
        %v1881 = vpop.f32.mrb[0].mxu0
        %v1882 = vpop.f32.mrb[0].mxu0
        %1883 = vdwg.mxu0
        %v1884 = vsel %vm1202, %v1879, -inf
        %1885 = vmax.xlane.f32.xlu0 %v1884
        %v1886 = vpop.xlane.xlu0 %1885
        %v1887 = vsub.f32 %v1879, %v1886
        %v1888 = vmul.f32 %v1887, 1.442695
        %v1889 = vpow.pop %v1888
        %v1890 = vsel %vm1202, %v1889, 0.0
        %1891 = vadd.xlane.f32.xlu0 %v1890
        %v1892 = vpop.xlane.xlu0 %1891
        %v1893 = vrcp.pop %v1892
        %v1894 = vmul.f32 %v1889, %v1893
        %v1895 = vpack.c.bf16 %v1894, %v1894
        %1896 = vrot.lane.b32.xlu0 %v1677, 64
        %v1897 = vpop.permute.xlu0 %1896
        %v1899 = vsel %vm1202, %v1895, 0
        %v1902 = vsel %vm1218, %v1897, 0
        %1904 = vmatprep.subr.bf16.mxu0 0
        %1905 = vmatpush1.bf16.msra.mxu0 %v1902
        %1906 = vmatprep.subr.bf16.mxu0 0
        %1907 = vmatpush1.bf16.msra.mxu0 0
        %1908 = vmatprep.subr.bf16.mxu0 0
        %1909 = vmatpush1.bf16.msra.mxu0 0
        %1910 = vmatprep.subr.bf16.mxu0 0
        %1911 = vmatpush1.bf16.msra.mxu0 0
        %1912 = vmatprep.subr.bf16.mxu0 0
        %1913 = vmatpush1.bf16.msra.mxu0 0
        %1914 = vmatprep.subr.bf16.mxu0 0
        %1915 = vmatpush1.bf16.msra.mxu0 0
        %1916 = vmatprep.subr.bf16.mxu0 0
        %1917 = vmatpush1.bf16.msra.mxu0 0
        %1918 = vmatprep.subr.bf16.mxu0 0
        %1919 = vmatpush1.bf16.msra.mxu0 0
        %1920 = vmatprep.subr.bf16.mxu0 0
        %1921 = vmatpush1.bf16.msra.mxu0 0
        %1922 = vmatprep.subr.bf16.mxu0 0
        %1923 = vmatpush1.bf16.msra.mxu0 0
        %1924 = vmatprep.subr.bf16.mxu0 0
        %1925 = vmatpush1.bf16.msra.mxu0 0
        %1926 = vmatprep.subr.bf16.mxu0 0
        %1927 = vmatpush1.bf16.msra.mxu0 0
        %1928 = vmatprep.subr.bf16.mxu0 0
        %1929 = vmatpush1.bf16.msra.mxu0 0
        %1930 = vmatprep.subr.bf16.mxu0 0
        %1931 = vmatpush1.bf16.msra.mxu0 0
        %1932 = vmatprep.subr.bf16.mxu0 0
        %1933 = vmatpush1.bf16.msra.mxu0 0
        %1934 = vmatprep.subr.bf16.mxu0 0
        %1935 = vmatpush1.bf16.msra.mxu0 0
        %1936 = vmatprep.mubr.bf16.mxu0 0
        %1937 = vmatmul.mubr.bf16.gmra.mrb[0].mxu0 %v1899
        %v1938 = vpop.f32.mrb[0].mxu0
        %v1939 = vadd.f32 0.0, %v1938
        %v1940 = vpop.f32.mrb[0].mxu0
        %v1941 = vpop.f32.mrb[0].mxu0
        %v1942 = vpop.f32.mrb[0].mxu0
        %1943 = vdwg.mxu0
        %1944 = vrot.lane.b32.xlu0 %v1617, 32
        %v1945 = vpop.permute.xlu0 %1944
        %1946 = vrot.lane.b32.xlu0 %v1618, 32
        %v1947 = vpop.permute.xlu0 %1946
        %v1949 = vsel %vm1155, %v1945, 0
        %v1952 = vsel %vm1155, %v1947, 0
        %1954 = vmatprep.subr.bf16.mxu0 0
        %1955 = vmatpush1.bf16.xpose.msra.mxu0 %v1952
        %1956 = vmatprep.subr.bf16.mxu0 0
        %1957 = vmatpush1.bf16.xpose.msra.mxu0 0
        %1958 = vmatprep.subr.bf16.mxu0 0
        %1959 = vmatpush1.bf16.xpose.msra.mxu0 0
        %1960 = vmatprep.subr.bf16.mxu0 0
        %1961 = vmatpush1.bf16.xpose.msra.mxu0 0
        %1962 = vmatprep.subr.bf16.mxu0 0
        %1963 = vmatpush1.bf16.xpose.msra.mxu0 0
        %1964 = vmatprep.subr.bf16.mxu0 0
        %1965 = vmatpush1.bf16.xpose.msra.mxu0 0
        %1966 = vmatprep.subr.bf16.mxu0 0
        %1967 = vmatpush1.bf16.xpose.msra.mxu0 0
        %1968 = vmatprep.subr.bf16.mxu0 0
        %1969 = vmatpush1.bf16.xpose.msra.mxu0 0
        %1970 = vmatprep.subr.bf16.mxu0 0
        %1971 = vmatpush1.bf16.xpose.msra.mxu0 0
        %1972 = vmatprep.subr.bf16.mxu0 0
        %1973 = vmatpush1.bf16.xpose.msra.mxu0 0
        %1974 = vmatprep.subr.bf16.mxu0 0
        %1975 = vmatpush1.bf16.xpose.msra.mxu0 0
        %1976 = vmatprep.subr.bf16.mxu0 0
        %1977 = vmatpush1.bf16.xpose.msra.mxu0 0
        %1978 = vmatprep.subr.bf16.mxu0 0
        %1979 = vmatpush1.bf16.xpose.msra.mxu0 0
        %1980 = vmatprep.subr.bf16.mxu0 0
        %1981 = vmatpush1.bf16.xpose.msra.mxu0 0
        %1982 = vmatprep.subr.bf16.mxu0 0
        %1983 = vmatpush1.bf16.xpose.msra.mxu0 0
        %1984 = vmatprep.subr.bf16.mxu0 0
        %1985 = vmatpush1.bf16.xpose.msra.mxu0 0
        %1986 = vmatprep.mubr.bf16.mxu0 0
        %1987 = vmatmul.mubr.bf16.gmra.mrb[0].mxu0 %v1949
        %v1988 = vpop.f32.mrb[0].mxu0
        %v1989 = vadd.f32 %v1616, %v1988
        %v1990 = vpop.f32.mrb[0].mxu0
        %v1991 = vpop.f32.mrb[0].mxu0
        %v1992 = vpop.f32.mrb[0].mxu0
        %1993 = vdwg.mxu0
        %v1994 = vsel %vm1202, %v1989, -inf
        %1995 = vmax.xlane.f32.xlu0 %v1994
        %v1996 = vpop.xlane.xlu0 %1995
        %v1997 = vsub.f32 %v1989, %v1996
        %v1998 = vmul.f32 %v1997, 1.442695
        %v1999 = vpow.pop %v1998
        %v2000 = vsel %vm1202, %v1999, 0.0
        %2001 = vadd.xlane.f32.xlu0 %v2000
        %v2002 = vpop.xlane.xlu0 %2001
        %v2003 = vrcp.pop %v2002
        %v2004 = vmul.f32 %v1999, %v2003
        %v2005 = vpack.c.bf16 %v2004, %v2004
        %2006 = vrot.lane.b32.xlu0 %v1677, 32
        %v2007 = vpop.permute.xlu0 %2006
        %v2009 = vsel %vm1202, %v2005, 0
        %v2012 = vsel %vm1218, %v2007, 0
        %2014 = vmatprep.subr.bf16.mxu0 0
        %2015 = vmatpush1.bf16.msra.mxu0 %v2012
        %2016 = vmatprep.subr.bf16.mxu0 0
        %2017 = vmatpush1.bf16.msra.mxu0 0
        %2018 = vmatprep.subr.bf16.mxu0 0
        %2019 = vmatpush1.bf16.msra.mxu0 0
        %2020 = vmatprep.subr.bf16.mxu0 0
        %2021 = vmatpush1.bf16.msra.mxu0 0
        %2022 = vmatprep.subr.bf16.mxu0 0
        %2023 = vmatpush1.bf16.msra.mxu0 0
        %2024 = vmatprep.subr.bf16.mxu0 0
        %2025 = vmatpush1.bf16.msra.mxu0 0
        %2026 = vmatprep.subr.bf16.mxu0 0
        %2027 = vmatpush1.bf16.msra.mxu0 0
        %2028 = vmatprep.subr.bf16.mxu0 0
        %2029 = vmatpush1.bf16.msra.mxu0 0
        %2030 = vmatprep.subr.bf16.mxu0 0
        %2031 = vmatpush1.bf16.msra.mxu0 0
        %2032 = vmatprep.subr.bf16.mxu0 0
        %2033 = vmatpush1.bf16.msra.mxu0 0
        %2034 = vmatprep.subr.bf16.mxu0 0
        %2035 = vmatpush1.bf16.msra.mxu0 0
        %2036 = vmatprep.subr.bf16.mxu0 0
        %2037 = vmatpush1.bf16.msra.mxu0 0
        %2038 = vmatprep.subr.bf16.mxu0 0
        %2039 = vmatpush1.bf16.msra.mxu0 0
        %2040 = vmatprep.subr.bf16.mxu0 0
        %2041 = vmatpush1.bf16.msra.mxu0 0
        %2042 = vmatprep.subr.bf16.mxu0 0
        %2043 = vmatpush1.bf16.msra.mxu0 0
        %2044 = vmatprep.subr.bf16.mxu0 0
        %2045 = vmatpush1.bf16.msra.mxu0 0
        %2046 = vmatprep.mubr.bf16.mxu0 0
        %2047 = vmatmul.mubr.bf16.gmra.mrb[0].mxu0 %v2009
        %v2048 = vpop.f32.mrb[0].mxu0
        %v2049 = vadd.f32 0.0, %v2048
        %v2050 = vpop.f32.mrb[0].mxu0
        %v2051 = vpop.f32.mrb[0].mxu0
        %v2052 = vpop.f32.mrb[0].mxu0
        %2053 = vdwg.mxu0
        %2055 = vrot.lane.b32.xlu0 %v1829, 32
        %v2056 = vpop.permute.xlu0 %2055
        %2059 = vrot.lane.b32.xlu0 %v1939, 64
        %v2060 = vpop.permute.xlu0 %2059
        %2063 = vrot.lane.b32.xlu0 %v2049, 96
        %v2064 = vpop.permute.xlu0 %2063
        %v2066 = vsel %vm1155, %v1719, %v2056
        %v2067 = vsel %vm1608, %v2066, %v2060
        %v2068 = vsel %vm1610, %v2067, %v2064
        %v2069 = vpack.c.bf16 %v2068, %v1611
        %v2070 = vld [vmem:[%s702] sm:$0xf]
        %v2071 = vld [vmem:[%s702 + $0x4] sm:$0xf]
        %v2072 = vld [vmem:[%s702 + $0x8] sm:$0xf]
        %v2073 = vld [vmem:[%s702 + $0xc] sm:$0xf]
        %v2074 = vld [vmem:[%s702 + $0x10] sm:$0xf]
        %v2075 = vld [vmem:[%s702 + $0x14] sm:$0xf]
        %v2076 = vld [vmem:[%s702 + $0x18] sm:$0xf]
        %v2077 = vld [vmem:[%s702 + $0x1c] sm:$0xf]
        %v2078 = vld [vmem:[%s702 + $0x20] sm:$0xf]
        %v2079 = vld [vmem:[%s702 + $0x24] sm:$0xf]
        %v2080 = vld [vmem:[%s702 + $0x28] sm:$0xf]
        %v2081 = vld [vmem:[%s702 + $0x2c] sm:$0xf]
        %v2082 = vld [vmem:[%s702 + $0x30] sm:$0xf]
        %v2083 = vld [vmem:[%s702 + $0x34] sm:$0xf]
        %v2084 = vld [vmem:[%s702 + $0x38] sm:$0xf]
        %v2085 = vld [vmem:[%s702 + $0x3c] sm:$0xf]
        %v2086 = vld [vmem:[%s813] sm:$0x1]
        %v2088 = vlaneseq
        %v2089 = vshrl.u32 %v2088, 7
        %v2090 = vsub.s32 0, %v2089
        %v2091 = vrot.slane %v2086, %v2090
        %v2109 = vunpack.c.l.b16 %v2070
        %v2110 = vunpack.c.l.b16 %v2071
        %v2111 = vunpack.c.l.b16 %v2072
        %v2112 = vunpack.c.l.b16 %v2073
        %v2113 = vunpack.c.l.b16 %v2074
        %v2114 = vunpack.c.l.b16 %v2075
        %v2115 = vunpack.c.l.b16 %v2076
        %v2116 = vunpack.c.l.b16 %v2077
        %v2117 = vunpack.c.l.b16 %v2078
        %v2118 = vunpack.c.l.b16 %v2079
        %v2119 = vunpack.c.l.b16 %v2080
        %v2120 = vunpack.c.l.b16 %v2081
        %v2121 = vunpack.c.l.b16 %v2082
        %v2122 = vunpack.c.l.b16 %v2083
        %v2123 = vunpack.c.l.b16 %v2084
        %v2124 = vunpack.c.l.b16 %v2085
        %v2125 = vpack.c.b16 %v2110, %v2109
        %v2126 = vpack.c.b16 %v2112, %v2111
        %v2127 = vpack.c.b16 %v2114, %v2113
        %v2128 = vpack.c.b16 %v2116, %v2115
        %v2129 = vpack.c.b16 %v2118, %v2117
        %v2130 = vpack.c.b16 %v2120, %v2119
        %v2131 = vpack.c.b16 %v2122, %v2121
        %v2132 = vpack.c.b16 %v2124, %v2123
        %2141 = vmatprep.subr.bf16.mxu0 0
        %2142 = vmatpush1.bf16.msra.mxu0 %v2125
        %2143 = vmatprep.subr.bf16.mxu0 0
        %2144 = vmatpush1.bf16.msra.mxu0 %v2126
        %2145 = vmatprep.subr.bf16.mxu0 0
        %2146 = vmatpush1.bf16.msra.mxu0 %v2127
        %2147 = vmatprep.subr.bf16.mxu0 0
        %2148 = vmatpush1.bf16.msra.mxu0 %v2128
        %2149 = vmatprep.subr.bf16.mxu0 0
        %2150 = vmatpush1.bf16.msra.mxu0 %v2129
        %2151 = vmatprep.subr.bf16.mxu0 0
        %2152 = vmatpush1.bf16.msra.mxu0 %v2130
        %2153 = vmatprep.subr.bf16.mxu0 0
        %2154 = vmatpush1.bf16.msra.mxu0 %v2131
        %2155 = vmatprep.subr.bf16.mxu0 0
        %2156 = vmatpush1.bf16.msra.mxu0 %v2132
        %2157 = vmatprep.subr.bf16.mxu0 0
        %2158 = vmatpush1.bf16.msra.mxu0 0
        %2159 = vmatprep.subr.bf16.mxu0 0
        %2160 = vmatpush1.bf16.msra.mxu0 0
        %2161 = vmatprep.subr.bf16.mxu0 0
        %2162 = vmatpush1.bf16.msra.mxu0 0
        %2163 = vmatprep.subr.bf16.mxu0 0
        %2164 = vmatpush1.bf16.msra.mxu0 0
        %2165 = vmatprep.subr.bf16.mxu0 0
        %2166 = vmatpush1.bf16.msra.mxu0 0
        %2167 = vmatprep.subr.bf16.mxu0 0
        %2168 = vmatpush1.bf16.msra.mxu0 0
        %2169 = vmatprep.subr.bf16.mxu0 0
        %2170 = vmatpush1.bf16.msra.mxu0 0
        %2171 = vmatprep.subr.bf16.mxu0 0
        %2172 = vmatpush1.bf16.msra.mxu0 0
        %2173 = vmatprep.mubr.bf16.mxu0 0
        %2174 = vmatmul.mubr.bf16.gmra.mrb[0].mxu0 %v2069
        %v2175 = vpop.f32.mrb[0].mxu0
        %v2176 = vadd.f32 %v2091, %v2175
        %v2177 = vpop.f32.mrb[0].mxu0
        %v2178 = vpop.f32.mrb[0].mxu0
        %v2179 = vadd.f32 %v2091, %v2178
        %v2180 = vpop.f32.mrb[0].mxu0
        %2181 = vdwg.mxu0
        %v2182 = vadd.f32 %v2176, %v883
        %v2183 = vadd.f32 %v2179, %v884
        %v2184 = vld [vmem:[%s816] sm:$0x1]
        %v2185 = vld [vmem:[%s819] sm:$0x1]
        %2186 = vadd.xlane.f32.xlu0 %v2182
        %v2187 = vpop.xlane.xlu0 %2186
        %2188 = vadd.xlane.f32.xlu0 %v2183
        %v2189 = vpop.xlane.xlu0 %2188
        %v2190 = vrcp.pop 128.0
        %v2191 = vmul.f32 %v2187, %v2190
        %v2192 = vmul.f32 %v2189, %v2190
        %v2193 = vsub.f32 %v2182, %v2191
        %v2194 = vsub.f32 %v2183, %v2192
        %v2195 = vmul.f32 %v2193, %v2193
        %v2196 = vmul.f32 %v2194, %v2194
        %2197 = vadd.xlane.f32.xlu0 %v2195
        %v2198 = vpop.xlane.xlu0 %2197
        %2199 = vadd.xlane.f32.xlu0 %v2196
        %v2200 = vpop.xlane.xlu0 %2199
        %v2201 = vmul.f32 %v2198, %v2190
        %v2202 = vmul.f32 %v2200, %v2190
        %v2203 = vadd.f32 %v2201, 1e-12
        %v2204 = vadd.f32 %v2202, 1e-12
        %v2205 = vrsqrt.pop %v2203
        %v2206 = vrsqrt.pop %v2204
        %v2207 = vmul.f32 %v2193, %v2205
        %v2208 = vmul.f32 %v2194, %v2206
        %v2210 = vlaneseq
        %v2211 = vshrl.u32 %v2210, 7
        %v2212 = vsub.s32 0, %v2211
        %v2213 = vrot.slane %v2184, %v2212
        %v2215 = vmul.f32 %v2207, %v2213
        %v2216 = vmul.f32 %v2208, %v2213
        %v2218 = vlaneseq
        %v2219 = vshrl.u32 %v2218, 7
        %v2220 = vsub.s32 0, %v2219
        %v2221 = vrot.slane %v2185, %v2220
        %v2223 = vadd.f32 %v2215, %v2221
        %v2224 = vadd.f32 %v2216, %v2221
        %v2225 = vpack.c.bf16 %v2224, %v2223
        %v2226 = vld [vmem:[%s711] sm:$0xff]
        %v2227 = vld [vmem:[%s711 + $0x8] sm:$0xff]
        %v2228 = vld [vmem:[%s711 + $0x10] sm:$0xff]
        %v2229 = vld [vmem:[%s711 + $0x18] sm:$0xff]
        %v2230 = vld [vmem:[%s711 + $0x20] sm:$0xff]
        %v2231 = vld [vmem:[%s711 + $0x28] sm:$0xff]
        %v2232 = vld [vmem:[%s711 + $0x30] sm:$0xff]
        %v2233 = vld [vmem:[%s711 + $0x38] sm:$0xff]
        %v2234 = vld [vmem:[%s711 + $0x40] sm:$0xff]
        %v2235 = vld [vmem:[%s711 + $0x48] sm:$0xff]
        %v2236 = vld [vmem:[%s711 + $0x50] sm:$0xff]
        %v2237 = vld [vmem:[%s711 + $0x58] sm:$0xff]
        %v2238 = vld [vmem:[%s711 + $0x60] sm:$0xff]
        %v2239 = vld [vmem:[%s711 + $0x68] sm:$0xff]
        %v2240 = vld [vmem:[%s711 + $0x70] sm:$0xff]
        %v2241 = vld [vmem:[%s711 + $0x78] sm:$0xff]
        %v2242 = vld [vmem:[%s711 + $0x80] sm:$0xff]
        %v2243 = vld [vmem:[%s711 + $0x88] sm:$0xff]
        %v2244 = vld [vmem:[%s711 + $0x90] sm:$0xff]
        %v2245 = vld [vmem:[%s711 + $0x98] sm:$0xff]
        %v2246 = vld [vmem:[%s711 + $0xa0] sm:$0xff]
        %v2247 = vld [vmem:[%s711 + $0xa8] sm:$0xff]
        %v2248 = vld [vmem:[%s711 + $0xb0] sm:$0xff]
        %v2249 = vld [vmem:[%s711 + $0xb8] sm:$0xff]
        %v2250 = vld [vmem:[%s711 + $0xc0] sm:$0xff]
        %v2251 = vld [vmem:[%s711 + $0xc8] sm:$0xff]
        %v2252 = vld [vmem:[%s711 + $0xd0] sm:$0xff]
        %v2253 = vld [vmem:[%s711 + $0xd8] sm:$0xff]
        %v2254 = vld [vmem:[%s711 + $0xe0] sm:$0xff]
        %v2255 = vld [vmem:[%s711 + $0xe8] sm:$0xff]
        %v2256 = vld [vmem:[%s711 + $0xf0] sm:$0xff]
        %v2257 = vld [vmem:[%s711 + $0xf8] sm:$0xff]
        %v2258 = vld [vmem:[%s823] sm:$0xf]
        %v2260 = vlaneseq
        %v2261 = vshrl.u32 %v2260, 7
        %v2262 = vsub.s32 0, %v2261
        %v2263 = vrot.slane %v2258, %v2262
        %v2264 = vlaneseq
        %v2265 = vshrl.u32 %v2264, 7
        %v2266 = vsub.s32 1, %v2265
        %v2267 = vrot.slane %v2258, %v2266
        %v2268 = vlaneseq
        %v2269 = vshrl.u32 %v2268, 7
        %v2270 = vsub.s32 2, %v2269
        %v2271 = vrot.slane %v2258, %v2270
        %v2272 = vlaneseq
        %v2273 = vshrl.u32 %v2272, 7
        %v2274 = vsub.s32 3, %v2273
        %v2275 = vrot.slane %v2258, %v2274
        %v2312 = vunpack.c.l.b16 %v2226
        %v2313 = vunpack.c.h.b16 %v2226
        %v2314 = vunpack.c.l.b16 %v2227
        %v2315 = vunpack.c.h.b16 %v2227
        %v2316 = vunpack.c.l.b16 %v2228
        %v2317 = vunpack.c.h.b16 %v2228
        %v2318 = vunpack.c.l.b16 %v2229
        %v2319 = vunpack.c.h.b16 %v2229
        %v2320 = vunpack.c.l.b16 %v2230
        %v2321 = vunpack.c.h.b16 %v2230
        %v2322 = vunpack.c.l.b16 %v2231
        %v2323 = vunpack.c.h.b16 %v2231
        %v2324 = vunpack.c.l.b16 %v2232
        %v2325 = vunpack.c.h.b16 %v2232
        %v2326 = vunpack.c.l.b16 %v2233
        %v2327 = vunpack.c.h.b16 %v2233
        %v2328 = vunpack.c.l.b16 %v2234
        %v2329 = vunpack.c.h.b16 %v2234
        %v2330 = vunpack.c.l.b16 %v2235
        %v2331 = vunpack.c.h.b16 %v2235
        %v2332 = vunpack.c.l.b16 %v2236
        %v2333 = vunpack.c.h.b16 %v2236
        %v2334 = vunpack.c.l.b16 %v2237
        %v2335 = vunpack.c.h.b16 %v2237
        %v2336 = vunpack.c.l.b16 %v2238
        %v2337 = vunpack.c.h.b16 %v2238
        %v2338 = vunpack.c.l.b16 %v2239
        %v2339 = vunpack.c.h.b16 %v2239
        %v2340 = vunpack.c.l.b16 %v2240
        %v2341 = vunpack.c.h.b16 %v2240
        %v2342 = vunpack.c.l.b16 %v2241
        %v2343 = vunpack.c.h.b16 %v2241
        %v2344 = vunpack.c.l.b16 %v2242
        %v2345 = vunpack.c.h.b16 %v2242
        %v2346 = vunpack.c.l.b16 %v2243
        %v2347 = vunpack.c.h.b16 %v2243
        %v2348 = vunpack.c.l.b16 %v2244
        %v2349 = vunpack.c.h.b16 %v2244
        %v2350 = vunpack.c.l.b16 %v2245
        %v2351 = vunpack.c.h.b16 %v2245
        %v2352 = vunpack.c.l.b16 %v2246
        %v2353 = vunpack.c.h.b16 %v2246
        %v2354 = vunpack.c.l.b16 %v2247
        %v2355 = vunpack.c.h.b16 %v2247
        %v2356 = vunpack.c.l.b16 %v2248
        %v2357 = vunpack.c.h.b16 %v2248
        %v2358 = vunpack.c.l.b16 %v2249
        %v2359 = vunpack.c.h.b16 %v2249
        %v2360 = vunpack.c.l.b16 %v2250
        %v2361 = vunpack.c.h.b16 %v2250
        %v2362 = vunpack.c.l.b16 %v2251
        %v2363 = vunpack.c.h.b16 %v2251
        %v2364 = vunpack.c.l.b16 %v2252
        %v2365 = vunpack.c.h.b16 %v2252
        %v2366 = vunpack.c.l.b16 %v2253
        %v2367 = vunpack.c.h.b16 %v2253
        %v2368 = vunpack.c.l.b16 %v2254
        %v2369 = vunpack.c.h.b16 %v2254
        %v2370 = vunpack.c.l.b16 %v2255
        %v2371 = vunpack.c.h.b16 %v2255
        %v2372 = vunpack.c.l.b16 %v2256
        %v2373 = vunpack.c.h.b16 %v2256
        %v2374 = vunpack.c.l.b16 %v2257
        %v2375 = vunpack.c.h.b16 %v2257
        %v2376 = vpack.c.b16 %v2316, %v2312
        %v2377 = vpack.c.b16 %v2317, %v2313
        %v2378 = vpack.c.b16 %v2318, %v2314
        %v2379 = vpack.c.b16 %v2319, %v2315
        %v2380 = vpack.c.b16 %v2324, %v2320
        %v2381 = vpack.c.b16 %v2325, %v2321
        %v2382 = vpack.c.b16 %v2326, %v2322
        %v2383 = vpack.c.b16 %v2327, %v2323
        %v2384 = vpack.c.b16 %v2332, %v2328
        %v2385 = vpack.c.b16 %v2333, %v2329
        %v2386 = vpack.c.b16 %v2334, %v2330
        %v2387 = vpack.c.b16 %v2335, %v2331
        %v2388 = vpack.c.b16 %v2340, %v2336
        %v2389 = vpack.c.b16 %v2341, %v2337
        %v2390 = vpack.c.b16 %v2342, %v2338
        %v2391 = vpack.c.b16 %v2343, %v2339
        %v2392 = vpack.c.b16 %v2348, %v2344
        %v2393 = vpack.c.b16 %v2349, %v2345
        %v2394 = vpack.c.b16 %v2350, %v2346
        %v2395 = vpack.c.b16 %v2351, %v2347
        %v2396 = vpack.c.b16 %v2356, %v2352
        %v2397 = vpack.c.b16 %v2357, %v2353
        %v2398 = vpack.c.b16 %v2358, %v2354
        %v2399 = vpack.c.b16 %v2359, %v2355
        %v2400 = vpack.c.b16 %v2364, %v2360
        %v2401 = vpack.c.b16 %v2365, %v2361
        %v2402 = vpack.c.b16 %v2366, %v2362
        %v2403 = vpack.c.b16 %v2367, %v2363
        %v2404 = vpack.c.b16 %v2372, %v2368
        %v2405 = vpack.c.b16 %v2373, %v2369
        %v2406 = vpack.c.b16 %v2374, %v2370
        %v2407 = vpack.c.b16 %v2375, %v2371
        %2440 = vmatprep.subr.bf16.mxu0 %v2377
        %2441 = vmatpush1.bf16.msra.mxu0 %v2376
        %2442 = vmatprep.subr.bf16.mxu0 %v2381
        %2443 = vmatpush1.bf16.msra.mxu0 %v2380
        %2444 = vmatprep.subr.bf16.mxu0 %v2385
        %2445 = vmatpush1.bf16.msra.mxu0 %v2384
        %2446 = vmatprep.subr.bf16.mxu0 %v2389
        %2447 = vmatpush1.bf16.msra.mxu0 %v2388
        %2448 = vmatprep.subr.bf16.mxu0 %v2393
        %2449 = vmatpush1.bf16.msra.mxu0 %v2392
        %2450 = vmatprep.subr.bf16.mxu0 %v2397
        %2451 = vmatpush1.bf16.msra.mxu0 %v2396
        %2452 = vmatprep.subr.bf16.mxu0 %v2401
        %2453 = vmatpush1.bf16.msra.mxu0 %v2400
        %2454 = vmatprep.subr.bf16.mxu0 %v2405
        %2455 = vmatpush1.bf16.msra.mxu0 %v2404
        %2456 = vmatprep.subr.bf16.mxu0 0
        %2457 = vmatpush1.bf16.msra.mxu0 0
        %2458 = vmatprep.subr.bf16.mxu0 0
        %2459 = vmatpush1.bf16.msra.mxu0 0
        %2460 = vmatprep.subr.bf16.mxu0 0
        %2461 = vmatpush1.bf16.msra.mxu0 0
        %2462 = vmatprep.subr.bf16.mxu0 0
        %2463 = vmatpush1.bf16.msra.mxu0 0
        %2464 = vmatprep.subr.bf16.mxu0 0
        %2465 = vmatpush1.bf16.msra.mxu0 0
        %2466 = vmatprep.subr.bf16.mxu0 0
        %2467 = vmatpush1.bf16.msra.mxu0 0
        %2468 = vmatprep.subr.bf16.mxu0 0
        %2469 = vmatpush1.bf16.msra.mxu0 0
        %2470 = vmatprep.subr.bf16.mxu0 0
        %2471 = vmatpush1.bf16.msra.mxu0 0
        %2472 = vmatprep.mubr.bf16.mxu0 0
        %2473 = vmatmul.mubr.bf16.gmra.mrb[0].mxu0 %v2225
        %v2474 = vpop.f32.mrb[0].mxu0
        %v2475 = vadd.f32 %v2263, %v2474
        %v2476 = vpop.f32.mrb[0].mxu0
        %v2477 = vadd.f32 %v2267, %v2476
        %v2478 = vpop.f32.mrb[0].mxu0
        %v2479 = vadd.f32 %v2263, %v2478
        %v2480 = vpop.f32.mrb[0].mxu0
        %v2481 = vadd.f32 %v2267, %v2480
        %2482 = vdwg.mxu0
        %2483 = vmatprep.subr.bf16.mxu0 %v2379
        %2484 = vmatpush1.bf16.msra.mxu0 %v2378
        %2485 = vmatprep.subr.bf16.mxu0 %v2383
        %2486 = vmatpush1.bf16.msra.mxu0 %v2382
        %2487 = vmatprep.subr.bf16.mxu0 %v2387
        %2488 = vmatpush1.bf16.msra.mxu0 %v2386
        %2489 = vmatprep.subr.bf16.mxu0 %v2391
        %2490 = vmatpush1.bf16.msra.mxu0 %v2390
        %2491 = vmatprep.subr.bf16.mxu0 %v2395
        %2492 = vmatpush1.bf16.msra.mxu0 %v2394
        %2493 = vmatprep.subr.bf16.mxu0 %v2399
        %2494 = vmatpush1.bf16.msra.mxu0 %v2398
        %2495 = vmatprep.subr.bf16.mxu0 %v2403
        %2496 = vmatpush1.bf16.msra.mxu0 %v2402
        %2497 = vmatprep.subr.bf16.mxu0 %v2407
        %2498 = vmatpush1.bf16.msra.mxu0 %v2406
        %2499 = vmatprep.subr.bf16.mxu0 0
        %2500 = vmatpush1.bf16.msra.mxu0 0
        %2501 = vmatprep.subr.bf16.mxu0 0
        %2502 = vmatpush1.bf16.msra.mxu0 0
        %2503 = vmatprep.subr.bf16.mxu0 0
        %2504 = vmatpush1.bf16.msra.mxu0 0
        %2505 = vmatprep.subr.bf16.mxu0 0
        %2506 = vmatpush1.bf16.msra.mxu0 0
        %2507 = vmatprep.subr.bf16.mxu0 0
        %2508 = vmatpush1.bf16.msra.mxu0 0
        %2509 = vmatprep.subr.bf16.mxu0 0
        %2510 = vmatpush1.bf16.msra.mxu0 0
        %2511 = vmatprep.subr.bf16.mxu0 0
        %2512 = vmatpush1.bf16.msra.mxu0 0
        %2513 = vmatprep.subr.bf16.mxu0 0
        %2514 = vmatpush1.bf16.msra.mxu0 0
        %2515 = vmatprep.mubr.bf16.mxu0 0
        %2516 = vmatmul.mubr.bf16.gmra.mrb[0].mxu0 %v2225
        %v2517 = vpop.f32.mrb[0].mxu0
        %v2518 = vadd.f32 %v2271, %v2517
        %v2519 = vpop.f32.mrb[0].mxu0
        %v2520 = vadd.f32 %v2275, %v2519
        %v2521 = vpop.f32.mrb[0].mxu0
        %v2522 = vadd.f32 %v2271, %v2521
        %v2523 = vpop.f32.mrb[0].mxu0
        %v2524 = vadd.f32 %v2275, %v2523
        %2525 = vdwg.mxu0
        %v2526 = vmul.f32 %v2475, %v2475
        %v2527 = vmul.f32 %v2477, %v2477
        %v2528 = vmul.f32 %v2518, %v2518
        %v2529 = vmul.f32 %v2520, %v2520
        %v2530 = vmul.f32 %v2479, %v2479
        %v2531 = vmul.f32 %v2481, %v2481
        %v2532 = vmul.f32 %v2522, %v2522
        %v2533 = vmul.f32 %v2524, %v2524
        %v2534 = vmul.f32 %v2475, %v2526
        %v2535 = vmul.f32 %v2477, %v2527
        %v2536 = vmul.f32 %v2518, %v2528
        %v2537 = vmul.f32 %v2520, %v2529
        %v2538 = vmul.f32 %v2479, %v2530
        %v2539 = vmul.f32 %v2481, %v2531
        %v2540 = vmul.f32 %v2522, %v2532
        %v2541 = vmul.f32 %v2524, %v2533
        %v2542 = vmul.f32 %v2534, 0.044715
        %v2543 = vmul.f32 %v2535, 0.044715
        %v2544 = vmul.f32 %v2536, 0.044715
        %v2545 = vmul.f32 %v2537, 0.044715
        %v2546 = vmul.f32 %v2538, 0.044715
        %v2547 = vmul.f32 %v2539, 0.044715
        %v2548 = vmul.f32 %v2540, 0.044715
        %v2549 = vmul.f32 %v2541, 0.044715
        %v2550 = vadd.f32 %v2475, %v2542
        %v2551 = vadd.f32 %v2477, %v2543
        %v2552 = vadd.f32 %v2518, %v2544
        %v2553 = vadd.f32 %v2520, %v2545
        %v2554 = vadd.f32 %v2479, %v2546
        %v2555 = vadd.f32 %v2481, %v2547
        %v2556 = vadd.f32 %v2522, %v2548
        %v2557 = vadd.f32 %v2524, %v2549
        %v2558 = vmul.f32 %v2550, 0.7978846
        %v2559 = vmul.f32 %v2551, 0.7978846
        %v2560 = vmul.f32 %v2552, 0.7978846
        %v2561 = vmul.f32 %v2553, 0.7978846
        %v2562 = vmul.f32 %v2554, 0.7978846
        %v2563 = vmul.f32 %v2555, 0.7978846
        %v2564 = vmul.f32 %v2556, 0.7978846
        %v2565 = vmul.f32 %v2557, 0.7978846
        %v2566 = vtanh.pop %v2558
        %v2567 = vtanh.pop %v2559
        %v2568 = vtanh.pop %v2560
        %v2569 = vtanh.pop %v2561
        %v2570 = vtanh.pop %v2562
        %v2571 = vtanh.pop %v2563
        %v2572 = vtanh.pop %v2564
        %v2573 = vtanh.pop %v2565
        %v2574 = vadd.f32 %v2566, 1.0
        %v2575 = vadd.f32 %v2567, 1.0
        %v2576 = vadd.f32 %v2568, 1.0
        %v2577 = vadd.f32 %v2569, 1.0
        %v2578 = vadd.f32 %v2570, 1.0
        %v2579 = vadd.f32 %v2571, 1.0
        %v2580 = vadd.f32 %v2572, 1.0
        %v2581 = vadd.f32 %v2573, 1.0
        %v2582 = vmul.f32 %v2574, 0.5
        %v2583 = vmul.f32 %v2575, 0.5
        %v2584 = vmul.f32 %v2576, 0.5
        %v2585 = vmul.f32 %v2577, 0.5
        %v2586 = vmul.f32 %v2578, 0.5
        %v2587 = vmul.f32 %v2579, 0.5
        %v2588 = vmul.f32 %v2580, 0.5
        %v2589 = vmul.f32 %v2581, 0.5
        %v2590 = vmul.f32 %v2475, %v2582
        %v2591 = vmul.f32 %v2477, %v2583
        %v2592 = vmul.f32 %v2518, %v2584
        %v2593 = vmul.f32 %v2520, %v2585
        %v2594 = vmul.f32 %v2479, %v2586
        %v2595 = vmul.f32 %v2481, %v2587
        %v2596 = vmul.f32 %v2522, %v2588
        %v2597 = vmul.f32 %v2524, %v2589
        %v2598 = vpack.c.bf16 %v2594, %v2590
        %v2599 = vpack.c.bf16 %v2595, %v2591
        %v2600 = vpack.c.bf16 %v2596, %v2592
        %v2601 = vpack.c.bf16 %v2597, %v2593
        %v2602 = vld [vmem:[%s720] sm:$0xf]
        %v2603 = vld [vmem:[%s720 + $0x4] sm:$0xf]
        %v2604 = vld [vmem:[%s720 + $0x8] sm:$0xf]
        %v2605 = vld [vmem:[%s720 + $0xc] sm:$0xf]
        %v2606 = vld [vmem:[%s720 + $0x10] sm:$0xf]
        %v2607 = vld [vmem:[%s720 + $0x14] sm:$0xf]
        %v2608 = vld [vmem:[%s720 + $0x18] sm:$0xf]
        %v2609 = vld [vmem:[%s720 + $0x1c] sm:$0xf]
        %v2610 = vld [vmem:[%s720 + $0x20] sm:$0xf]
        %v2611 = vld [vmem:[%s720 + $0x24] sm:$0xf]
        %v2612 = vld [vmem:[%s720 + $0x28] sm:$0xf]
        %v2613 = vld [vmem:[%s720 + $0x2c] sm:$0xf]
        %v2614 = vld [vmem:[%s720 + $0x30] sm:$0xf]
        %v2615 = vld [vmem:[%s720 + $0x34] sm:$0xf]
        %v2616 = vld [vmem:[%s720 + $0x38] sm:$0xf]
        %v2617 = vld [vmem:[%s720 + $0x3c] sm:$0xf]
        %v2618 = vld [vmem:[%s720 + $0x40] sm:$0xf]
        %v2619 = vld [vmem:[%s720 + $0x44] sm:$0xf]
        %v2620 = vld [vmem:[%s720 + $0x48] sm:$0xf]
        %v2621 = vld [vmem:[%s720 + $0x4c] sm:$0xf]
        %v2622 = vld [vmem:[%s720 + $0x50] sm:$0xf]
        %v2623 = vld [vmem:[%s720 + $0x54] sm:$0xf]
        %v2624 = vld [vmem:[%s720 + $0x58] sm:$0xf]
        %v2625 = vld [vmem:[%s720 + $0x5c] sm:$0xf]
        %v2626 = vld [vmem:[%s720 + $0x60] sm:$0xf]
        %v2627 = vld [vmem:[%s720 + $0x64] sm:$0xf]
        %v2628 = vld [vmem:[%s720 + $0x68] sm:$0xf]
        %v2629 = vld [vmem:[%s720 + $0x6c] sm:$0xf]
        %v2630 = vld [vmem:[%s720 + $0x70] sm:$0xf]
        %v2631 = vld [vmem:[%s720 + $0x74] sm:$0xf]
        %v2632 = vld [vmem:[%s720 + $0x78] sm:$0xf]
        %v2633 = vld [vmem:[%s720 + $0x7c] sm:$0xf]
        %v2634 = vld [vmem:[%s720 + $0x80] sm:$0xf]
        %v2635 = vld [vmem:[%s720 + $0x84] sm:$0xf]
        %v2636 = vld [vmem:[%s720 + $0x88] sm:$0xf]
        %v2637 = vld [vmem:[%s720 + $0x8c] sm:$0xf]
        %v2638 = vld [vmem:[%s720 + $0x90] sm:$0xf]
        %v2639 = vld [vmem:[%s720 + $0x94] sm:$0xf]
        %v2640 = vld [vmem:[%s720 + $0x98] sm:$0xf]
        %v2641 = vld [vmem:[%s720 + $0x9c] sm:$0xf]
        %v2642 = vld [vmem:[%s720 + $0xa0] sm:$0xf]
        %v2643 = vld [vmem:[%s720 + $0xa4] sm:$0xf]
        %v2644 = vld [vmem:[%s720 + $0xa8] sm:$0xf]
        %v2645 = vld [vmem:[%s720 + $0xac] sm:$0xf]
        %v2646 = vld [vmem:[%s720 + $0xb0] sm:$0xf]
        %v2647 = vld [vmem:[%s720 + $0xb4] sm:$0xf]
        %v2648 = vld [vmem:[%s720 + $0xb8] sm:$0xf]
        %v2649 = vld [vmem:[%s720 + $0xbc] sm:$0xf]
        %v2650 = vld [vmem:[%s720 + $0xc0] sm:$0xf]
        %v2651 = vld [vmem:[%s720 + $0xc4] sm:$0xf]
        %v2652 = vld [vmem:[%s720 + $0xc8] sm:$0xf]
        %v2653 = vld [vmem:[%s720 + $0xcc] sm:$0xf]
        %v2654 = vld [vmem:[%s720 + $0xd0] sm:$0xf]
        %v2655 = vld [vmem:[%s720 + $0xd4] sm:$0xf]
        %v2656 = vld [vmem:[%s720 + $0xd8] sm:$0xf]
        %v2657 = vld [vmem:[%s720 + $0xdc] sm:$0xf]
        %v2658 = vld [vmem:[%s720 + $0xe0] sm:$0xf]
        %v2659 = vld [vmem:[%s720 + $0xe4] sm:$0xf]
        %v2660 = vld [vmem:[%s720 + $0xe8] sm:$0xf]
        %v2661 = vld [vmem:[%s720 + $0xec] sm:$0xf]
        %v2662 = vld [vmem:[%s720 + $0xf0] sm:$0xf]
        %v2663 = vld [vmem:[%s720 + $0xf4] sm:$0xf]
        %v2664 = vld [vmem:[%s720 + $0xf8] sm:$0xf]
        %v2665 = vld [vmem:[%s720 + $0xfc] sm:$0xf]
        %v2666 = vld [vmem:[%s826] sm:$0x1]
        %v2668 = vlaneseq
        %v2669 = vshrl.u32 %v2668, 7
        %v2670 = vsub.s32 0, %v2669
        %v2671 = vrot.slane %v2666, %v2670
        %v2737 = vunpack.c.l.b16 %v2602
        %v2738 = vunpack.c.l.b16 %v2603
        %v2739 = vunpack.c.l.b16 %v2604
        %v2740 = vunpack.c.l.b16 %v2605
        %v2741 = vunpack.c.l.b16 %v2606
        %v2742 = vunpack.c.l.b16 %v2607
        %v2743 = vunpack.c.l.b16 %v2608
        %v2744 = vunpack.c.l.b16 %v2609
        %v2745 = vunpack.c.l.b16 %v2610
        %v2746 = vunpack.c.l.b16 %v2611
        %v2747 = vunpack.c.l.b16 %v2612
        %v2748 = vunpack.c.l.b16 %v2613
        %v2749 = vunpack.c.l.b16 %v2614
        %v2750 = vunpack.c.l.b16 %v2615
        %v2751 = vunpack.c.l.b16 %v2616
        %v2752 = vunpack.c.l.b16 %v2617
        %v2753 = vunpack.c.l.b16 %v2618
        %v2754 = vunpack.c.l.b16 %v2619
        %v2755 = vunpack.c.l.b16 %v2620
        %v2756 = vunpack.c.l.b16 %v2621
        %v2757 = vunpack.c.l.b16 %v2622
        %v2758 = vunpack.c.l.b16 %v2623
        %v2759 = vunpack.c.l.b16 %v2624
        %v2760 = vunpack.c.l.b16 %v2625
        %v2761 = vunpack.c.l.b16 %v2626
        %v2762 = vunpack.c.l.b16 %v2627
        %v2763 = vunpack.c.l.b16 %v2628
        %v2764 = vunpack.c.l.b16 %v2629
        %v2765 = vunpack.c.l.b16 %v2630
        %v2766 = vunpack.c.l.b16 %v2631
        %v2767 = vunpack.c.l.b16 %v2632
        %v2768 = vunpack.c.l.b16 %v2633
        %v2769 = vunpack.c.l.b16 %v2634
        %v2770 = vunpack.c.l.b16 %v2635
        %v2771 = vunpack.c.l.b16 %v2636
        %v2772 = vunpack.c.l.b16 %v2637
        %v2773 = vunpack.c.l.b16 %v2638
        %v2774 = vunpack.c.l.b16 %v2639
        %v2775 = vunpack.c.l.b16 %v2640
        %v2776 = vunpack.c.l.b16 %v2641
        %v2777 = vunpack.c.l.b16 %v2642
        %v2778 = vunpack.c.l.b16 %v2643
        %v2779 = vunpack.c.l.b16 %v2644
        %v2780 = vunpack.c.l.b16 %v2645
        %v2781 = vunpack.c.l.b16 %v2646
        %v2782 = vunpack.c.l.b16 %v2647
        %v2783 = vunpack.c.l.b16 %v2648
        %v2784 = vunpack.c.l.b16 %v2649
        %v2785 = vunpack.c.l.b16 %v2650
        %v2786 = vunpack.c.l.b16 %v2651
        %v2787 = vunpack.c.l.b16 %v2652
        %v2788 = vunpack.c.l.b16 %v2653
        %v2789 = vunpack.c.l.b16 %v2654
        %v2790 = vunpack.c.l.b16 %v2655
        %v2791 = vunpack.c.l.b16 %v2656
        %v2792 = vunpack.c.l.b16 %v2657
        %v2793 = vunpack.c.l.b16 %v2658
        %v2794 = vunpack.c.l.b16 %v2659
        %v2795 = vunpack.c.l.b16 %v2660
        %v2796 = vunpack.c.l.b16 %v2661
        %v2797 = vunpack.c.l.b16 %v2662
        %v2798 = vunpack.c.l.b16 %v2663
        %v2799 = vunpack.c.l.b16 %v2664
        %v2800 = vunpack.c.l.b16 %v2665
        %v2801 = vpack.c.b16 %v2738, %v2737
        %v2802 = vpack.c.b16 %v2740, %v2739
        %v2803 = vpack.c.b16 %v2742, %v2741
        %v2804 = vpack.c.b16 %v2744, %v2743
        %v2805 = vpack.c.b16 %v2746, %v2745
        %v2806 = vpack.c.b16 %v2748, %v2747
        %v2807 = vpack.c.b16 %v2750, %v2749
        %v2808 = vpack.c.b16 %v2752, %v2751
        %v2809 = vpack.c.b16 %v2754, %v2753
        %v2810 = vpack.c.b16 %v2756, %v2755
        %v2811 = vpack.c.b16 %v2758, %v2757
        %v2812 = vpack.c.b16 %v2760, %v2759
        %v2813 = vpack.c.b16 %v2762, %v2761
        %v2814 = vpack.c.b16 %v2764, %v2763
        %v2815 = vpack.c.b16 %v2766, %v2765
        %v2816 = vpack.c.b16 %v2768, %v2767
        %v2817 = vpack.c.b16 %v2770, %v2769
        %v2818 = vpack.c.b16 %v2772, %v2771
        %v2819 = vpack.c.b16 %v2774, %v2773
        %v2820 = vpack.c.b16 %v2776, %v2775
        %v2821 = vpack.c.b16 %v2778, %v2777
        %v2822 = vpack.c.b16 %v2780, %v2779
        %v2823 = vpack.c.b16 %v2782, %v2781
        %v2824 = vpack.c.b16 %v2784, %v2783
        %v2825 = vpack.c.b16 %v2786, %v2785
        %v2826 = vpack.c.b16 %v2788, %v2787
        %v2827 = vpack.c.b16 %v2790, %v2789
        %v2828 = vpack.c.b16 %v2792, %v2791
        %v2829 = vpack.c.b16 %v2794, %v2793
        %v2830 = vpack.c.b16 %v2796, %v2795
        %v2831 = vpack.c.b16 %v2798, %v2797
        %v2832 = vpack.c.b16 %v2800, %v2799
        %2865 = vmatprep.subr.bf16.mxu0 0
        %2866 = vmatpush1.bf16.msra.mxu0 %v2801
        %2867 = vmatprep.subr.bf16.mxu0 0
        %2868 = vmatpush1.bf16.msra.mxu0 %v2802
        %2869 = vmatprep.subr.bf16.mxu0 0
        %2870 = vmatpush1.bf16.msra.mxu0 %v2803
        %2871 = vmatprep.subr.bf16.mxu0 0
        %2872 = vmatpush1.bf16.msra.mxu0 %v2804
        %2873 = vmatprep.subr.bf16.mxu0 0
        %2874 = vmatpush1.bf16.msra.mxu0 %v2805
        %2875 = vmatprep.subr.bf16.mxu0 0
        %2876 = vmatpush1.bf16.msra.mxu0 %v2806
        %2877 = vmatprep.subr.bf16.mxu0 0
        %2878 = vmatpush1.bf16.msra.mxu0 %v2807
        %2879 = vmatprep.subr.bf16.mxu0 0
        %2880 = vmatpush1.bf16.msra.mxu0 %v2808
        %2881 = vmatprep.subr.bf16.mxu0 0
        %2882 = vmatpush1.bf16.msra.mxu0 %v2809
        %2883 = vmatprep.subr.bf16.mxu0 0
        %2884 = vmatpush1.bf16.msra.mxu0 %v2810
        %2885 = vmatprep.subr.bf16.mxu0 0
        %2886 = vmatpush1.bf16.msra.mxu0 %v2811
        %2887 = vmatprep.subr.bf16.mxu0 0
        %2888 = vmatpush1.bf16.msra.mxu0 %v2812
        %2889 = vmatprep.subr.bf16.mxu0 0
        %2890 = vmatpush1.bf16.msra.mxu0 %v2813
        %2891 = vmatprep.subr.bf16.mxu0 0
        %2892 = vmatpush1.bf16.msra.mxu0 %v2814
        %2893 = vmatprep.subr.bf16.mxu0 0
        %2894 = vmatpush1.bf16.msra.mxu0 %v2815
        %2895 = vmatprep.subr.bf16.mxu0 0
        %2896 = vmatpush1.bf16.msra.mxu0 %v2816
        %2897 = vmatprep.mubr.bf16.mxu0 %v2599
        %2898 = vmatmul.mubr.bf16.gmra.mrb[0].mxu0 %v2598
        %v2899 = vpop.f32.mrb[0].mxu0
        %v2900 = vadd.f32 %v2671, %v2899
        %v2901 = vpop.f32.mrb[0].mxu0
        %v2902 = vpop.f32.mrb[0].mxu0
        %v2903 = vadd.f32 %v2671, %v2902
        %v2904 = vpop.f32.mrb[0].mxu0
        %2905 = vdwg.mxu0
        %2906 = vmatprep.subr.bf16.mxu0 0
        %2907 = vmatpush1.bf16.msra.mxu0 %v2817
        %2908 = vmatprep.subr.bf16.mxu0 0
        %2909 = vmatpush1.bf16.msra.mxu0 %v2818
        %2910 = vmatprep.subr.bf16.mxu0 0
        %2911 = vmatpush1.bf16.msra.mxu0 %v2819
        %2912 = vmatprep.subr.bf16.mxu0 0
        %2913 = vmatpush1.bf16.msra.mxu0 %v2820
        %2914 = vmatprep.subr.bf16.mxu0 0
        %2915 = vmatpush1.bf16.msra.mxu0 %v2821
        %2916 = vmatprep.subr.bf16.mxu0 0
        %2917 = vmatpush1.bf16.msra.mxu0 %v2822
        %2918 = vmatprep.subr.bf16.mxu0 0
        %2919 = vmatpush1.bf16.msra.mxu0 %v2823
        %2920 = vmatprep.subr.bf16.mxu0 0
        %2921 = vmatpush1.bf16.msra.mxu0 %v2824
        %2922 = vmatprep.subr.bf16.mxu0 0
        %2923 = vmatpush1.bf16.msra.mxu0 %v2825
        %2924 = vmatprep.subr.bf16.mxu0 0
        %2925 = vmatpush1.bf16.msra.mxu0 %v2826
        %2926 = vmatprep.subr.bf16.mxu0 0
        %2927 = vmatpush1.bf16.msra.mxu0 %v2827
        %2928 = vmatprep.subr.bf16.mxu0 0
        %2929 = vmatpush1.bf16.msra.mxu0 %v2828
        %2930 = vmatprep.subr.bf16.mxu0 0
        %2931 = vmatpush1.bf16.msra.mxu0 %v2829
        %2932 = vmatprep.subr.bf16.mxu0 0
        %2933 = vmatpush1.bf16.msra.mxu0 %v2830
        %2934 = vmatprep.subr.bf16.mxu0 0
        %2935 = vmatpush1.bf16.msra.mxu0 %v2831
        %2936 = vmatprep.subr.bf16.mxu0 0
        %2937 = vmatpush1.bf16.msra.mxu0 %v2832
        %2938 = vmatprep.mubr.bf16.mxu0 %v2601
        %2939 = vmatmul.mubr.bf16.gmra.mrb[0].mxu0 %v2600
        %v2940 = vpop.f32.mrb[0].mxu0
        %v2941 = vadd.f32 %v2900, %v2940
        %v2942 = vpop.f32.mrb[0].mxu0
        %v2943 = vpop.f32.mrb[0].mxu0
        %v2944 = vadd.f32 %v2903, %v2943
        %v2945 = vpop.f32.mrb[0].mxu0
        %2946 = vdwg.mxu0
        %v2947 = vadd.f32 %v2941, %v2223
        %v2948 = vadd.f32 %v2944, %v2224
        %v2949 = vld [vmem:[%s829] sm:$0x1]
        %v2950 = vld [vmem:[%s832] sm:$0x1]
        %2951 = vadd.xlane.f32.xlu0 %v2947
        %v2952 = vpop.xlane.xlu0 %2951
        %2953 = vadd.xlane.f32.xlu0 %v2948
        %v2954 = vpop.xlane.xlu0 %2953
        %v2955 = vmul.f32 %v2952, %v2190
        %v2956 = vmul.f32 %v2954, %v2190
        %v2957 = vsub.f32 %v2947, %v2955
        %v2958 = vsub.f32 %v2948, %v2956
        %v2959 = vmul.f32 %v2957, %v2957
        %v2960 = vmul.f32 %v2958, %v2958
        %2961 = vadd.xlane.f32.xlu0 %v2959
        %v2962 = vpop.xlane.xlu0 %2961
        %2963 = vadd.xlane.f32.xlu0 %v2960
        %v2964 = vpop.xlane.xlu0 %2963
        %v2965 = vmul.f32 %v2962, %v2190
        %v2966 = vmul.f32 %v2964, %v2190
        %v2967 = vadd.f32 %v2965, 1e-12
        %v2968 = vadd.f32 %v2966, 1e-12
        %v2969 = vrsqrt.pop %v2967
        %v2970 = vrsqrt.pop %v2968
        %v2971 = vmul.f32 %v2957, %v2969
        %v2972 = vmul.f32 %v2958, %v2970
        %v2974 = vlaneseq
        %v2975 = vshrl.u32 %v2974, 7
        %v2976 = vsub.s32 0, %v2975
        %v2977 = vrot.slane %v2949, %v2976
        %v2979 = vmul.f32 %v2971, %v2977
        %v2980 = vmul.f32 %v2972, %v2977
        %v2982 = vlaneseq
        %v2983 = vshrl.u32 %v2982, 7
        %v2984 = vsub.s32 0, %v2983
        %v2985 = vrot.slane %v2950, %v2984
        %v2987 = vadd.f32 %v2979, %v2985
        %v2988 = vadd.f32 %v2980, %v2985
        %2989 = vst [vmem:[#allocation14] sm:$0xff] %v2987
        %2990 = vst [vmem:[#allocation14 + $0x8] sm:$0xff] %v2988
        %p2991 = scmp.eq.s32.totalorder %s34, 1
        // Predicated region
        $region121: #{tpu_custom_call.1} parent=83 // pred_check
          %p2992 = pneg %p2991
        $region122: #{tpu_custom_call.1} parent=83 // pred_check_branch
          %2994 = sbr.rel (%p2992) target = $region124
        $region123: #{tpu_custom_call.1} parent=83 // pred_region
          %v2995 = vadd.f32 %v1213, 0.0
          %v2996 = vadd.f32 %v2995, %v1324
          %v2997 = vadd.f32 %v2996, %v1435
          %v2998 = vadd.f32 %v2997, %v1545
          %v2999 = vmul.f32 %v2998, 0.25
          %v3000 = vadd.f32 %v1675, 0.0
          %v3001 = vadd.f32 %v3000, %v1784
          %v3002 = vadd.f32 %v3001, %v1894
          %v3003 = vadd.f32 %v3002, %v2004
          %v3004 = vmul.f32 %v3003, 0.25
          %v3006 = vrot.slane %v3004, 7
          %vm3008 = vcmask 1040384
          %v3009 = vsel %vm3008, %v2999, %v3006
          %vm3010 = vcmask 58368
          %3011 = vst.msk [vmem:[#allocation15] sm:$0x3] %vm3010, %v3009
        $region124: #{tpu_custom_call.1} parent=83 // pred_fallthru
          _
        // Predicated region
        $region125: #{tpu_custom_call.1} parent=83 // pred_check
          %p3012 = pneg %p443
        $region126: #{tpu_custom_call.1} parent=83 // pred_check_branch
          %3014 = sbr.rel (%p3012) target = $region128
        $region127: #{tpu_custom_call.1} parent=83 // pred_region
          %s3016 = ssub.s32 256, 256
          %3017 = vsyncadd [#allocation4], %s3016
          %s3018 = sshll.u32 [#allocation14], 4
          %s3019 = int_to_ptr.vmem [resolvable:$true] %s3018
          %3024 = dma.vmem_to_hbm [thread:$0]  %s3019, 256, %s16, [#allocation4], 128, 128, 8
        $region128: #{tpu_custom_call.1} parent=83 // pred_fallthru
          _
        // Predicated region
        $region129: #{tpu_custom_call.1} parent=83 // pred_check
          %p3025 = pneg %p464
        $region130: #{tpu_custom_call.1} parent=83 // pred_check_branch
          %3027 = sbr.rel (%p3025) target = $region132
        $region131: #{tpu_custom_call.1} parent=83 // pred_region
          %s3029 = ssub.s32 32, 32
          %3030 = vsyncadd [#allocation16], %s3029
          %s3032 = sshll.u32 [#allocation15], 4
          %s3033 = int_to_ptr.vmem [resolvable:$true] %s3032
          %3035 = dma.vmem_to_hbm [thread:$0]  %s3033, 32, %s17, [#allocation16]
        $region132: #{tpu_custom_call.1} parent=83 // pred_fallthru
          _
        // Predicated region
        $region133: #{tpu_custom_call.1} parent=83 // pred_check
          %p3036 = pneg %p443
        $region134: #{tpu_custom_call.1} parent=83 // pred_check_branch
          %3038 = sbr.rel (%p3036) target = $region136
        $region135: #{tpu_custom_call.1} parent=83 // pred_region
          %3039 = dma.done [#allocation4], 256
        $region136: #{tpu_custom_call.1} parent=83 // pred_fallthru
          _
        // Predicated region
        $region137: #{tpu_custom_call.1} parent=83 // pred_check
          %p3040 = pneg %p464
        $region138: #{tpu_custom_call.1} parent=83 // pred_check_branch
          %3042 = sbr.rel (%p3040) target = $region140
        $region139: #{tpu_custom_call.1} parent=83 // pred_region
          %3043 = dma.done [#allocation16], 32
        $region140: #{tpu_custom_call.1} parent=83 // pred_fallthru
          _
      $region84: #{tpu_custom_call.1} parent=5 // pred_fallthru
        _
      %p3044 = scmp.le.s32.totalorder 2, %s29
      // Predicated region
      $region141: #{tpu_custom_call.1} parent=5 // pred_check
        %p3045 = pneg %p3044
      $region142: #{tpu_custom_call.1} parent=5 // pred_check_branch
        %3047 = sbr.rel (%p3045) target = $region144
      $region143: #{tpu_custom_call.1} parent=5 // pred_region
        %s3048 = ssub.s32 %s29, 2
      $region144: #{tpu_custom_call.1} parent=5 // pred_fallthru
        _
    $region6: #{tpu_custom_call.1} parent=1 // loop_footer
      %s33 = sadd.s32 1, %s29
    $region7: #{tpu_custom_call.1} parent=1 // loop_footer_branch
      %28 = sbr.rel target = $region3
    $region8: #{tpu_custom_call.1} parent=1 // loop_exit
      _
    %3049 = vsyncpa [#allocation3], 1
    %s3050 = scalar_lea.sflag [#allocation3], 1
    %3051 = vsyncpa %s3050, 1
    %3052 = vsyncpa [#allocation6], 1
    %3053 = vsyncpa [#allocation9], 1
    %3054 = vsyncpa [#allocation4], 1
    %s3055 = scalar_lea.sflag [#allocation4], 1
    %3056 = vsyncpa %s3055, 1
    %3057 = vsyncpa [#allocation16], 1

</llo_original>
